<compile_context>
chip_gen: v7x
topology: tpu7x:2x2x1
jax: 0.10.0
libtpu: 0.0.40
codegen_flags: <defaults>
</compile_context>

<pallas_src>
import functools

import jax
import jax.numpy as jnp
from jax.experimental import pallas as pl
from jax.experimental.pallas import tpu as pltpu

_VMEM = pl.BlockSpec(memory_space=pltpu.MemorySpace.VMEM)
_EPS = 1e-5


# ------------------------------ Pallas kernels ------------------------------

def _conv_bn_act_kernel(p_ref, w_ref, b_ref, g_ref, beta_ref, o_ref, *, relu):
    # im2col patches @ packed weight + bias, then BatchNorm (batch stats over
    # all rows = all N*H*W output positions) and optional ReLU.
    y = jnp.dot(p_ref[...], w_ref[...], preferred_element_type=jnp.float32) + b_ref[...]
    mean = jnp.mean(y, axis=0, keepdims=True)
    d = y - mean
    var = jnp.mean(d * d, axis=0, keepdims=True)
    y = d * jax.lax.rsqrt(var + _EPS) * g_ref[...] + beta_ref[...]
    if relu:
        y = jnp.maximum(y, 0.0)
    o_ref[...] = y


def _conv3_bn_deconv1_kernel(p_ref, w_ref, b_ref, g_ref, beta_ref, wd_ref, o_ref):
    # Conv3 + BN3 (no ReLU) fused with the revConv1 phase matmul.  The
    # (overlapping) col2im scatter-add for revConv1 happens outside in XLA.
    y = jnp.dot(p_ref[...], w_ref[...], preferred_element_type=jnp.float32) + b_ref[...]
    mean = jnp.mean(y, axis=0, keepdims=True)
    d = y - mean
    var = jnp.mean(d * d, axis=0, keepdims=True)
    z = d * jax.lax.rsqrt(var + _EPS) * g_ref[...] + beta_ref[...]
    o_ref[...] = jnp.dot(z, wd_ref[...], preferred_element_type=jnp.float32)


def _decoder_tail_kernel(h_ref, bd1_ref, g11_ref, b11_ref,
                         wd2_ref, bd2_ref, g22_ref, b22_ref,
                         wd3_ref, bd3_ref, o_ref):
    # bias(revConv1) + BN11 + ReLU + revConv2(phase matmul) + BN22 + ReLU
    # + revConv3(block-diagonal phase matmul) + bias + tanh, all fused.
    m = h_ref.shape[0]                              # N * 7 * 7
    h = h_ref[...] + bd1_ref[...]                   # revConv1 bias (post col2im)
    mean = jnp.mean(h, axis=0, keepdims=True)
    d = h - mean
    var = jnp.mean(d * d, axis=0, keepdims=True)
    z = jnp.maximum(d * jax.lax.rsqrt(var + _EPS) * g11_ref[...] + b11_ref[...], 0.0)

    # revConv2 (k=2, s=2, no tap overlap): columns ordered (ky, kx, c) = 4 x 64.
    y = jnp.dot(z, wd2_ref[...], preferred_element_type=jnp.float32) + bd2_ref[...]

    # BN22: per-channel stats pooled over rows AND the 4 output phases
    # (lane groups of 64), i.e. over all N*14*14 output positions.
    denom = 4.0 * m
    s = jnp.sum(y, axis=0, keepdims=True)
    mc = (s[:, 0:64] + s[:, 64:128] + s[:, 128:192] + s[:, 192:256]) / denom
    mt = jnp.concatenate([mc, mc, mc, mc], axis=1)
    dy = y - mt
    v = jnp.sum(dy * dy, axis=0, keepdims=True)
    vc = (v[:, 0:64] + v[:, 64:128] + v[:, 128:192] + v[:, 192:256]) / denom
    vt = jnp.concatenate([vc, vc, vc, vc], axis=1)
    z2 = jnp.maximum(dy * jax.lax.rsqrt(vt + _EPS) * g22_ref[...] + b22_ref[...], 0.0)

    # revConv3 (k=2, s=2, 64 -> 1) via a block-diagonal (256, 16) phase weight,
    # then bias + tanh.  Output columns: (ky2, kx2, ky3, kx3).
    o_ref[...] = jnp.tanh(
        jnp.dot(z2, wd3_ref[...], preferred_element_type=jnp.float32) + bd3_ref[...])


def _head_kernel(x_ref, w1_ref, b1_ref, w2_ref, b2_ref, w3_ref, b3_ref, o_ref):
    # Lin1 -> Lin2 -> Lin3 (no activations in between), all in one kernel.
    y = jnp.dot(x_ref[...], w1_ref[...], preferred_element_type=jnp.float32) + b1_ref[...]
    y = jnp.dot(y, w2_ref[...], preferred_element_type=jnp.float32) + b2_ref[...]
    o_ref[...] = jnp.dot(y, w3_ref[...], preferred_element_type=jnp.float32) + b3_ref[...]


def _call(kernel, out_shape, *args):
    return pl.pallas_call(
        kernel,
        out_shape=out_shape,
        in_specs=[_VMEM] * len(args),
        out_specs=_VMEM,
    )(*args)


def _conv_bn_act(patches, w, b, g, beta, relu):
    M = patches.shape[0]
    OC = w.shape[1]
    return _call(functools.partial(_conv_bn_act_kernel, relu=relu),
                 jax.ShapeDtypeStruct((M, OC), jnp.float32),
                 patches, w, b, g, beta)


# -------------------------- parameters & packing ----------------------------

def init_params(key):
    """Parameters in PyTorch layouts (conv: (OC,IC,kh,kw), convT: (Cin,Cout,kh,kw),
    linear: (out,in))."""
    ks = jax.random.split(key, 16)
    n = lambda k, shape, s: (s * jax.random.normal(k, shape)).astype(jnp.float32)
    p = {}
    p["conv1_w"], p["conv1_b"] = n(ks[0], (64, 1, 2, 2), 0.1),    n(ks[1], (64,), 0.01)
    p["conv2_w"], p["conv2_b"] = n(ks[2], (128, 64, 2, 2), 0.05), n(ks[3], (128,), 0.01)
    p["conv3_w"], p["conv3_b"] = n(ks[4], (256, 128, 3, 3), 0.03), n(ks[5], (256,), 0.01)
    p["rev1_w"], p["rev1_b"] = n(ks[6], (256, 128, 3, 3), 0.03),  n(ks[7], (128,), 0.01)
    p["rev2_w"], p["rev2_b"] = n(ks[8], (128, 64, 2, 2), 0.05),   n(ks[9], (64,), 0.01)
    p["rev3_w"], p["rev3_b"] = n(ks[10], (64, 1, 2, 2), 0.1),     n(ks[11], (1,), 0.01)
    for name, c in [("bn1", 64), ("bn2", 128), ("bn3", 256), ("bn11", 128), ("bn22", 64)]:
        p[name + "_g"] = jnp.ones((c,), jnp.float32)
        p[name + "_b"] = jnp.zeros((c,), jnp.float32)
    p["lin1_w"], p["lin1_b"] = n(ks[12], (256, 784), 0.03), jnp.zeros((256,), jnp.float32)
    p["lin2_w"], p["lin2_b"] = n(ks[13], (64, 256), 0.05),  jnp.zeros((64,), jnp.float32)
    p["lin3_w"], p["lin3_b"] = n(ks[14], (10, 64), 0.1),    jnp.zeros((10,), jnp.float32)
    return p


def pack_params(p):
    """One-time conversion to kernel-ready (matmul) layouts — no per-forward .T."""
    pp = {}
    row = lambda v: v.reshape(1, -1).astype(jnp.float32)

    def conv_w(w):  # (OC, IC, kh, kw) -> (kh*kw*IC, OC), K order (i, j, ic)
        OC, IC, kh, kw = w.shape
        return w.transpose(2, 3, 1, 0).reshape(kh * kw * IC, OC)

    # conv1 (K = 1*2*2 = 4, zero-padded to 8)
    pp["w1"] = jnp.pad(conv_w(p["conv1_w"]), ((0, 4), (0, 0)))
    pp["b1"], pp["g1"], pp["be1"] = row(p["conv1_b"]), row(p["bn1_g"]), row(p["bn1_b"])
    # conv2
    pp["w2"] = conv_w(p["conv2_w"])                                  # (256, 128)
    pp["b2"], pp["g2"], pp["be2"] = row(p["conv2_b"]), row(p["bn2_g"]), row(p["bn2_b"])
    # conv3
    pp["w3"] = conv_w(p["conv3_w"])                                  # (1152, 256)
    pp["b3"], pp["g3"], pp["be3"] = row(p["conv3_b"]), row(p["bn3_g"]), row(p["bn3_b"])
    # revConv1: (Cin, Cout, 3, 3) -> (Cin, (ky, kx, Cout)) = (256, 1152)
    pp["wd1"] = p["rev1_w"].transpose(0, 2, 3, 1).reshape(256, 9 * 128)
    pp["bd1"], pp["g11"], pp["be11"] = row(p["rev1_b"]), row(p["bn11_g"]), row(p["bn11_b"])
    # revConv2: (128, 64, 2, 2) -> (128, (ky, kx, Cout)) = (128, 256); bias/BN tiled per phase
    pp["wd2"] = p["rev2_w"].transpose(0, 2, 3, 1).reshape(128, 4 * 64)
    pp["bd2"] = row(jnp.tile(p["rev2_b"], 4))
    pp["g22"] = row(jnp.tile(p["bn22_g"], 4))
    pp["be22"] = row(jnp.tile(p["bn22_b"], 4))
    # revConv3: block-diagonal (256, 16); block ph -> (64, 4) weight, col = ky3*2+kx3
    w3m = p["rev3_w"][:, 0].reshape(64, 4)
    wd3 = jnp.zeros((256, 16), jnp.float32)
    for ph in range(4):
        wd3 = wd3.at[ph * 64:(ph + 1) * 64, ph * 4:(ph + 1) * 4].set(w3m)
    pp["wd3"] = wd3
    pp["bd3"] = jnp.full((1, 16), p["rev3_b"][0], jnp.float32)
    # Classifier head: pre-transposed weights.  Lin1's rows are permuted so the
    # head consumes the decoder tail's phase-natural flattening
    # (iy7, ix7, ky2, kx2, ky3, kx3) instead of the (oy, ox) pixel order.
    g = jnp.arange(784)
    kx3 = g % 2
    ky3 = (g // 2) % 2
    kx2 = (g // 4) % 2
    ky2 = (g // 8) % 2
    ix7 = (g // 16) % 7
    iy7 = g // 112
    pix = (4 * iy7 + 2 * ky2 + ky3) * 28 + (4 * ix7 + 2 * kx2 + kx3)
    pp["l1w"] = p["lin1_w"][:, pix].T                                # (784, 256)
    pp["l1b"] = row(p["lin1_b"])
    pp["l2w"] = p["lin2_w"].T                                        # (256, 64)
    pp["l2b"] = row(p["lin2_b"])
    pp["l3w"] = p["lin3_w"].T                                        # (64, 10)
    pp["l3b"] = row(p["lin3_b"])
    return pp


# --------------------------------- forward ----------------------------------

def forward(pp, x):
    """x: (N, 1, 28, 28) f32.  Returns (decoded (N,1,28,28), logits (N,10))."""
    N = x.shape[0]

    # ---- encoder ----
    # Conv1 (1->64, k=2, s=2): non-overlapping -> pure space-to-depth reshape.
    p1 = x.reshape(N, 14, 2, 14, 2).transpose(0, 1, 3, 2, 4).reshape(N * 196, 4)
    p1 = jnp.pad(p1, ((0, 0), (0, 4)))                               # K: 4 -> 8
    h1 = _conv_bn_act(p1, pp["w1"], pp["b1"], pp["g1"], pp["be1"], True)   # (N*196, 64)

    # Conv2 (64->128, k=2, s=2): space-to-depth on NHWC.
    p2 = (h1.reshape(N, 7, 2, 7, 2, 64)
            .transpose(0, 1, 3, 2, 4, 5).reshape(N * 49, 256))
    h2 = _conv_bn_act(p2, pp["w2"], pp["b2"], pp["g2"], pp["be2"], True)   # (N*49, 128)

    # Conv3 (128->256, k=3, s=2): overlapping -> im2col (9 strided NHWC slices),
    # fused with BN3 and the revConv1 phase matmul.
    x3 = h2.reshape(N, 7, 7, 128)
    taps = [x3[:, i:i + 5:2, j:j + 5:2, :] for i in range(3) for j in range(3)]
    p3 = jnp.stack(taps, axis=3).reshape(N * 9, 9 * 128)
    yd1 = _call(_conv3_bn_deconv1_kernel,
                jax.ShapeDtypeStruct((N * 9, 9 * 128), jnp.float32),
                p3, pp["w3"], pp["b3"], pp["g3"], pp["be3"], pp["wd1"])    # (N*9, 1152)

    # ---- decoder ----
    # col2im for revConv1 (k=3, s=2 taps overlap): 9 static strided slice-adds.
    yr = yd1.reshape(N, 3, 3, 3, 3, 128)
    hd1 = jnp.zeros((N, 7, 7, 128), jnp.float32)
    for ky in range(3):
        for kx in range(3):
            hd1 = hd1.at[:, ky:ky + 5:2, kx:kx + 5:2, :].add(yr[:, :, :, ky, kx, :])
    hd1 = hd1.reshape(N * 49, 128)

    # Fused decoder tail: bias_d1 + BN11 + ReLU + revConv2 + BN22 + ReLU + revConv3 + tanh.
    tail = _call(_decoder_tail_kernel,
                 jax.ShapeDtypeStruct((N * 49, 16), jnp.float32),
                 hd1, pp["bd1"], pp["g11"], pp["be11"],
                 pp["wd2"], pp["bd2"], pp["g22"], pp["be22"],
                 pp["wd3"], pp["bd3"])                                     # (N*49, 16)

    # decoded: interleave the stride-2 phases back into pixel order.
    decoded = (tail.reshape(N, 7, 7, 2, 2, 2, 2)
                   .transpose(0, 1, 3, 5, 2, 4, 6)
                   .reshape(N, 1, 28, 28))

    # classifier head: consume the phase-natural flattening (Lin1 rows pre-permuted).
    flat = tail.reshape(N, 784)
    logits = _call(_head_kernel,
                   jax.ShapeDtypeStruct((N, 10), jnp.float32),
                   flat, pp["l1w"], pp["l1b"], pp["l2w"], pp["l2b"],
                   pp["l3w"], pp["l3b"])
    return decoded, logits


# ----------------------------------- main ------------------------------------

if __name__ == "__main__":
    key = jax.random.PRNGKey(0)
    pkey, xkey = jax.random.split(key)
    params = init_params(pkey)
    packed = pack_params(params)          # one-time layout packing (outside jit)
    x = jax.random.normal(xkey, (2, 1, 28, 28), dtype=jnp.float32)

    decoded, logits = jax.jit(forward)(packed, x)
    decoded, logits = jax.block_until_ready((decoded, logits))

    assert decoded.shape == (2, 1, 28, 28), decoded.shape
    assert logits.shape == (2, 10), logits.shape
    assert jnp.isfinite(decoded).all() and jnp.isfinite(logits).all()
    print("KERNEL_OK")
</pallas_src>

<mosaic_0001>
module attributes {stable_mosaic.version = 11 : i64} {
  func.func @_conv_bn_act_kernel(%arg0: memref<98x256xf32, #tpu.memory_space<vmem>>, %arg1: memref<256x128xf32, #tpu.memory_space<vmem>>, %arg2: memref<1x128xf32, #tpu.memory_space<vmem>>, %arg3: memref<1x128xf32, #tpu.memory_space<vmem>>, %arg4: memref<1x128xf32, #tpu.memory_space<vmem>>, %arg5: memref<98x128xf32, #tpu.memory_space<vmem>>) attributes {dimension_semantics = [], scalar_prefetch = 0 : i64, scratch_operands = 0 : i64, tpu.core_type = #tpu.core_type<tc>} {
    %c0 = arith.constant 0 : index
    %c0_0 = arith.constant 0 : index
    %0 = vector.load %arg0[%c0, %c0_0] : memref<98x256xf32, #tpu.memory_space<vmem>>, vector<98x256xf32>
    %c0_1 = arith.constant 0 : index
    %c0_2 = arith.constant 0 : index
    %1 = vector.load %arg1[%c0_1, %c0_2] : memref<256x128xf32, #tpu.memory_space<vmem>>, vector<256x128xf32>
    %cst = arith.constant dense<0.000000e+00> : vector<98x128xf32>
    %2 = tpu.matmul %0, %1, %cst {dimension_numbers = #tpu.dot_dimension_numbers<[1], [0], [0], [1], [0, 0, 1, 1], [], []>} : vector<98x256xf32>, vector<256x128xf32>, vector<98x128xf32> -> vector<98x128xf32>
    %c0_3 = arith.constant 0 : index
    %c0_4 = arith.constant 0 : index
    %3 = vector.load %arg2[%c0_3, %c0_4] : memref<1x128xf32, #tpu.memory_space<vmem>>, vector<1x128xf32>
    %4 = vector.broadcast %3 : vector<1x128xf32> to vector<98x128xf32>
    %5 = arith.addf %2, %4 : vector<98x128xf32>
    %cst_5 = arith.constant dense<0.000000e+00> : vector<128xf32>
    %6 = vector.multi_reduction <add>, %5, %cst_5 [0] : vector<98x128xf32> to vector<128xf32>
    %7 = vector.shape_cast %6 : vector<128xf32> to vector<1x128xf32>
    %cst_6 = arith.constant 9.800000e+01 : f32
    %8 = vector.broadcast %cst_6 : f32 to vector<1x128xf32>
    %9 = arith.divf %7, %8 : vector<1x128xf32>
    %10 = vector.broadcast %9 : vector<1x128xf32> to vector<98x128xf32>
    %11 = arith.subf %5, %10 : vector<98x128xf32>
    %12 = arith.mulf %11, %11 : vector<98x128xf32>
    %cst_7 = arith.constant dense<0.000000e+00> : vector<128xf32>
    %13 = vector.multi_reduction <add>, %12, %cst_7 [0] : vector<98x128xf32> to vector<128xf32>
    %14 = vector.shape_cast %13 : vector<128xf32> to vector<1x128xf32>
    %cst_8 = arith.constant 9.800000e+01 : f32
    %15 = vector.broadcast %cst_8 : f32 to vector<1x128xf32>
    %16 = arith.divf %14, %15 : vector<1x128xf32>
    %cst_9 = arith.constant 9.99999974E-6 : f32
    %17 = vector.broadcast %cst_9 : f32 to vector<1x128xf32>
    %18 = arith.addf %16, %17 : vector<1x128xf32>
    %19 = math.rsqrt %18 : vector<1x128xf32>
    %20 = vector.broadcast %19 : vector<1x128xf32> to vector<98x128xf32>
    %21 = arith.mulf %11, %20 : vector<98x128xf32>
    %c0_10 = arith.constant 0 : index
    %c0_11 = arith.constant 0 : index
    %22 = vector.load %arg3[%c0_10, %c0_11] : memref<1x128xf32, #tpu.memory_space<vmem>>, vector<1x128xf32>
    %23 = vector.broadcast %22 : vector<1x128xf32> to vector<98x128xf32>
    %24 = arith.mulf %21, %23 : vector<98x128xf32>
    %c0_12 = arith.constant 0 : index
    %c0_13 = arith.constant 0 : index
    %25 = vector.load %arg4[%c0_12, %c0_13] : memref<1x128xf32, #tpu.memory_space<vmem>>, vector<1x128xf32>
    %26 = vector.broadcast %25 : vector<1x128xf32> to vector<98x128xf32>
    %27 = arith.addf %24, %26 : vector<98x128xf32>
    %cst_14 = arith.constant 0.000000e+00 : f32
    %28 = vector.broadcast %cst_14 : f32 to vector<98x128xf32>
    %29 = arith.maximumf %27, %28 : vector<98x128xf32>
    %c0_15 = arith.constant 0 : index
    %c0_16 = arith.constant 0 : index
    %30 = vector.load %arg5[%c0_15, %c0_16] : memref<98x128xf32, #tpu.memory_space<vmem>>, vector<98x128xf32>
    tpu.vector_store %arg5[%c0_15, %c0_16], %29 {strides = array<i32>} : memref<98x128xf32, #tpu.memory_space<vmem>>, vector<98x128xf32>,
    return
  }
}

module attributes {stable_mosaic.version = 11 : i64} {
  func.func @_conv_bn_act_kernel(%arg0: memref<392x8xf32, #tpu.memory_space<vmem>>, %arg1: memref<8x64xf32, #tpu.memory_space<vmem>>, %arg2: memref<1x64xf32, #tpu.memory_space<vmem>>, %arg3: memref<1x64xf32, #tpu.memory_space<vmem>>, %arg4: memref<1x64xf32, #tpu.memory_space<vmem>>, %arg5: memref<392x64xf32, #tpu.memory_space<vmem>>) attributes {dimension_semantics = [], scalar_prefetch = 0 : i64, scratch_operands = 0 : i64, tpu.core_type = #tpu.core_type<tc>} {
    %c0 = arith.constant 0 : index
    %c0_0 = arith.constant 0 : index
    %0 = vector.load %arg0[%c0, %c0_0] : memref<392x8xf32, #tpu.memory_space<vmem>>, vector<392x8xf32>
    %c0_1 = arith.constant 0 : index
    %c0_2 = arith.constant 0 : index
    %1 = vector.load %arg1[%c0_1, %c0_2] : memref<8x64xf32, #tpu.memory_space<vmem>>, vector<8x64xf32>
    %cst = arith.constant dense<0.000000e+00> : vector<392x64xf32>
    %2 = tpu.matmul %0, %1, %cst {dimension_numbers = #tpu.dot_dimension_numbers<[1], [0], [0], [1], [0, 0, 1, 1], [], []>} : vector<392x8xf32>, vector<8x64xf32>, vector<392x64xf32> -> vector<392x64xf32>
    %c0_3 = arith.constant 0 : index
    %c0_4 = arith.constant 0 : index
    %3 = vector.load %arg2[%c0_3, %c0_4] : memref<1x64xf32, #tpu.memory_space<vmem>>, vector<1x64xf32>
    %4 = vector.broadcast %3 : vector<1x64xf32> to vector<392x64xf32>
    %5 = arith.addf %2, %4 : vector<392x64xf32>
    %cst_5 = arith.constant dense<0.000000e+00> : vector<64xf32>
    %6 = vector.multi_reduction <add>, %5, %cst_5 [0] : vector<392x64xf32> to vector<64xf32>
    %7 = vector.shape_cast %6 : vector<64xf32> to vector<1x64xf32>
    %cst_6 = arith.constant 3.920000e+02 : f32
    %8 = vector.broadcast %cst_6 : f32 to vector<1x64xf32>
    %9 = arith.divf %7, %8 : vector<1x64xf32>
    %10 = vector.broadcast %9 : vector<1x64xf32> to vector<392x64xf32>
    %11 = arith.subf %5, %10 : vector<392x64xf32>
    %12 = arith.mulf %11, %11 : vector<392x64xf32>
    %cst_7 = arith.constant dense<0.000000e+00> : vector<64xf32>
    %13 = vector.multi_reduction <add>, %12, %cst_7 [0] : vector<392x64xf32> to vector<64xf32>
    %14 = vector.shape_cast %13 : vector<64xf32> to vector<1x64xf32>
    %cst_8 = arith.constant 3.920000e+02 : f32
    %15 = vector.broadcast %cst_8 : f32 to vector<1x64xf32>
    %16 = arith.divf %14, %15 : vector<1x64xf32>
    %cst_9 = arith.constant 9.99999974E-6 : f32
    %17 = vector.broadcast %cst_9 : f32 to vector<1x64xf32>
    %18 = arith.addf %16, %17 : vector<1x64xf32>
    %19 = math.rsqrt %18 : vector<1x64xf32>
    %20 = vector.broadcast %19 : vector<1x64xf32> to vector<392x64xf32>
    %21 = arith.mulf %11, %20 : vector<392x64xf32>
    %c0_10 = arith.constant 0 : index
    %c0_11 = arith.constant 0 : index
    %22 = vector.load %arg3[%c0_10, %c0_11] : memref<1x64xf32, #tpu.memory_space<vmem>>, vector<1x64xf32>
    %23 = vector.broadcast %22 : vector<1x64xf32> to vector<392x64xf32>
    %24 = arith.mulf %21, %23 : vector<392x64xf32>
    %c0_12 = arith.constant 0 : index
    %c0_13 = arith.constant 0 : index
    %25 = vector.load %arg4[%c0_12, %c0_13] : memref<1x64xf32, #tpu.memory_space<vmem>>, vector<1x64xf32>
    %26 = vector.broadcast %25 : vector<1x64xf32> to vector<392x64xf32>
    %27 = arith.addf %24, %26 : vector<392x64xf32>
    %cst_14 = arith.constant 0.000000e+00 : f32
    %28 = vector.broadcast %cst_14 : f32 to vector<392x64xf32>
    %29 = arith.maximumf %27, %28 : vector<392x64xf32>
    %c0_15 = arith.constant 0 : index
    %c0_16 = arith.constant 0 : index
    %30 = vector.load %arg5[%c0_15, %c0_16] : memref<392x64xf32, #tpu.memory_space<vmem>>, vector<392x64xf32>
    tpu.vector_store %arg5[%c0_15, %c0_16], %29 {strides = array<i32>} : memref<392x64xf32, #tpu.memory_space<vmem>>, vector<392x64xf32>,
    return
  }
}

module attributes {stable_mosaic.version = 11 : i64} {
  func.func @_conv3_bn_deconv1_kernel(%arg0: memref<18x1152xf32, #tpu.memory_space<vmem>>, %arg1: memref<1152x256xf32, #tpu.memory_space<vmem>>, %arg2: memref<1x256xf32, #tpu.memory_space<vmem>>, %arg3: memref<1x256xf32, #tpu.memory_space<vmem>>, %arg4: memref<1x256xf32, #tpu.memory_space<vmem>>, %arg5: memref<256x1152xf32, #tpu.memory_space<vmem>>, %arg6: memref<18x1152xf32, #tpu.memory_space<vmem>>) attributes {dimension_semantics = [], scalar_prefetch = 0 : i64, scratch_operands = 0 : i64, tpu.core_type = #tpu.core_type<tc>} {
    %c0 = arith.constant 0 : index
    %c0_0 = arith.constant 0 : index
    %0 = vector.load %arg0[%c0, %c0_0] : memref<18x1152xf32, #tpu.memory_space<vmem>>, vector<18x1152xf32>
    %c0_1 = arith.constant 0 : index
    %c0_2 = arith.constant 0 : index
    %1 = vector.load %arg1[%c0_1, %c0_2] : memref<1152x256xf32, #tpu.memory_space<vmem>>, vector<1152x256xf32>
    %cst = arith.constant dense<0.000000e+00> : vector<18x256xf32>
    %2 = tpu.matmul %0, %1, %cst {dimension_numbers = #tpu.dot_dimension_numbers<[1], [0], [0], [1], [0, 0, 1, 1], [], []>} : vector<18x1152xf32>, vector<1152x256xf32>, vector<18x256xf32> -> vector<18x256xf32>
    %c0_3 = arith.constant 0 : index
    %c0_4 = arith.constant 0 : index
    %3 = vector.load %arg2[%c0_3, %c0_4] : memref<1x256xf32, #tpu.memory_space<vmem>>, vector<1x256xf32>
    %4 = vector.broadcast %3 : vector<1x256xf32> to vector<18x256xf32>
    %5 = arith.addf %2, %4 : vector<18x256xf32>
    %cst_5 = arith.constant dense<0.000000e+00> : vector<256xf32>
    %6 = vector.multi_reduction <add>, %5, %cst_5 [0] : vector<18x256xf32> to vector<256xf32>
    %7 = vector.shape_cast %6 : vector<256xf32> to vector<1x256xf32>
    %cst_6 = arith.constant 1.800000e+01 : f32
    %8 = vector.broadcast %cst_6 : f32 to vector<1x256xf32>
    %9 = arith.divf %7, %8 : vector<1x256xf32>
    %10 = vector.broadcast %9 : vector<1x256xf32> to vector<18x256xf32>
    %11 = arith.subf %5, %10 : vector<18x256xf32>
    %12 = arith.mulf %11, %11 : vector<18x256xf32>
    %cst_7 = arith.constant dense<0.000000e+00> : vector<256xf32>
    %13 = vector.multi_reduction <add>, %12, %cst_7 [0] : vector<18x256xf32> to vector<256xf32>
    %14 = vector.shape_cast %13 : vector<256xf32> to vector<1x256xf32>
    %cst_8 = arith.constant 1.800000e+01 : f32
    %15 = vector.broadcast %cst_8 : f32 to vector<1x256xf32>
    %16 = arith.divf %14, %15 : vector<1x256xf32>
    %cst_9 = arith.constant 9.99999974E-6 : f32
    %17 = vector.broadcast %cst_9 : f32 to vector<1x256xf32>
    %18 = arith.addf %16, %17 : vector<1x256xf32>
    %19 = math.rsqrt %18 : vector<1x256xf32>
    %20 = vector.broadcast %19 : vector<1x256xf32> to vector<18x256xf32>
    %21 = arith.mulf %11, %20 : vector<18x256xf32>
    %c0_10 = arith.constant 0 : index
    %c0_11 = arith.constant 0 : index
    %22 = vector.load %arg3[%c0_10, %c0_11] : memref<1x256xf32, #tpu.memory_space<vmem>>, vector<1x256xf32>
    %23 = vector.broadcast %22 : vector<1x256xf32> to vector<18x256xf32>
    %24 = arith.mulf %21, %23 : vector<18x256xf32>
    %c0_12 = arith.constant 0 : index
    %c0_13 = arith.constant 0 : index
    %25 = vector.load %arg4[%c0_12, %c0_13] : memref<1x256xf32, #tpu.memory_space<vmem>>, vector<1x256xf32>
    %26 = vector.broadcast %25 : vector<1x256xf32> to vector<18x256xf32>
    %27 = arith.addf %24, %26 : vector<18x256xf32>
    %c0_14 = arith.constant 0 : index
    %c0_15 = arith.constant 0 : index
    %28 = vector.load %arg5[%c0_14, %c0_15] : memref<256x1152xf32, #tpu.memory_space<vmem>>, vector<256x1152xf32>
    %cst_16 = arith.constant dense<0.000000e+00> : vector<18x1152xf32>
    %29 = tpu.matmul %27, %28, %cst_16 {dimension_numbers = #tpu.dot_dimension_numbers<[1], [0], [0], [1], [0, 0, 1, 1], [], []>} : vector<18x256xf32>, vector<256x1152xf32>, vector<18x1152xf32> -> vector<18x1152xf32>
    %c0_17 = arith.constant 0 : index
    %c0_18 = arith.constant 0 : index
    %30 = vector.load %arg6[%c0_17, %c0_18] : memref<18x1152xf32, #tpu.memory_space<vmem>>, vector<18x1152xf32>
    tpu.vector_store %arg6[%c0_17, %c0_18], %29 {strides = array<i32>} : memref<18x1152xf32, #tpu.memory_space<vmem>>, vector<18x1152xf32>,
    return
  }
}

module attributes {stable_mosaic.version = 11 : i64} {
  func.func @_decoder_tail_kernel(%arg0: memref<98x128xf32, #tpu.memory_space<vmem>>, %arg1: memref<1x128xf32, #tpu.memory_space<vmem>>, %arg2: memref<1x128xf32, #tpu.memory_space<vmem>>, %arg3: memref<1x128xf32, #tpu.memory_space<vmem>>, %arg4: memref<128x256xf32, #tpu.memory_space<vmem>>, %arg5: memref<1x256xf32, #tpu.memory_space<vmem>>, %arg6: memref<1x256xf32, #tpu.memory_space<vmem>>, %arg7: memref<1x256xf32, #tpu.memory_space<vmem>>, %arg8: memref<256x16xf32, #tpu.memory_space<vmem>>, %arg9: memref<1x16xf32, #tpu.memory_space<vmem>>, %arg10: memref<98x16xf32, #tpu.memory_space<vmem>>) attributes {dimension_semantics = [], scalar_prefetch = 0 : i64, scratch_operands = 0 : i64, tpu.core_type = #tpu.core_type<tc>} {
    %c0 = arith.constant 0 : index
    %c0_0 = arith.constant 0 : index
    %0 = vector.load %arg0[%c0, %c0_0] : memref<98x128xf32, #tpu.memory_space<vmem>>, vector<98x128xf32>
    %c0_1 = arith.constant 0 : index
    %c0_2 = arith.constant 0 : index
    %1 = vector.load %arg1[%c0_1, %c0_2] : memref<1x128xf32, #tpu.memory_space<vmem>>, vector<1x128xf32>
    %2 = vector.broadcast %1 : vector<1x128xf32> to vector<98x128xf32>
    %3 = arith.addf %0, %2 : vector<98x128xf32>
    %cst = arith.constant dense<0.000000e+00> : vector<128xf32>
    %4 = vector.multi_reduction <add>, %3, %cst [0] : vector<98x128xf32> to vector<128xf32>
    %5 = vector.shape_cast %4 : vector<128xf32> to vector<1x128xf32>
    %cst_3 = arith.constant 9.800000e+01 : f32
    %6 = vector.broadcast %cst_3 : f32 to vector<1x128xf32>
    %7 = arith.divf %5, %6 : vector<1x128xf32>
    %8 = vector.broadcast %7 : vector<1x128xf32> to vector<98x128xf32>
    %9 = arith.subf %3, %8 : vector<98x128xf32>
    %10 = arith.mulf %9, %9 : vector<98x128xf32>
    %cst_4 = arith.constant dense<0.000000e+00> : vector<128xf32>
    %11 = vector.multi_reduction <add>, %10, %cst_4 [0] : vector<98x128xf32> to vector<128xf32>
    %12 = vector.shape_cast %11 : vector<128xf32> to vector<1x128xf32>
    %cst_5 = arith.constant 9.800000e+01 : f32
    %13 = vector.broadcast %cst_5 : f32 to vector<1x128xf32>
    %14 = arith.divf %12, %13 : vector<1x128xf32>
    %cst_6 = arith.constant 9.99999974E-6 : f32
    %15 = vector.broadcast %cst_6 : f32 to vector<1x128xf32>
    %16 = arith.addf %14, %15 : vector<1x128xf32>
    %17 = math.rsqrt %16 : vector<1x128xf32>
    %18 = vector.broadcast %17 : vector<1x128xf32> to vector<98x128xf32>
    %19 = arith.mulf %9, %18 : vector<98x128xf32>
    %c0_7 = arith.constant 0 : index
    %c0_8 = arith.constant 0 : index
    %20 = vector.load %arg2[%c0_7, %c0_8] : memref<1x128xf32, #tpu.memory_space<vmem>>, vector<1x128xf32>
    %21 = vector.broadcast %20 : vector<1x128xf32> to vector<98x128xf32>
    %22 = arith.mulf %19, %21 : vector<98x128xf32>
    %c0_9 = arith.constant 0 : index
    %c0_10 = arith.constant 0 : index
    %23 = vector.load %arg3[%c0_9, %c0_10] : memref<1x128xf32, #tpu.memory_space<vmem>>, vector<1x128xf32>
    %24 = vector.broadcast %23 : vector<1x128xf32> to vector<98x128xf32>
    %25 = arith.addf %22, %24 : vector<98x128xf32>
    %cst_11 = arith.constant 0.000000e+00 : f32
    %26 = vector.broadcast %cst_11 : f32 to vector<98x128xf32>
    %27 = arith.maximumf %25, %26 : vector<98x128xf32>
    %c0_12 = arith.constant 0 : index
    %c0_13 = arith.constant 0 : index
    %28 = vector.load %arg4[%c0_12, %c0_13] : memref<128x256xf32, #tpu.memory_space<vmem>>, vector<128x256xf32>
    %cst_14 = arith.constant dense<0.000000e+00> : vector<98x256xf32>
    %29 = tpu.matmul %27, %28, %cst_14 {dimension_numbers = #tpu.dot_dimension_numbers<[1], [0], [0], [1], [0, 0, 1, 1], [], []>} : vector<98x128xf32>, vector<128x256xf32>, vector<98x256xf32> -> vector<98x256xf32>
    %c0_15 = arith.constant 0 : index
    %c0_16 = arith.constant 0 : index
    %30 = vector.load %arg5[%c0_15, %c0_16] : memref<1x256xf32, #tpu.memory_space<vmem>>, vector<1x256xf32>
    %31 = vector.broadcast %30 : vector<1x256xf32> to vector<98x256xf32>
    %32 = arith.addf %29, %31 : vector<98x256xf32>
    %cst_17 = arith.constant dense<0.000000e+00> : vector<256xf32>
    %33 = vector.multi_reduction <add>, %32, %cst_17 [0] : vector<98x256xf32> to vector<256xf32>
    %34 = vector.shape_cast %33 : vector<256xf32> to vector<1x256xf32>
    %35 = vector.extract_strided_slice %34 {offsets = [0, 0], sizes = [1, 64], strides = [1, 1]} : vector<1x256xf32> to vector<1x64xf32>
    %36 = vector.extract_strided_slice %34 {offsets = [0, 64], sizes = [1, 64], strides = [1, 1]} : vector<1x256xf32> to vector<1x64xf32>
    %37 = arith.addf %35, %36 : vector<1x64xf32>
    %38 = vector.extract_strided_slice %34 {offsets = [0, 128], sizes = [1, 64], strides = [1, 1]} : vector<1x256xf32> to vector<1x64xf32>
    %39 = arith.addf %37, %38 : vector<1x64xf32>
    %40 = vector.extract_strided_slice %34 {offsets = [0, 192], sizes = [1, 64], strides = [1, 1]} : vector<1x256xf32> to vector<1x64xf32>
    %41 = arith.addf %39, %40 : vector<1x64xf32>
    %cst_18 = arith.constant 3.920000e+02 : f32
    %42 = vector.broadcast %cst_18 : f32 to vector<1x64xf32>
    %43 = arith.divf %41, %42 : vector<1x64xf32>
    %44 = tpu.concatenate %43, %43, %43, %43 in 1 : vector<1x64xf32>, vector<1x64xf32>, vector<1x64xf32>, vector<1x64xf32> -> vector<1x256xf32>
    %45 = vector.broadcast %44 : vector<1x256xf32> to vector<98x256xf32>
    %46 = arith.subf %32, %45 : vector<98x256xf32>
    %47 = arith.mulf %46, %46 : vector<98x256xf32>
    %cst_19 = arith.constant dense<0.000000e+00> : vector<256xf32>
    %48 = vector.multi_reduction <add>, %47, %cst_19 [0] : vector<98x256xf32> to vector<256xf32>
    %49 = vector.shape_cast %48 : vector<256xf32> to vector<1x256xf32>
    %50 = vector.extract_strided_slice %49 {offsets = [0, 0], sizes = [1, 64], strides = [1, 1]} : vector<1x256xf32> to vector<1x64xf32>
    %51 = vector.extract_strided_slice %49 {offsets = [0, 64], sizes = [1, 64], strides = [1, 1]} : vector<1x256xf32> to vector<1x64xf32>
    %52 = arith.addf %50, %51 : vector<1x64xf32>
    %53 = vector.extract_strided_slice %49 {offsets = [0, 128], sizes = [1, 64], strides = [1, 1]} : vector<1x256xf32> to vector<1x64xf32>
    %54 = arith.addf %52, %53 : vector<1x64xf32>
    %55 = vector.extract_strided_slice %49 {offsets = [0, 192], sizes = [1, 64], strides = [1, 1]} : vector<1x256xf32> to vector<1x64xf32>
    %56 = arith.addf %54, %55 : vector<1x64xf32>
    %cst_20 = arith.constant 3.920000e+02 : f32
    %57 = vector.broadcast %cst_20 : f32 to vector<1x64xf32>
    %58 = arith.divf %56, %57 : vector<1x64xf32>
    %59 = tpu.concatenate %58, %58, %58, %58 in 1 : vector<1x64xf32>, vector<1x64xf32>, vector<1x64xf32>, vector<1x64xf32> -> vector<1x256xf32>
    %cst_21 = arith.constant 9.99999974E-6 : f32
    %60 = vector.broadcast %cst_21 : f32 to vector<1x256xf32>
    %61 = arith.addf %59, %60 : vector<1x256xf32>
    %62 = math.rsqrt %61 : vector<1x256xf32>
    %63 = vector.broadcast %62 : vector<1x256xf32> to vector<98x256xf32>
    %64 = arith.mulf %46, %63 : vector<98x256xf32>
    %c0_22 = arith.constant 0 : index
    %c0_23 = arith.constant 0 : index
    %65 = vector.load %arg6[%c0_22, %c0_23] : memref<1x256xf32, #tpu.memory_space<vmem>>, vector<1x256xf32>
    %66 = vector.broadcast %65 : vector<1x256xf32> to vector<98x256xf32>
    %67 = arith.mulf %64, %66 : vector<98x256xf32>
    %c0_24 = arith.constant 0 : index
    %c0_25 = arith.constant 0 : index
    %68 = vector.load %arg7[%c0_24, %c0_25] : memref<1x256xf32, #tpu.memory_space<vmem>>, vector<1x256xf32>
    %69 = vector.broadcast %68 : vector<1x256xf32> to vector<98x256xf32>
    %70 = arith.addf %67, %69 : vector<98x256xf32>
    %cst_26 = arith.constant 0.000000e+00 : f32
    %71 = vector.broadcast %cst_26 : f32 to vector<98x256xf32>
    %72 = arith.maximumf %70, %71 : vector<98x256xf32>
    %c0_27 = arith.constant 0 : index
    %c0_28 = arith.constant 0 : index
    %73 = vector.load %arg8[%c0_27, %c0_28] : memref<256x16xf32, #tpu.memory_space<vmem>>, vector<256x16xf32>
    %cst_29 = arith.constant dense<0.000000e+00> : vector<98x16xf32>
    %74 = tpu.matmul %72, %73, %cst_29 {dimension_numbers = #tpu.dot_dimension_numbers<[1], [0], [0], [1], [0, 0, 1, 1], [], []>} : vector<98x256xf32>, vector<256x16xf32>, vector<98x16xf32> -> vector<98x16xf32>
    %c0_30 = arith.constant 0 : index
    %c0_31 = arith.constant 0 : index
    %75 = vector.load %arg9[%c0_30, %c0_31] : memref<1x16xf32, #tpu.memory_space<vmem>>, vector<1x16xf32>
    %76 = vector.broadcast %75 : vector<1x16xf32> to vector<98x16xf32>
    %77 = arith.addf %74, %76 : vector<98x16xf32>
    %78 = math.tanh %77 : vector<98x16xf32>
    %c0_32 = arith.constant 0 : index
    %c0_33 = arith.constant 0 : index
    %79 = vector.load %arg10[%c0_32, %c0_33] : memref<98x16xf32, #tpu.memory_space<vmem>>, vector<98x16xf32>
    tpu.vector_store %arg10[%c0_32, %c0_33], %78 {strides = array<i32>} : memref<98x16xf32, #tpu.memory_space<vmem>>, vector<98x16xf32>,
    return
  }
}

module attributes {stable_mosaic.version = 11 : i64} {
  func.func @_head_kernel(%arg0: memref<2x784xf32, #tpu.memory_space<vmem>>, %arg1: memref<784x256xf32, #tpu.memory_space<vmem>>, %arg2: memref<1x256xf32, #tpu.memory_space<vmem>>, %arg3: memref<256x64xf32, #tpu.memory_space<vmem>>, %arg4: memref<1x64xf32, #tpu.memory_space<vmem>>, %arg5: memref<64x10xf32, #tpu.memory_space<vmem>>, %arg6: memref<1x10xf32, #tpu.memory_space<vmem>>, %arg7: memref<2x10xf32, #tpu.memory_space<vmem>>) attributes {dimension_semantics = [], scalar_prefetch = 0 : i64, scratch_operands = 0 : i64, tpu.core_type = #tpu.core_type<tc>} {
    %c0 = arith.constant 0 : index
    %c0_0 = arith.constant 0 : index
    %0 = vector.load %arg0[%c0, %c0_0] : memref<2x784xf32, #tpu.memory_space<vmem>>, vector<2x784xf32>
    %c0_1 = arith.constant 0 : index
    %c0_2 = arith.constant 0 : index
    %1 = vector.load %arg1[%c0_1, %c0_2] : memref<784x256xf32, #tpu.memory_space<vmem>>, vector<784x256xf32>
    %cst = arith.constant dense<0.000000e+00> : vector<2x256xf32>
    %2 = tpu.matmul %0, %1, %cst {dimension_numbers = #tpu.dot_dimension_numbers<[1], [0], [0], [1], [0, 0, 1, 1], [], []>} : vector<2x784xf32>, vector<784x256xf32>, vector<2x256xf32> -> vector<2x256xf32>
    %c0_3 = arith.constant 0 : index
    %c0_4 = arith.constant 0 : index
    %3 = vector.load %arg2[%c0_3, %c0_4] : memref<1x256xf32, #tpu.memory_space<vmem>>, vector<1x256xf32>
    %4 = vector.broadcast %3 : vector<1x256xf32> to vector<2x256xf32>
    %5 = arith.addf %2, %4 : vector<2x256xf32>
    %c0_5 = arith.constant 0 : index
    %c0_6 = arith.constant 0 : index
    %6 = vector.load %arg3[%c0_5, %c0_6] : memref<256x64xf32, #tpu.memory_space<vmem>>, vector<256x64xf32>
    %cst_7 = arith.constant dense<0.000000e+00> : vector<2x64xf32>
    %7 = tpu.matmul %5, %6, %cst_7 {dimension_numbers = #tpu.dot_dimension_numbers<[1], [0], [0], [1], [0, 0, 1, 1], [], []>} : vector<2x256xf32>, vector<256x64xf32>, vector<2x64xf32> -> vector<2x64xf32>
    %c0_8 = arith.constant 0 : index
    %c0_9 = arith.constant 0 : index
    %8 = vector.load %arg4[%c0_8, %c0_9] : memref<1x64xf32, #tpu.memory_space<vmem>>, vector<1x64xf32>
    %9 = vector.broadcast %8 : vector<1x64xf32> to vector<2x64xf32>
    %10 = arith.addf %7, %9 : vector<2x64xf32>
    %c0_10 = arith.constant 0 : index
    %c0_11 = arith.constant 0 : index
    %11 = vector.load %arg5[%c0_10, %c0_11] : memref<64x10xf32, #tpu.memory_space<vmem>>, vector<64x10xf32>
    %cst_12 = arith.constant dense<0.000000e+00> : vector<2x10xf32>
    %12 = tpu.matmul %10, %11, %cst_12 {dimension_numbers = #tpu.dot_dimension_numbers<[1], [0], [0], [1], [0, 0, 1, 1], [], []>} : vector<2x64xf32>, vector<64x10xf32>, vector<2x10xf32> -> vector<2x10xf32>
    %c0_13 = arith.constant 0 : index
    %c0_14 = arith.constant 0 : index
    %13 = vector.load %arg6[%c0_13, %c0_14] : memref<1x10xf32, #tpu.memory_space<vmem>>, vector<1x10xf32>
    %14 = vector.broadcast %13 : vector<1x10xf32> to vector<2x10xf32>
    %15 = arith.addf %12, %14 : vector<2x10xf32>
    %c0_15 = arith.constant 0 : index
    %c0_16 = arith.constant 0 : index
    %16 = vector.load %arg7[%c0_15, %c0_16] : memref<2x10xf32, #tpu.memory_space<vmem>>, vector<2x10xf32>
    tpu.vector_store %arg7[%c0_15, %c0_16], %15 {strides = array<i32>} : memref<2x10xf32, #tpu.memory_space<vmem>>, vector<2x10xf32>,
    return
  }
}

</mosaic_0001>

<llo_original>
// kernel: forward.6
$region0: #{forward.6}
  #allocation0 [shape = 'u32[]', space=smem, size = 0x4, offset = 0x4, fixed_abs, tag = 'smem constant byte address 0x4 - core index']
  #allocation1 [shape = 'u32[144,128]{1,0:T(1,128)}', space=vmem, size = 0x12000, scoped, tag = 'internal scratch']
  %s0 = inlined_call_operand.vmem [shape: f32[98,256], index: 0, kind: input, shape index: {}]
  %s1 = inlined_call_operand.vmem [shape: f32[256,128], index: 1, kind: input, shape index: {}]
  %s2 = inlined_call_operand.vmem [shape: f32[1,128], index: 2, kind: input, shape index: {}]
  %s3 = inlined_call_operand.vmem [shape: f32[1,128], index: 3, kind: input, shape index: {}]
  %s4 = inlined_call_operand.vmem [shape: f32[1,128], index: 4, kind: input, shape index: {}]
  %s5 = inlined_call_operand.vmem [shape: f32[98,128], index: 5, kind: output, shape index: {}]
  %s6 = sld [smem:[#allocation0]]
  $region30: #{forward.6} parent=0
    _
  %s8 = ssub.s32 1, %s6
  %s9 = scalar_select 0, %s8, %s6
  // Predicated region
  $region2: #{forward.6} parent=0 // pred_check
    _
  $region3: #{forward.6} parent=0 // pred_check_branch
    %11 = sbr.rel (0) target = $region5
  $region4: #{forward.6} parent=0 // pred_region
    _
  $region5: #{forward.6} parent=0 // pred_fallthru
    _
  // Predicated region
  $region6: #{forward.6} parent=0 // pred_check
    _
  $region7: #{forward.6} parent=0 // pred_check_branch
    %13 = sbr.rel (0) target = $region9
  $region8: #{forward.6} parent=0 // pred_region
    _
  $region9: #{forward.6} parent=0 // pred_fallthru
    _
  // Predicated region
  $region10: #{forward.6} parent=0 // pred_check
    _
  $region11: #{forward.6} parent=0 // pred_check_branch
    %15 = sbr.rel (0) target = $region13
  $region12: #{forward.6} parent=0 // pred_region
    _
  $region13: #{forward.6} parent=0 // pred_fallthru
    _
  // Predicated region
  $region14: #{forward.6} parent=0 // pred_check
    _
  $region15: #{forward.6} parent=0 // pred_check_branch
    %17 = sbr.rel (0) target = $region17
  $region16: #{forward.6} parent=0 // pred_region
    _
  $region17: #{forward.6} parent=0 // pred_fallthru
    _
  // Predicated region
  $region18: #{forward.6} parent=0 // pred_check
    _
  $region19: #{forward.6} parent=0 // pred_check_branch
    %19 = sbr.rel (0) target = $region21
  $region20: #{forward.6} parent=0 // pred_region
    _
  $region21: #{forward.6} parent=0 // pred_fallthru
    _
  %v20 = vld [vmem:[%s0] sm:$0xff]
  %v21 = vld [vmem:[%s0 + $0x8] sm:$0xff]
  %v22 = vld [vmem:[%s0 + $0x10] sm:$0xff]
  %v23 = vld [vmem:[%s0 + $0x18] sm:$0xff]
  %v24 = vld [vmem:[%s0 + $0x20] sm:$0xff]
  %v25 = vld [vmem:[%s0 + $0x28] sm:$0xff]
  %v26 = vld [vmem:[%s0 + $0x30] sm:$0xff]
  %v27 = vld [vmem:[%s0 + $0x38] sm:$0xff]
  %v28 = vld [vmem:[%s0 + $0x40] sm:$0xff]
  %v29 = vld [vmem:[%s0 + $0x48] sm:$0xff]
  %v30 = vld [vmem:[%s0 + $0x50] sm:$0xff]
  %v31 = vld [vmem:[%s0 + $0x58] sm:$0xff]
  %v32 = vld [vmem:[%s0 + $0x60] sm:$0xff]
  %v33 = vld [vmem:[%s0 + $0x68] sm:$0xff]
  %v34 = vld [vmem:[%s0 + $0x70] sm:$0xff]
  %v35 = vld [vmem:[%s0 + $0x78] sm:$0xff]
  %v36 = vld [vmem:[%s0 + $0x80] sm:$0xff]
  %v37 = vld [vmem:[%s0 + $0x88] sm:$0xff]
  %v38 = vld [vmem:[%s0 + $0x90] sm:$0xff]
  %v39 = vld [vmem:[%s0 + $0x98] sm:$0xff]
  %v40 = vld [vmem:[%s0 + $0xa0] sm:$0xff]
  %v41 = vld [vmem:[%s0 + $0xa8] sm:$0xff]
  %v42 = vld [vmem:[%s0 + $0xb0] sm:$0xff]
  %v43 = vld [vmem:[%s0 + $0xb8] sm:$0xff]
  %v44 = vld [vmem:[%s0 + $0xc0] sm:$0x3]
  %v45 = vld [vmem:[%s0 + $0xc8] sm:$0x3]
  %v46 = vld [vmem:[%s1] sm:$0xff]
  %v47 = vld [vmem:[%s1 + $0x8] sm:$0xff]
  %v48 = vld [vmem:[%s1 + $0x10] sm:$0xff]
  %v49 = vld [vmem:[%s1 + $0x18] sm:$0xff]
  %v50 = vld [vmem:[%s1 + $0x20] sm:$0xff]
  %v51 = vld [vmem:[%s1 + $0x28] sm:$0xff]
  %v52 = vld [vmem:[%s1 + $0x30] sm:$0xff]
  %v53 = vld [vmem:[%s1 + $0x38] sm:$0xff]
  %v54 = vld [vmem:[%s1 + $0x40] sm:$0xff]
  %v55 = vld [vmem:[%s1 + $0x48] sm:$0xff]
  %v56 = vld [vmem:[%s1 + $0x50] sm:$0xff]
  %v57 = vld [vmem:[%s1 + $0x58] sm:$0xff]
  %v58 = vld [vmem:[%s1 + $0x60] sm:$0xff]
  %v59 = vld [vmem:[%s1 + $0x68] sm:$0xff]
  %v60 = vld [vmem:[%s1 + $0x70] sm:$0xff]
  %v61 = vld [vmem:[%s1 + $0x78] sm:$0xff]
  %v62 = vld [vmem:[%s1 + $0x80] sm:$0xff]
  %v63 = vld [vmem:[%s1 + $0x88] sm:$0xff]
  %v64 = vld [vmem:[%s1 + $0x90] sm:$0xff]
  %v65 = vld [vmem:[%s1 + $0x98] sm:$0xff]
  %v66 = vld [vmem:[%s1 + $0xa0] sm:$0xff]
  %v67 = vld [vmem:[%s1 + $0xa8] sm:$0xff]
  %v68 = vld [vmem:[%s1 + $0xb0] sm:$0xff]
  %v69 = vld [vmem:[%s1 + $0xb8] sm:$0xff]
  %v70 = vld [vmem:[%s1 + $0xc0] sm:$0xff]
  %v71 = vld [vmem:[%s1 + $0xc8] sm:$0xff]
  %v72 = vld [vmem:[%s1 + $0xd0] sm:$0xff]
  %v73 = vld [vmem:[%s1 + $0xd8] sm:$0xff]
  %v74 = vld [vmem:[%s1 + $0xe0] sm:$0xff]
  %v75 = vld [vmem:[%s1 + $0xe8] sm:$0xff]
  %v76 = vld [vmem:[%s1 + $0xf0] sm:$0xff]
  %v77 = vld [vmem:[%s1 + $0xf8] sm:$0xff]
  %v78 = vld [vmem:[%s2] sm:$0x1]
  %v80 = vlaneseq
  %v81 = vshrl.u32 %v80, 7
  %v82 = vsub.s32 0, %v81
  %v83 = vrot.slane %v78, %v82
  %85 = vmatprep.subr.mxu0 0.0
  %86 = vmatpush1.msra.mxu0 %v46
  %87 = vmatprep.subr.mxu0 0.0
  %88 = vmatpush1.msra.mxu0 %v47
  %89 = vmatprep.subr.mxu0 0.0
  %90 = vmatpush1.msra.mxu0 %v48
  %91 = vmatprep.subr.mxu0 0.0
  %92 = vmatpush1.msra.mxu0 %v49
  %93 = vmatprep.subr.mxu0 0.0
  %94 = vmatpush1.msra.mxu0 %v50
  %95 = vmatprep.subr.mxu0 0.0
  %96 = vmatpush1.msra.mxu0 %v51
  %97 = vmatprep.subr.mxu0 0.0
  %98 = vmatpush1.msra.mxu0 %v52
  %99 = vmatprep.subr.mxu0 0.0
  %100 = vmatpush1.msra.mxu0 %v53
  %101 = vmatprep.subr.mxu0 0.0
  %102 = vmatpush1.msra.mxu0 %v54
  %103 = vmatprep.subr.mxu0 0.0
  %104 = vmatpush1.msra.mxu0 %v55
  %105 = vmatprep.subr.mxu0 0.0
  %106 = vmatpush1.msra.mxu0 %v56
  %107 = vmatprep.subr.mxu0 0.0
  %108 = vmatpush1.msra.mxu0 %v57
  %109 = vmatprep.subr.mxu0 0.0
  %110 = vmatpush1.msra.mxu0 %v58
  %111 = vmatprep.subr.mxu0 0.0
  %112 = vmatpush1.msra.mxu0 %v59
  %113 = vmatprep.subr.mxu0 0.0
  %114 = vmatpush1.msra.mxu0 %v60
  %115 = vmatprep.subr.mxu0 0.0
  %116 = vmatpush1.msra.mxu0 %v61
  %117 = vmatprep.subr.mxu0 0.0
  %118 = vmatpush1.msra.mxu0 %v62
  %119 = vmatprep.subr.mxu0 0.0
  %120 = vmatpush1.msra.mxu0 %v63
  %121 = vmatprep.subr.mxu0 0.0
  %122 = vmatpush1.msra.mxu0 %v64
  %123 = vmatprep.subr.mxu0 0.0
  %124 = vmatpush1.msra.mxu0 %v65
  %125 = vmatprep.subr.mxu0 0.0
  %126 = vmatpush1.msra.mxu0 %v66
  %127 = vmatprep.subr.mxu0 0.0
  %128 = vmatpush1.msra.mxu0 %v67
  %129 = vmatprep.subr.mxu0 0.0
  %130 = vmatpush1.msra.mxu0 %v68
  %131 = vmatprep.subr.mxu0 0.0
  %132 = vmatpush1.msra.mxu0 %v69
  %133 = vmatprep.subr.mxu0 0.0
  %134 = vmatpush1.msra.mxu0 %v70
  %135 = vmatprep.subr.mxu0 0.0
  %136 = vmatpush1.msra.mxu0 %v71
  %137 = vmatprep.subr.mxu0 0.0
  %138 = vmatpush1.msra.mxu0 %v72
  %139 = vmatprep.subr.mxu0 0.0
  %140 = vmatpush1.msra.mxu0 %v73
  %141 = vmatprep.subr.mxu0 0.0
  %142 = vmatpush1.msra.mxu0 %v74
  %143 = vmatprep.subr.mxu0 0.0
  %144 = vmatpush1.msra.mxu0 %v75
  %145 = vmatprep.subr.mxu0 0.0
  %146 = vmatpush1.msra.mxu0 %v76
  %147 = vmatprep.subr.mxu0 0.0
  %148 = vmatpush1.msra.mxu0 %v77
  %149 = vmatprep.mubr.f32.mxu0 %v21
  %150 = vmatmul.mubr.f32.gmra.mrb[0].mxu0 %v20
  %v151 = vpop.f32.mrb[0].mxu0
  %v152 = vadd.f32 %v83, %v151
  %v153 = vpop.f32.mrb[0].mxu0
  %154 = vmatprep.mubr.f32.mxu0 %v23
  %155 = vmatmul.mubr.f32.gmra.mrb[0].mxu0 %v22
  %v156 = vpop.f32.mrb[0].mxu0
  %v157 = vadd.f32 %v83, %v156
  %v158 = vpop.f32.mrb[0].mxu0
  %159 = vmatprep.mubr.f32.mxu0 %v25
  %160 = vmatmul.mubr.f32.gmra.mrb[0].mxu0 %v24
  %v161 = vpop.f32.mrb[0].mxu0
  %v162 = vadd.f32 %v83, %v161
  %v163 = vpop.f32.mrb[0].mxu0
  %164 = vmatprep.mubr.f32.mxu0 %v27
  %165 = vmatmul.mubr.f32.gmra.mrb[0].mxu0 %v26
  %v166 = vpop.f32.mrb[0].mxu0
  %v167 = vadd.f32 %v83, %v166
  %v168 = vpop.f32.mrb[0].mxu0
  %169 = vmatprep.mubr.f32.mxu0 %v29
  %170 = vmatmul.mubr.f32.gmra.mrb[0].mxu0 %v28
  %v171 = vpop.f32.mrb[0].mxu0
  %v172 = vadd.f32 %v83, %v171
  %v173 = vpop.f32.mrb[0].mxu0
  %174 = vmatprep.mubr.f32.mxu0 %v31
  %175 = vmatmul.mubr.f32.gmra.mrb[0].mxu0 %v30
  %v176 = vpop.f32.mrb[0].mxu0
  %v177 = vadd.f32 %v83, %v176
  %v178 = vpop.f32.mrb[0].mxu0
  %179 = vmatprep.mubr.f32.mxu0 %v33
  %180 = vmatmul.mubr.f32.gmra.mrb[0].mxu0 %v32
  %v181 = vpop.f32.mrb[0].mxu0
  %v182 = vadd.f32 %v83, %v181
  %v183 = vpop.f32.mrb[0].mxu0
  %184 = vmatprep.mubr.f32.mxu0 %v35
  %185 = vmatmul.mubr.f32.gmra.mrb[0].mxu0 %v34
  %v186 = vpop.f32.mrb[0].mxu0
  %v187 = vadd.f32 %v83, %v186
  %v188 = vpop.f32.mrb[0].mxu0
  %189 = vmatprep.mubr.f32.mxu0 %v37
  %190 = vmatmul.mubr.f32.gmra.mrb[0].mxu0 %v36
  %v191 = vpop.f32.mrb[0].mxu0
  %v192 = vadd.f32 %v83, %v191
  %v193 = vpop.f32.mrb[0].mxu0
  %194 = vmatprep.mubr.f32.mxu0 %v39
  %195 = vmatmul.mubr.f32.gmra.mrb[0].mxu0 %v38
  %v196 = vpop.f32.mrb[0].mxu0
  %v197 = vadd.f32 %v83, %v196
  %v198 = vpop.f32.mrb[0].mxu0
  %199 = vmatprep.mubr.f32.mxu0 %v41
  %200 = vmatmul.mubr.f32.gmra.mrb[0].mxu0 %v40
  %v201 = vpop.f32.mrb[0].mxu0
  %v202 = vadd.f32 %v83, %v201
  %v203 = vpop.f32.mrb[0].mxu0
  %204 = vmatprep.mubr.f32.mxu0 %v43
  %205 = vmatmul.mubr.f32.gmra.mrb[0].mxu0 %v42
  %v206 = vpop.f32.mrb[0].mxu0
  %v207 = vadd.f32 %v83, %v206
  %v208 = vpop.f32.mrb[0].mxu0
  %209 = vmatprep.mubr.f32.mxu0 %v45
  %210 = vmatmul.mubr.f32.gmra.mrb[0].mxu0 %v44
  %v211 = vpop.f32.mrb[0].mxu0
  %v212 = vadd.f32 %v83, %v211
  %v213 = vpop.f32.mrb[0].mxu0
  %214 = vdwg.mxu0
  %v215 = vadd.f32 %v152, %v157
  %v216 = vadd.f32 %v215, %v162
  %v217 = vadd.f32 %v216, %v167
  %v218 = vadd.f32 %v217, %v172
  %v219 = vadd.f32 %v218, %v177
  %v220 = vadd.f32 %v219, %v182
  %v221 = vadd.f32 %v220, %v187
  %v222 = vadd.f32 %v221, %v192
  %v223 = vadd.f32 %v222, %v197
  %v224 = vadd.f32 %v223, %v202
  %v225 = vadd.f32 %v224, %v207
  %vm226 = vcmask 1041408
  %v227 = vsel %vm226, %v212, 0.0
  %v228 = vadd.f32 %v225, %v227
  %v229 = vrot.slane %v228, 4
  %v230 = vadd.f32 %v228, %v229
  %v231 = vrot.slane %v230, 2
  %v232 = vadd.f32 %v230, %v231
  %v233 = vrot.slane %v232, 1
  %v234 = vadd.f32 %v232, %v233
  %v235 = vrcp.pop 98.0
  %v236 = vmul.f32 %v234, %v235
  %v237 = vsub.f32 %v152, %v236
  %v238 = vsub.f32 %v157, %v236
  %v239 = vsub.f32 %v162, %v236
  %v240 = vsub.f32 %v167, %v236
  %v241 = vsub.f32 %v172, %v236
  %v242 = vsub.f32 %v177, %v236
  %v243 = vsub.f32 %v182, %v236
  %v244 = vsub.f32 %v187, %v236
  %v245 = vsub.f32 %v192, %v236
  %v246 = vsub.f32 %v197, %v236
  %v247 = vsub.f32 %v202, %v236
  %v248 = vsub.f32 %v207, %v236
  %v249 = vsub.f32 %v212, %v236
  %v250 = vmul.f32 %v237, %v237
  %v251 = vmul.f32 %v238, %v238
  %v252 = vmul.f32 %v239, %v239
  %v253 = vmul.f32 %v240, %v240
  %v254 = vmul.f32 %v241, %v241
  %v255 = vmul.f32 %v242, %v242
  %v256 = vmul.f32 %v243, %v243
  %v257 = vmul.f32 %v244, %v244
  %v258 = vmul.f32 %v245, %v245
  %v259 = vmul.f32 %v246, %v246
  %v260 = vmul.f32 %v247, %v247
  %v261 = vmul.f32 %v248, %v248
  %v262 = vmul.f32 %v249, %v249
  %v263 = vadd.f32 %v250, %v251
  %v264 = vadd.f32 %v263, %v252
  %v265 = vadd.f32 %v264, %v253
  %v266 = vadd.f32 %v265, %v254
  %v267 = vadd.f32 %v266, %v255
  %v268 = vadd.f32 %v267, %v256
  %v269 = vadd.f32 %v268, %v257
  %v270 = vadd.f32 %v269, %v258
  %v271 = vadd.f32 %v270, %v259
  %v272 = vadd.f32 %v271, %v260
  %v273 = vadd.f32 %v272, %v261
  %v274 = vsel %vm226, %v262, 0.0
  %v275 = vadd.f32 %v273, %v274
  %v276 = vrot.slane %v275, 4
  %v277 = vadd.f32 %v275, %v276
  %v278 = vrot.slane %v277, 2
  %v279 = vadd.f32 %v277, %v278
  %v280 = vrot.slane %v279, 1
  %v281 = vadd.f32 %v279, %v280
  %v282 = vmul.f32 %v281, %v235
  %v283 = vadd.f32 %v282, 1e-05
  %v284 = vrsqrt.pop %v283
  %v285 = vmul.f32 %v237, %v284
  %v286 = vmul.f32 %v238, %v284
  %v287 = vmul.f32 %v239, %v284
  %v288 = vmul.f32 %v240, %v284
  %v289 = vmul.f32 %v241, %v284
  %v290 = vmul.f32 %v242, %v284
  %v291 = vmul.f32 %v243, %v284
  %v292 = vmul.f32 %v244, %v284
  %v293 = vmul.f32 %v245, %v284
  %v294 = vmul.f32 %v246, %v284
  %v295 = vmul.f32 %v247, %v284
  %v296 = vmul.f32 %v248, %v284
  %v297 = vmul.f32 %v249, %v284
  %v298 = vld [vmem:[%s3] sm:$0x1]
  %v300 = vlaneseq
  %v301 = vshrl.u32 %v300, 7
  %v302 = vsub.s32 0, %v301
  %v303 = vrot.slane %v298, %v302
  %v305 = vmul.f32 %v285, %v303
  %v306 = vmul.f32 %v286, %v303
  %v307 = vmul.f32 %v287, %v303
  %v308 = vmul.f32 %v288, %v303
  %v309 = vmul.f32 %v289, %v303
  %v310 = vmul.f32 %v290, %v303
  %v311 = vmul.f32 %v291, %v303
  %v312 = vmul.f32 %v292, %v303
  %v313 = vmul.f32 %v293, %v303
  %v314 = vmul.f32 %v294, %v303
  %v315 = vmul.f32 %v295, %v303
  %v316 = vmul.f32 %v296, %v303
  %v317 = vmul.f32 %v297, %v303
  %v318 = vld [vmem:[%s4] sm:$0x1]
  %v320 = vlaneseq
  %v321 = vshrl.u32 %v320, 7
  %v322 = vsub.s32 0, %v321
  %v323 = vrot.slane %v318, %v322
  %v325 = vadd.f32 %v305, %v323
  %v326 = vadd.f32 %v306, %v323
  %v327 = vadd.f32 %v307, %v323
  %v328 = vadd.f32 %v308, %v323
  %v329 = vadd.f32 %v309, %v323
  %v330 = vadd.f32 %v310, %v323
  %v331 = vadd.f32 %v311, %v323
  %v332 = vadd.f32 %v312, %v323
  %v333 = vadd.f32 %v313, %v323
  %v334 = vadd.f32 %v314, %v323
  %v335 = vadd.f32 %v315, %v323
  %v336 = vadd.f32 %v316, %v323
  %v337 = vadd.f32 %v317, %v323
  %v338 = vmax.f32 %v325, 0.0
  %v339 = vmax.f32 %v326, 0.0
  %v340 = vmax.f32 %v327, 0.0
  %v341 = vmax.f32 %v328, 0.0
  %v342 = vmax.f32 %v329, 0.0
  %v343 = vmax.f32 %v330, 0.0
  %v344 = vmax.f32 %v331, 0.0
  %v345 = vmax.f32 %v332, 0.0
  %v346 = vmax.f32 %v333, 0.0
  %v347 = vmax.f32 %v334, 0.0
  %v348 = vmax.f32 %v335, 0.0
  %v349 = vmax.f32 %v336, 0.0
  %v350 = vmax.f32 %v337, 0.0
  %351 = vst [vmem:[%s5] sm:$0xff] %v338
  %352 = vst [vmem:[%s5 + $0x8] sm:$0xff] %v339
  %353 = vst [vmem:[%s5 + $0x10] sm:$0xff] %v340
  %354 = vst [vmem:[%s5 + $0x18] sm:$0xff] %v341
  %355 = vst [vmem:[%s5 + $0x20] sm:$0xff] %v342
  %356 = vst [vmem:[%s5 + $0x28] sm:$0xff] %v343
  %357 = vst [vmem:[%s5 + $0x30] sm:$0xff] %v344
  %358 = vst [vmem:[%s5 + $0x38] sm:$0xff] %v345
  %359 = vst [vmem:[%s5 + $0x40] sm:$0xff] %v346
  %360 = vst [vmem:[%s5 + $0x48] sm:$0xff] %v347
  %361 = vst [vmem:[%s5 + $0x50] sm:$0xff] %v348
  %362 = vst [vmem:[%s5 + $0x58] sm:$0xff] %v349
  %363 = vst [vmem:[%s5 + $0x60] sm:$0x3] %v350
  // Predicated region
  $region22: #{forward.6} parent=0 // pred_check
    _
  $region23: #{forward.6} parent=0 // pred_check_branch
    %365 = sbr.rel (0) target = $region25
  $region24: #{forward.6} parent=0 // pred_region
    _
  $region25: #{forward.6} parent=0 // pred_fallthru
    _
  // Predicated region
  $region26: #{forward.6} parent=0 // pred_check
    _
  $region27: #{forward.6} parent=0 // pred_check_branch
    %367 = sbr.rel (0) target = $region29
  $region28: #{forward.6} parent=0 // pred_region
    _
  $region29: #{forward.6} parent=0 // pred_fallthru
    _

// kernel: forward.5
$region0: #{forward.5}
  #allocation0 [shape = 'u32[]', space=smem, size = 0x4, offset = 0x4, fixed_abs, tag = 'smem constant byte address 0x4 - core index']
  #allocation1 [shape = 'u32[144,128]{1,0:T(1,128)}', space=vmem, size = 0x12000, scoped, tag = 'internal scratch']
  %s0 = inlined_call_operand.vmem [shape: f32[392,8], index: 0, kind: input, shape index: {}]
  %s1 = inlined_call_operand.vmem [shape: f32[8,64], index: 1, kind: input, shape index: {}]
  %s2 = inlined_call_operand.vmem [shape: f32[1,64], index: 2, kind: input, shape index: {}]
  %s3 = inlined_call_operand.vmem [shape: f32[1,64], index: 3, kind: input, shape index: {}]
  %s4 = inlined_call_operand.vmem [shape: f32[1,64], index: 4, kind: input, shape index: {}]
  %s5 = inlined_call_operand.vmem [shape: f32[392,64], index: 5, kind: output, shape index: {}]
  %s6 = sld [smem:[#allocation0]]
  $region30: #{forward.5} parent=0
    _
  %s8 = ssub.s32 1, %s6
  %s9 = scalar_select 0, %s8, %s6
  // Predicated region
  $region2: #{forward.5} parent=0 // pred_check
    _
  $region3: #{forward.5} parent=0 // pred_check_branch
    %11 = sbr.rel (0) target = $region5
  $region4: #{forward.5} parent=0 // pred_region
    _
  $region5: #{forward.5} parent=0 // pred_fallthru
    _
  // Predicated region
  $region6: #{forward.5} parent=0 // pred_check
    _
  $region7: #{forward.5} parent=0 // pred_check_branch
    %13 = sbr.rel (0) target = $region9
  $region8: #{forward.5} parent=0 // pred_region
    _
  $region9: #{forward.5} parent=0 // pred_fallthru
    _
  // Predicated region
  $region10: #{forward.5} parent=0 // pred_check
    _
  $region11: #{forward.5} parent=0 // pred_check_branch
    %15 = sbr.rel (0) target = $region13
  $region12: #{forward.5} parent=0 // pred_region
    _
  $region13: #{forward.5} parent=0 // pred_fallthru
    _
  // Predicated region
  $region14: #{forward.5} parent=0 // pred_check
    _
  $region15: #{forward.5} parent=0 // pred_check_branch
    %17 = sbr.rel (0) target = $region17
  $region16: #{forward.5} parent=0 // pred_region
    _
  $region17: #{forward.5} parent=0 // pred_fallthru
    _
  // Predicated region
  $region18: #{forward.5} parent=0 // pred_check
    _
  $region19: #{forward.5} parent=0 // pred_check_branch
    %19 = sbr.rel (0) target = $region21
  $region20: #{forward.5} parent=0 // pred_region
    _
  $region21: #{forward.5} parent=0 // pred_fallthru
    _
  %v20 = vld [vmem:[%s0] sm:$0xff]
  %v21 = vld [vmem:[%s0 + $0x8] sm:$0xff]
  %v22 = vld [vmem:[%s0 + $0x10] sm:$0xff]
  %v23 = vld [vmem:[%s0 + $0x18] sm:$0xff]
  %v24 = vld [vmem:[%s0 + $0x20] sm:$0xff]
  %v25 = vld [vmem:[%s0 + $0x28] sm:$0xff]
  %v26 = vld [vmem:[%s0 + $0x30] sm:$0xff]
  %v27 = vld [vmem:[%s0 + $0x38] sm:$0xff]
  %v28 = vld [vmem:[%s0 + $0x40] sm:$0xff]
  %v29 = vld [vmem:[%s0 + $0x48] sm:$0xff]
  %v30 = vld [vmem:[%s0 + $0x50] sm:$0xff]
  %v31 = vld [vmem:[%s0 + $0x58] sm:$0xff]
  %v32 = vld [vmem:[%s0 + $0x60] sm:$0xff]
  %v33 = vld [vmem:[%s0 + $0x68] sm:$0xff]
  %v34 = vld [vmem:[%s0 + $0x70] sm:$0xff]
  %v35 = vld [vmem:[%s0 + $0x78] sm:$0xff]
  %v36 = vld [vmem:[%s0 + $0x80] sm:$0xff]
  %v37 = vld [vmem:[%s0 + $0x88] sm:$0xff]
  %v38 = vld [vmem:[%s0 + $0x90] sm:$0xff]
  %v39 = vld [vmem:[%s0 + $0x98] sm:$0xff]
  %v40 = vld [vmem:[%s0 + $0xa0] sm:$0xff]
  %v41 = vld [vmem:[%s0 + $0xa8] sm:$0xff]
  %v42 = vld [vmem:[%s0 + $0xb0] sm:$0xff]
  %v43 = vld [vmem:[%s0 + $0xb8] sm:$0xff]
  %v44 = vld [vmem:[%s0 + $0xc0] sm:$0xff]
  %v45 = vld [vmem:[%s0 + $0xc8] sm:$0xff]
  %v46 = vld [vmem:[%s0 + $0xd0] sm:$0xff]
  %v47 = vld [vmem:[%s0 + $0xd8] sm:$0xff]
  %v48 = vld [vmem:[%s0 + $0xe0] sm:$0xff]
  %v49 = vld [vmem:[%s0 + $0xe8] sm:$0xff]
  %v50 = vld [vmem:[%s0 + $0xf0] sm:$0xff]
  %v51 = vld [vmem:[%s0 + $0xf8] sm:$0xff]
  %v52 = vld [vmem:[%s0 + $0x100] sm:$0xff]
  %v53 = vld [vmem:[%s0 + $0x108] sm:$0xff]
  %v54 = vld [vmem:[%s0 + $0x110] sm:$0xff]
  %v55 = vld [vmem:[%s0 + $0x118] sm:$0xff]
  %v56 = vld [vmem:[%s0 + $0x120] sm:$0xff]
  %v57 = vld [vmem:[%s0 + $0x128] sm:$0xff]
  %v58 = vld [vmem:[%s0 + $0x130] sm:$0xff]
  %v59 = vld [vmem:[%s0 + $0x138] sm:$0xff]
  %v60 = vld [vmem:[%s0 + $0x140] sm:$0xff]
  %v61 = vld [vmem:[%s0 + $0x148] sm:$0xff]
  %v62 = vld [vmem:[%s0 + $0x150] sm:$0xff]
  %v63 = vld [vmem:[%s0 + $0x158] sm:$0xff]
  %v64 = vld [vmem:[%s0 + $0x160] sm:$0xff]
  %v65 = vld [vmem:[%s0 + $0x168] sm:$0xff]
  %v66 = vld [vmem:[%s0 + $0x170] sm:$0xff]
  %v67 = vld [vmem:[%s0 + $0x178] sm:$0xff]
  %v68 = vld [vmem:[%s0 + $0x180] sm:$0xff]
  %v69 = vld [vmem:[%s1] sm:$0xff]
  %v70 = vld [vmem:[%s2] sm:$0x1]
  %v72 = vlaneseq
  %v73 = vshrl.u32 %v72, 7
  %v74 = vsub.s32 0, %v73
  %v75 = vrot.slane %v70, %v74
  %vm77 = vcmask 64512
  %v79 = vsel %vm77, %v20, 0
  %v82 = vsel %vm77, %v21, 0
  %v85 = vsel %vm77, %v22, 0
  %v88 = vsel %vm77, %v23, 0
  %v91 = vsel %vm77, %v24, 0
  %v94 = vsel %vm77, %v25, 0
  %v97 = vsel %vm77, %v26, 0
  %v100 = vsel %vm77, %v27, 0
  %v103 = vsel %vm77, %v28, 0
  %v106 = vsel %vm77, %v29, 0
  %v109 = vsel %vm77, %v30, 0
  %v112 = vsel %vm77, %v31, 0
  %v115 = vsel %vm77, %v32, 0
  %v118 = vsel %vm77, %v33, 0
  %v121 = vsel %vm77, %v34, 0
  %v124 = vsel %vm77, %v35, 0
  %v127 = vsel %vm77, %v36, 0
  %v130 = vsel %vm77, %v37, 0
  %v133 = vsel %vm77, %v38, 0
  %v136 = vsel %vm77, %v39, 0
  %v139 = vsel %vm77, %v40, 0
  %v142 = vsel %vm77, %v41, 0
  %v145 = vsel %vm77, %v42, 0
  %v148 = vsel %vm77, %v43, 0
  %v151 = vsel %vm77, %v44, 0
  %v154 = vsel %vm77, %v45, 0
  %v157 = vsel %vm77, %v46, 0
  %v160 = vsel %vm77, %v47, 0
  %v163 = vsel %vm77, %v48, 0
  %v166 = vsel %vm77, %v49, 0
  %v169 = vsel %vm77, %v50, 0
  %v172 = vsel %vm77, %v51, 0
  %v175 = vsel %vm77, %v52, 0
  %v178 = vsel %vm77, %v53, 0
  %v181 = vsel %vm77, %v54, 0
  %v184 = vsel %vm77, %v55, 0
  %v187 = vsel %vm77, %v56, 0
  %v190 = vsel %vm77, %v57, 0
  %v193 = vsel %vm77, %v58, 0
  %v196 = vsel %vm77, %v59, 0
  %v199 = vsel %vm77, %v60, 0
  %v202 = vsel %vm77, %v61, 0
  %v205 = vsel %vm77, %v62, 0
  %v208 = vsel %vm77, %v63, 0
  %v211 = vsel %vm77, %v64, 0
  %v214 = vsel %vm77, %v65, 0
  %v217 = vsel %vm77, %v66, 0
  %v220 = vsel %vm77, %v67, 0
  %v223 = vsel %vm77, %v68, 0
  %225 = vmatprep.subr.mxu0 0.0
  %226 = vmatpush1.msra.mxu0 %v69
  %227 = vmatprep.subr.mxu0 0.0
  %228 = vmatpush1.msra.mxu0 0.0
  %229 = vmatprep.subr.mxu0 0.0
  %230 = vmatpush1.msra.mxu0 0.0
  %231 = vmatprep.subr.mxu0 0.0
  %232 = vmatpush1.msra.mxu0 0.0
  %233 = vmatprep.subr.mxu0 0.0
  %234 = vmatpush1.msra.mxu0 0.0
  %235 = vmatprep.subr.mxu0 0.0
  %236 = vmatpush1.msra.mxu0 0.0
  %237 = vmatprep.subr.mxu0 0.0
  %238 = vmatpush1.msra.mxu0 0.0
  %239 = vmatprep.subr.mxu0 0.0
  %240 = vmatpush1.msra.mxu0 0.0
  %241 = vmatprep.subr.mxu0 0.0
  %242 = vmatpush1.msra.mxu0 0.0
  %243 = vmatprep.subr.mxu0 0.0
  %244 = vmatpush1.msra.mxu0 0.0
  %245 = vmatprep.subr.mxu0 0.0
  %246 = vmatpush1.msra.mxu0 0.0
  %247 = vmatprep.subr.mxu0 0.0
  %248 = vmatpush1.msra.mxu0 0.0
  %249 = vmatprep.subr.mxu0 0.0
  %250 = vmatpush1.msra.mxu0 0.0
  %251 = vmatprep.subr.mxu0 0.0
  %252 = vmatpush1.msra.mxu0 0.0
  %253 = vmatprep.subr.mxu0 0.0
  %254 = vmatpush1.msra.mxu0 0.0
  %255 = vmatprep.subr.mxu0 0.0
  %256 = vmatpush1.msra.mxu0 0.0
  %257 = vmatprep.subr.mxu0 0.0
  %258 = vmatpush1.msra.mxu0 0.0
  %259 = vmatprep.subr.mxu0 0.0
  %260 = vmatpush1.msra.mxu0 0.0
  %261 = vmatprep.subr.mxu0 0.0
  %262 = vmatpush1.msra.mxu0 0.0
  %263 = vmatprep.subr.mxu0 0.0
  %264 = vmatpush1.msra.mxu0 0.0
  %265 = vmatprep.subr.mxu0 0.0
  %266 = vmatpush1.msra.mxu0 0.0
  %267 = vmatprep.subr.mxu0 0.0
  %268 = vmatpush1.msra.mxu0 0.0
  %269 = vmatprep.subr.mxu0 0.0
  %270 = vmatpush1.msra.mxu0 0.0
  %271 = vmatprep.subr.mxu0 0.0
  %272 = vmatpush1.msra.mxu0 0.0
  %273 = vmatprep.subr.mxu0 0.0
  %274 = vmatpush1.msra.mxu0 0.0
  %275 = vmatprep.subr.mxu0 0.0
  %276 = vmatpush1.msra.mxu0 0.0
  %277 = vmatprep.subr.mxu0 0.0
  %278 = vmatpush1.msra.mxu0 0.0
  %279 = vmatprep.subr.mxu0 0.0
  %280 = vmatpush1.msra.mxu0 0.0
  %281 = vmatprep.subr.mxu0 0.0
  %282 = vmatpush1.msra.mxu0 0.0
  %283 = vmatprep.subr.mxu0 0.0
  %284 = vmatpush1.msra.mxu0 0.0
  %285 = vmatprep.subr.mxu0 0.0
  %286 = vmatpush1.msra.mxu0 0.0
  %287 = vmatprep.subr.mxu0 0.0
  %288 = vmatpush1.msra.mxu0 0.0
  %289 = vmatprep.mubr.f32.mxu0 0.0
  %290 = vmatmul.mubr.f32.gmra.mrb[0].mxu0 %v79
  %v291 = vpop.f32.mrb[0].mxu0
  %v292 = vadd.f32 %v75, %v291
  %v293 = vpop.f32.mrb[0].mxu0
  %294 = vmatprep.mubr.f32.mxu0 0.0
  %295 = vmatmul.mubr.f32.gmra.mrb[0].mxu0 %v82
  %v296 = vpop.f32.mrb[0].mxu0
  %v297 = vadd.f32 %v75, %v296
  %v298 = vpop.f32.mrb[0].mxu0
  %299 = vmatprep.mubr.f32.mxu0 0.0
  %300 = vmatmul.mubr.f32.gmra.mrb[0].mxu0 %v85
  %v301 = vpop.f32.mrb[0].mxu0
  %v302 = vadd.f32 %v75, %v301
  %v303 = vpop.f32.mrb[0].mxu0
  %304 = vmatprep.mubr.f32.mxu0 0.0
  %305 = vmatmul.mubr.f32.gmra.mrb[0].mxu0 %v88
  %v306 = vpop.f32.mrb[0].mxu0
  %v307 = vadd.f32 %v75, %v306
  %v308 = vpop.f32.mrb[0].mxu0
  %309 = vmatprep.mubr.f32.mxu0 0.0
  %310 = vmatmul.mubr.f32.gmra.mrb[0].mxu0 %v91
  %v311 = vpop.f32.mrb[0].mxu0
  %v312 = vadd.f32 %v75, %v311
  %v313 = vpop.f32.mrb[0].mxu0
  %314 = vmatprep.mubr.f32.mxu0 0.0
  %315 = vmatmul.mubr.f32.gmra.mrb[0].mxu0 %v94
  %v316 = vpop.f32.mrb[0].mxu0
  %v317 = vadd.f32 %v75, %v316
  %v318 = vpop.f32.mrb[0].mxu0
  %319 = vmatprep.mubr.f32.mxu0 0.0
  %320 = vmatmul.mubr.f32.gmra.mrb[0].mxu0 %v97
  %v321 = vpop.f32.mrb[0].mxu0
  %v322 = vadd.f32 %v75, %v321
  %v323 = vpop.f32.mrb[0].mxu0
  %324 = vmatprep.mubr.f32.mxu0 0.0
  %325 = vmatmul.mubr.f32.gmra.mrb[0].mxu0 %v100
  %v326 = vpop.f32.mrb[0].mxu0
  %v327 = vadd.f32 %v75, %v326
  %v328 = vpop.f32.mrb[0].mxu0
  %329 = vmatprep.mubr.f32.mxu0 0.0
  %330 = vmatmul.mubr.f32.gmra.mrb[0].mxu0 %v103
  %v331 = vpop.f32.mrb[0].mxu0
  %v332 = vadd.f32 %v75, %v331
  %v333 = vpop.f32.mrb[0].mxu0
  %334 = vmatprep.mubr.f32.mxu0 0.0
  %335 = vmatmul.mubr.f32.gmra.mrb[0].mxu0 %v106
  %v336 = vpop.f32.mrb[0].mxu0
  %v337 = vadd.f32 %v75, %v336
  %v338 = vpop.f32.mrb[0].mxu0
  %339 = vmatprep.mubr.f32.mxu0 0.0
  %340 = vmatmul.mubr.f32.gmra.mrb[0].mxu0 %v109
  %v341 = vpop.f32.mrb[0].mxu0
  %v342 = vadd.f32 %v75, %v341
  %v343 = vpop.f32.mrb[0].mxu0
  %344 = vmatprep.mubr.f32.mxu0 0.0
  %345 = vmatmul.mubr.f32.gmra.mrb[0].mxu0 %v112
  %v346 = vpop.f32.mrb[0].mxu0
  %v347 = vadd.f32 %v75, %v346
  %v348 = vpop.f32.mrb[0].mxu0
  %349 = vmatprep.mubr.f32.mxu0 0.0
  %350 = vmatmul.mubr.f32.gmra.mrb[0].mxu0 %v115
  %v351 = vpop.f32.mrb[0].mxu0
  %v352 = vadd.f32 %v75, %v351
  %v353 = vpop.f32.mrb[0].mxu0
  %354 = vmatprep.mubr.f32.mxu0 0.0
  %355 = vmatmul.mubr.f32.gmra.mrb[0].mxu0 %v118
  %v356 = vpop.f32.mrb[0].mxu0
  %v357 = vadd.f32 %v75, %v356
  %v358 = vpop.f32.mrb[0].mxu0
  %359 = vmatprep.mubr.f32.mxu0 0.0
  %360 = vmatmul.mubr.f32.gmra.mrb[0].mxu0 %v121
  %v361 = vpop.f32.mrb[0].mxu0
  %v362 = vadd.f32 %v75, %v361
  %v363 = vpop.f32.mrb[0].mxu0
  %364 = vmatprep.mubr.f32.mxu0 0.0
  %365 = vmatmul.mubr.f32.gmra.mrb[0].mxu0 %v124
  %v366 = vpop.f32.mrb[0].mxu0
  %v367 = vadd.f32 %v75, %v366
  %v368 = vpop.f32.mrb[0].mxu0
  %369 = vmatprep.mubr.f32.mxu0 0.0
  %370 = vmatmul.mubr.f32.gmra.mrb[0].mxu0 %v127
  %v371 = vpop.f32.mrb[0].mxu0
  %v372 = vadd.f32 %v75, %v371
  %v373 = vpop.f32.mrb[0].mxu0
  %374 = vmatprep.mubr.f32.mxu0 0.0
  %375 = vmatmul.mubr.f32.gmra.mrb[0].mxu0 %v130
  %v376 = vpop.f32.mrb[0].mxu0
  %v377 = vadd.f32 %v75, %v376
  %v378 = vpop.f32.mrb[0].mxu0
  %379 = vmatprep.mubr.f32.mxu0 0.0
  %380 = vmatmul.mubr.f32.gmra.mrb[0].mxu0 %v133
  %v381 = vpop.f32.mrb[0].mxu0
  %v382 = vadd.f32 %v75, %v381
  %v383 = vpop.f32.mrb[0].mxu0
  %384 = vmatprep.mubr.f32.mxu0 0.0
  %385 = vmatmul.mubr.f32.gmra.mrb[0].mxu0 %v136
  %v386 = vpop.f32.mrb[0].mxu0
  %v387 = vadd.f32 %v75, %v386
  %v388 = vpop.f32.mrb[0].mxu0
  %389 = vmatprep.mubr.f32.mxu0 0.0
  %390 = vmatmul.mubr.f32.gmra.mrb[0].mxu0 %v139
  %v391 = vpop.f32.mrb[0].mxu0
  %v392 = vadd.f32 %v75, %v391
  %v393 = vpop.f32.mrb[0].mxu0
  %394 = vmatprep.mubr.f32.mxu0 0.0
  %395 = vmatmul.mubr.f32.gmra.mrb[0].mxu0 %v142
  %v396 = vpop.f32.mrb[0].mxu0
  %v397 = vadd.f32 %v75, %v396
  %v398 = vpop.f32.mrb[0].mxu0
  %399 = vmatprep.mubr.f32.mxu0 0.0
  %400 = vmatmul.mubr.f32.gmra.mrb[0].mxu0 %v145
  %v401 = vpop.f32.mrb[0].mxu0
  %v402 = vadd.f32 %v75, %v401
  %v403 = vpop.f32.mrb[0].mxu0
  %404 = vmatprep.mubr.f32.mxu0 0.0
  %405 = vmatmul.mubr.f32.gmra.mrb[0].mxu0 %v148
  %v406 = vpop.f32.mrb[0].mxu0
  %v407 = vadd.f32 %v75, %v406
  %v408 = vpop.f32.mrb[0].mxu0
  %409 = vmatprep.mubr.f32.mxu0 0.0
  %410 = vmatmul.mubr.f32.gmra.mrb[0].mxu0 %v151
  %v411 = vpop.f32.mrb[0].mxu0
  %v412 = vadd.f32 %v75, %v411
  %v413 = vpop.f32.mrb[0].mxu0
  %414 = vmatprep.mubr.f32.mxu0 0.0
  %415 = vmatmul.mubr.f32.gmra.mrb[0].mxu0 %v154
  %v416 = vpop.f32.mrb[0].mxu0
  %v417 = vadd.f32 %v75, %v416
  %v418 = vpop.f32.mrb[0].mxu0
  %419 = vmatprep.mubr.f32.mxu0 0.0
  %420 = vmatmul.mubr.f32.gmra.mrb[0].mxu0 %v157
  %v421 = vpop.f32.mrb[0].mxu0
  %v422 = vadd.f32 %v75, %v421
  %v423 = vpop.f32.mrb[0].mxu0
  %424 = vmatprep.mubr.f32.mxu0 0.0
  %425 = vmatmul.mubr.f32.gmra.mrb[0].mxu0 %v160
  %v426 = vpop.f32.mrb[0].mxu0
  %v427 = vadd.f32 %v75, %v426
  %v428 = vpop.f32.mrb[0].mxu0
  %429 = vmatprep.mubr.f32.mxu0 0.0
  %430 = vmatmul.mubr.f32.gmra.mrb[0].mxu0 %v163
  %v431 = vpop.f32.mrb[0].mxu0
  %v432 = vadd.f32 %v75, %v431
  %v433 = vpop.f32.mrb[0].mxu0
  %434 = vmatprep.mubr.f32.mxu0 0.0
  %435 = vmatmul.mubr.f32.gmra.mrb[0].mxu0 %v166
  %v436 = vpop.f32.mrb[0].mxu0
  %v437 = vadd.f32 %v75, %v436
  %v438 = vpop.f32.mrb[0].mxu0
  %439 = vmatprep.mubr.f32.mxu0 0.0
  %440 = vmatmul.mubr.f32.gmra.mrb[0].mxu0 %v169
  %v441 = vpop.f32.mrb[0].mxu0
  %v442 = vadd.f32 %v75, %v441
  %v443 = vpop.f32.mrb[0].mxu0
  %444 = vmatprep.mubr.f32.mxu0 0.0
  %445 = vmatmul.mubr.f32.gmra.mrb[0].mxu0 %v172
  %v446 = vpop.f32.mrb[0].mxu0
  %v447 = vadd.f32 %v75, %v446
  %v448 = vpop.f32.mrb[0].mxu0
  %449 = vmatprep.mubr.f32.mxu0 0.0
  %450 = vmatmul.mubr.f32.gmra.mrb[0].mxu0 %v175
  %v451 = vpop.f32.mrb[0].mxu0
  %v452 = vadd.f32 %v75, %v451
  %v453 = vpop.f32.mrb[0].mxu0
  %454 = vmatprep.mubr.f32.mxu0 0.0
  %455 = vmatmul.mubr.f32.gmra.mrb[0].mxu0 %v178
  %v456 = vpop.f32.mrb[0].mxu0
  %v457 = vadd.f32 %v75, %v456
  %v458 = vpop.f32.mrb[0].mxu0
  %459 = vmatprep.mubr.f32.mxu0 0.0
  %460 = vmatmul.mubr.f32.gmra.mrb[0].mxu0 %v181
  %v461 = vpop.f32.mrb[0].mxu0
  %v462 = vadd.f32 %v75, %v461
  %v463 = vpop.f32.mrb[0].mxu0
  %464 = vmatprep.mubr.f32.mxu0 0.0
  %465 = vmatmul.mubr.f32.gmra.mrb[0].mxu0 %v184
  %v466 = vpop.f32.mrb[0].mxu0
  %v467 = vadd.f32 %v75, %v466
  %v468 = vpop.f32.mrb[0].mxu0
  %469 = vmatprep.mubr.f32.mxu0 0.0
  %470 = vmatmul.mubr.f32.gmra.mrb[0].mxu0 %v187
  %v471 = vpop.f32.mrb[0].mxu0
  %v472 = vadd.f32 %v75, %v471
  %v473 = vpop.f32.mrb[0].mxu0
  %474 = vmatprep.mubr.f32.mxu0 0.0
  %475 = vmatmul.mubr.f32.gmra.mrb[0].mxu0 %v190
  %v476 = vpop.f32.mrb[0].mxu0
  %v477 = vadd.f32 %v75, %v476
  %v478 = vpop.f32.mrb[0].mxu0
  %479 = vmatprep.mubr.f32.mxu0 0.0
  %480 = vmatmul.mubr.f32.gmra.mrb[0].mxu0 %v193
  %v481 = vpop.f32.mrb[0].mxu0
  %v482 = vadd.f32 %v75, %v481
  %v483 = vpop.f32.mrb[0].mxu0
  %484 = vmatprep.mubr.f32.mxu0 0.0
  %485 = vmatmul.mubr.f32.gmra.mrb[0].mxu0 %v196
  %v486 = vpop.f32.mrb[0].mxu0
  %v487 = vadd.f32 %v75, %v486
  %v488 = vpop.f32.mrb[0].mxu0
  %489 = vmatprep.mubr.f32.mxu0 0.0
  %490 = vmatmul.mubr.f32.gmra.mrb[0].mxu0 %v199
  %v491 = vpop.f32.mrb[0].mxu0
  %v492 = vadd.f32 %v75, %v491
  %v493 = vpop.f32.mrb[0].mxu0
  %494 = vmatprep.mubr.f32.mxu0 0.0
  %495 = vmatmul.mubr.f32.gmra.mrb[0].mxu0 %v202
  %v496 = vpop.f32.mrb[0].mxu0
  %v497 = vadd.f32 %v75, %v496
  %v498 = vpop.f32.mrb[0].mxu0
  %499 = vmatprep.mubr.f32.mxu0 0.0
  %500 = vmatmul.mubr.f32.gmra.mrb[0].mxu0 %v205
  %v501 = vpop.f32.mrb[0].mxu0
  %v502 = vadd.f32 %v75, %v501
  %v503 = vpop.f32.mrb[0].mxu0
  %504 = vmatprep.mubr.f32.mxu0 0.0
  %505 = vmatmul.mubr.f32.gmra.mrb[0].mxu0 %v208
  %v506 = vpop.f32.mrb[0].mxu0
  %v507 = vadd.f32 %v75, %v506
  %v508 = vpop.f32.mrb[0].mxu0
  %509 = vmatprep.mubr.f32.mxu0 0.0
  %510 = vmatmul.mubr.f32.gmra.mrb[0].mxu0 %v211
  %v511 = vpop.f32.mrb[0].mxu0
  %v512 = vadd.f32 %v75, %v511
  %v513 = vpop.f32.mrb[0].mxu0
  %514 = vmatprep.mubr.f32.mxu0 0.0
  %515 = vmatmul.mubr.f32.gmra.mrb[0].mxu0 %v214
  %v516 = vpop.f32.mrb[0].mxu0
  %v517 = vadd.f32 %v75, %v516
  %v518 = vpop.f32.mrb[0].mxu0
  %519 = vmatprep.mubr.f32.mxu0 0.0
  %520 = vmatmul.mubr.f32.gmra.mrb[0].mxu0 %v217
  %v521 = vpop.f32.mrb[0].mxu0
  %v522 = vadd.f32 %v75, %v521
  %v523 = vpop.f32.mrb[0].mxu0
  %524 = vmatprep.mubr.f32.mxu0 0.0
  %525 = vmatmul.mubr.f32.gmra.mrb[0].mxu0 %v220
  %v526 = vpop.f32.mrb[0].mxu0
  %v527 = vadd.f32 %v75, %v526
  %v528 = vpop.f32.mrb[0].mxu0
  %529 = vmatprep.mubr.f32.mxu0 0.0
  %530 = vmatmul.mubr.f32.gmra.mrb[0].mxu0 %v223
  %v531 = vpop.f32.mrb[0].mxu0
  %v532 = vadd.f32 %v75, %v531
  %v533 = vpop.f32.mrb[0].mxu0
  %534 = vdwg.mxu0
  %vm535 = vcmask 523264
  %v536 = vsel %vm535, %v292, 0.0
  %v537 = vsel %vm535, %v297, 0.0
  %v538 = vadd.f32 %v536, %v537
  %v539 = vsel %vm535, %v302, 0.0
  %v540 = vadd.f32 %v538, %v539
  %v541 = vsel %vm535, %v307, 0.0
  %v542 = vadd.f32 %v540, %v541
  %v543 = vsel %vm535, %v312, 0.0
  %v544 = vadd.f32 %v542, %v543
  %v545 = vsel %vm535, %v317, 0.0
  %v546 = vadd.f32 %v544, %v545
  %v547 = vsel %vm535, %v322, 0.0
  %v548 = vadd.f32 %v546, %v547
  %v549 = vsel %vm535, %v327, 0.0
  %v550 = vadd.f32 %v548, %v549
  %v551 = vsel %vm535, %v332, 0.0
  %v552 = vadd.f32 %v550, %v551
  %v553 = vsel %vm535, %v337, 0.0
  %v554 = vadd.f32 %v552, %v553
  %v555 = vsel %vm535, %v342, 0.0
  %v556 = vadd.f32 %v554, %v555
  %v557 = vsel %vm535, %v347, 0.0
  %v558 = vadd.f32 %v556, %v557
  %v559 = vsel %vm535, %v352, 0.0
  %v560 = vadd.f32 %v558, %v559
  %v561 = vsel %vm535, %v357, 0.0
  %v562 = vadd.f32 %v560, %v561
  %v563 = vsel %vm535, %v362, 0.0
  %v564 = vadd.f32 %v562, %v563
  %v565 = vsel %vm535, %v367, 0.0
  %v566 = vadd.f32 %v564, %v565
  %v567 = vsel %vm535, %v372, 0.0
  %v568 = vadd.f32 %v566, %v567
  %v569 = vsel %vm535, %v377, 0.0
  %v570 = vadd.f32 %v568, %v569
  %v571 = vsel %vm535, %v382, 0.0
  %v572 = vadd.f32 %v570, %v571
  %v573 = vsel %vm535, %v387, 0.0
  %v574 = vadd.f32 %v572, %v573
  %v575 = vsel %vm535, %v392, 0.0
  %v576 = vadd.f32 %v574, %v575
  %v577 = vsel %vm535, %v397, 0.0
  %v578 = vadd.f32 %v576, %v577
  %v579 = vsel %vm535, %v402, 0.0
  %v580 = vadd.f32 %v578, %v579
  %v581 = vsel %vm535, %v407, 0.0
  %v582 = vadd.f32 %v580, %v581
  %v583 = vsel %vm535, %v412, 0.0
  %v584 = vadd.f32 %v582, %v583
  %v585 = vsel %vm535, %v417, 0.0
  %v586 = vadd.f32 %v584, %v585
  %v587 = vsel %vm535, %v422, 0.0
  %v588 = vadd.f32 %v586, %v587
  %v589 = vsel %vm535, %v427, 0.0
  %v590 = vadd.f32 %v588, %v589
  %v591 = vsel %vm535, %v432, 0.0
  %v592 = vadd.f32 %v590, %v591
  %v593 = vsel %vm535, %v437, 0.0
  %v594 = vadd.f32 %v592, %v593
  %v595 = vsel %vm535, %v442, 0.0
  %v596 = vadd.f32 %v594, %v595
  %v597 = vsel %vm535, %v447, 0.0
  %v598 = vadd.f32 %v596, %v597
  %v599 = vsel %vm535, %v452, 0.0
  %v600 = vadd.f32 %v598, %v599
  %v601 = vsel %vm535, %v457, 0.0
  %v602 = vadd.f32 %v600, %v601
  %v603 = vsel %vm535, %v462, 0.0
  %v604 = vadd.f32 %v602, %v603
  %v605 = vsel %vm535, %v467, 0.0
  %v606 = vadd.f32 %v604, %v605
  %v607 = vsel %vm535, %v472, 0.0
  %v608 = vadd.f32 %v606, %v607
  %v609 = vsel %vm535, %v477, 0.0
  %v610 = vadd.f32 %v608, %v609
  %v611 = vsel %vm535, %v482, 0.0
  %v612 = vadd.f32 %v610, %v611
  %v613 = vsel %vm535, %v487, 0.0
  %v614 = vadd.f32 %v612, %v613
  %v615 = vsel %vm535, %v492, 0.0
  %v616 = vadd.f32 %v614, %v615
  %v617 = vsel %vm535, %v497, 0.0
  %v618 = vadd.f32 %v616, %v617
  %v619 = vsel %vm535, %v502, 0.0
  %v620 = vadd.f32 %v618, %v619
  %v621 = vsel %vm535, %v507, 0.0
  %v622 = vadd.f32 %v620, %v621
  %v623 = vsel %vm535, %v512, 0.0
  %v624 = vadd.f32 %v622, %v623
  %v625 = vsel %vm535, %v517, 0.0
  %v626 = vadd.f32 %v624, %v625
  %v627 = vsel %vm535, %v522, 0.0
  %v628 = vadd.f32 %v626, %v627
  %v629 = vsel %vm535, %v527, 0.0
  %v630 = vadd.f32 %v628, %v629
  %v631 = vsel %vm535, %v532, 0.0
  %v632 = vadd.f32 %v630, %v631
  %v633 = vrot.slane %v632, 4
  %v634 = vadd.f32 %v632, %v633
  %v635 = vrot.slane %v634, 2
  %v636 = vadd.f32 %v634, %v635
  %v637 = vrot.slane %v636, 1
  %v638 = vadd.f32 %v636, %v637
  %v639 = vrcp.pop 392.0
  %v640 = vmul.f32 %v638, %v639
  %v641 = vsub.f32 %v292, %v640
  %v642 = vsub.f32 %v297, %v640
  %v643 = vsub.f32 %v302, %v640
  %v644 = vsub.f32 %v307, %v640
  %v645 = vsub.f32 %v312, %v640
  %v646 = vsub.f32 %v317, %v640
  %v647 = vsub.f32 %v322, %v640
  %v648 = vsub.f32 %v327, %v640
  %v649 = vsub.f32 %v332, %v640
  %v650 = vsub.f32 %v337, %v640
  %v651 = vsub.f32 %v342, %v640
  %v652 = vsub.f32 %v347, %v640
  %v653 = vsub.f32 %v352, %v640
  %v654 = vsub.f32 %v357, %v640
  %v655 = vsub.f32 %v362, %v640
  %v656 = vsub.f32 %v367, %v640
  %v657 = vsub.f32 %v372, %v640
  %v658 = vsub.f32 %v377, %v640
  %v659 = vsub.f32 %v382, %v640
  %v660 = vsub.f32 %v387, %v640
  %v661 = vsub.f32 %v392, %v640
  %v662 = vsub.f32 %v397, %v640
  %v663 = vsub.f32 %v402, %v640
  %v664 = vsub.f32 %v407, %v640
  %v665 = vsub.f32 %v412, %v640
  %v666 = vsub.f32 %v417, %v640
  %v667 = vsub.f32 %v422, %v640
  %v668 = vsub.f32 %v427, %v640
  %v669 = vsub.f32 %v432, %v640
  %v670 = vsub.f32 %v437, %v640
  %v671 = vsub.f32 %v442, %v640
  %v672 = vsub.f32 %v447, %v640
  %v673 = vsub.f32 %v452, %v640
  %v674 = vsub.f32 %v457, %v640
  %v675 = vsub.f32 %v462, %v640
  %v676 = vsub.f32 %v467, %v640
  %v677 = vsub.f32 %v472, %v640
  %v678 = vsub.f32 %v477, %v640
  %v679 = vsub.f32 %v482, %v640
  %v680 = vsub.f32 %v487, %v640
  %v681 = vsub.f32 %v492, %v640
  %v682 = vsub.f32 %v497, %v640
  %v683 = vsub.f32 %v502, %v640
  %v684 = vsub.f32 %v507, %v640
  %v685 = vsub.f32 %v512, %v640
  %v686 = vsub.f32 %v517, %v640
  %v687 = vsub.f32 %v522, %v640
  %v688 = vsub.f32 %v527, %v640
  %v689 = vsub.f32 %v532, %v640
  %v690 = vmul.f32 %v641, %v641
  %v691 = vmul.f32 %v642, %v642
  %v692 = vmul.f32 %v643, %v643
  %v693 = vmul.f32 %v644, %v644
  %v694 = vmul.f32 %v645, %v645
  %v695 = vmul.f32 %v646, %v646
  %v696 = vmul.f32 %v647, %v647
  %v697 = vmul.f32 %v648, %v648
  %v698 = vmul.f32 %v649, %v649
  %v699 = vmul.f32 %v650, %v650
  %v700 = vmul.f32 %v651, %v651
  %v701 = vmul.f32 %v652, %v652
  %v702 = vmul.f32 %v653, %v653
  %v703 = vmul.f32 %v654, %v654
  %v704 = vmul.f32 %v655, %v655
  %v705 = vmul.f32 %v656, %v656
  %v706 = vmul.f32 %v657, %v657
  %v707 = vmul.f32 %v658, %v658
  %v708 = vmul.f32 %v659, %v659
  %v709 = vmul.f32 %v660, %v660
  %v710 = vmul.f32 %v661, %v661
  %v711 = vmul.f32 %v662, %v662
  %v712 = vmul.f32 %v663, %v663
  %v713 = vmul.f32 %v664, %v664
  %v714 = vmul.f32 %v665, %v665
  %v715 = vmul.f32 %v666, %v666
  %v716 = vmul.f32 %v667, %v667
  %v717 = vmul.f32 %v668, %v668
  %v718 = vmul.f32 %v669, %v669
  %v719 = vmul.f32 %v670, %v670
  %v720 = vmul.f32 %v671, %v671
  %v721 = vmul.f32 %v672, %v672
  %v722 = vmul.f32 %v673, %v673
  %v723 = vmul.f32 %v674, %v674
  %v724 = vmul.f32 %v675, %v675
  %v725 = vmul.f32 %v676, %v676
  %v726 = vmul.f32 %v677, %v677
  %v727 = vmul.f32 %v678, %v678
  %v728 = vmul.f32 %v679, %v679
  %v729 = vmul.f32 %v680, %v680
  %v730 = vmul.f32 %v681, %v681
  %v731 = vmul.f32 %v682, %v682
  %v732 = vmul.f32 %v683, %v683
  %v733 = vmul.f32 %v684, %v684
  %v734 = vmul.f32 %v685, %v685
  %v735 = vmul.f32 %v686, %v686
  %v736 = vmul.f32 %v687, %v687
  %v737 = vmul.f32 %v688, %v688
  %v738 = vmul.f32 %v689, %v689
  %v739 = vsel %vm535, %v690, 0.0
  %v740 = vsel %vm535, %v691, 0.0
  %v741 = vadd.f32 %v739, %v740
  %v742 = vsel %vm535, %v692, 0.0
  %v743 = vadd.f32 %v741, %v742
  %v744 = vsel %vm535, %v693, 0.0
  %v745 = vadd.f32 %v743, %v744
  %v746 = vsel %vm535, %v694, 0.0
  %v747 = vadd.f32 %v745, %v746
  %v748 = vsel %vm535, %v695, 0.0
  %v749 = vadd.f32 %v747, %v748
  %v750 = vsel %vm535, %v696, 0.0
  %v751 = vadd.f32 %v749, %v750
  %v752 = vsel %vm535, %v697, 0.0
  %v753 = vadd.f32 %v751, %v752
  %v754 = vsel %vm535, %v698, 0.0
  %v755 = vadd.f32 %v753, %v754
  %v756 = vsel %vm535, %v699, 0.0
  %v757 = vadd.f32 %v755, %v756
  %v758 = vsel %vm535, %v700, 0.0
  %v759 = vadd.f32 %v757, %v758
  %v760 = vsel %vm535, %v701, 0.0
  %v761 = vadd.f32 %v759, %v760
  %v762 = vsel %vm535, %v702, 0.0
  %v763 = vadd.f32 %v761, %v762
  %v764 = vsel %vm535, %v703, 0.0
  %v765 = vadd.f32 %v763, %v764
  %v766 = vsel %vm535, %v704, 0.0
  %v767 = vadd.f32 %v765, %v766
  %v768 = vsel %vm535, %v705, 0.0
  %v769 = vadd.f32 %v767, %v768
  %v770 = vsel %vm535, %v706, 0.0
  %v771 = vadd.f32 %v769, %v770
  %v772 = vsel %vm535, %v707, 0.0
  %v773 = vadd.f32 %v771, %v772
  %v774 = vsel %vm535, %v708, 0.0
  %v775 = vadd.f32 %v773, %v774
  %v776 = vsel %vm535, %v709, 0.0
  %v777 = vadd.f32 %v775, %v776
  %v778 = vsel %vm535, %v710, 0.0
  %v779 = vadd.f32 %v777, %v778
  %v780 = vsel %vm535, %v711, 0.0
  %v781 = vadd.f32 %v779, %v780
  %v782 = vsel %vm535, %v712, 0.0
  %v783 = vadd.f32 %v781, %v782
  %v784 = vsel %vm535, %v713, 0.0
  %v785 = vadd.f32 %v783, %v784
  %v786 = vsel %vm535, %v714, 0.0
  %v787 = vadd.f32 %v785, %v786
  %v788 = vsel %vm535, %v715, 0.0
  %v789 = vadd.f32 %v787, %v788
  %v790 = vsel %vm535, %v716, 0.0
  %v791 = vadd.f32 %v789, %v790
  %v792 = vsel %vm535, %v717, 0.0
  %v793 = vadd.f32 %v791, %v792
  %v794 = vsel %vm535, %v718, 0.0
  %v795 = vadd.f32 %v793, %v794
  %v796 = vsel %vm535, %v719, 0.0
  %v797 = vadd.f32 %v795, %v796
  %v798 = vsel %vm535, %v720, 0.0
  %v799 = vadd.f32 %v797, %v798
  %v800 = vsel %vm535, %v721, 0.0
  %v801 = vadd.f32 %v799, %v800
  %v802 = vsel %vm535, %v722, 0.0
  %v803 = vadd.f32 %v801, %v802
  %v804 = vsel %vm535, %v723, 0.0
  %v805 = vadd.f32 %v803, %v804
  %v806 = vsel %vm535, %v724, 0.0
  %v807 = vadd.f32 %v805, %v806
  %v808 = vsel %vm535, %v725, 0.0
  %v809 = vadd.f32 %v807, %v808
  %v810 = vsel %vm535, %v726, 0.0
  %v811 = vadd.f32 %v809, %v810
  %v812 = vsel %vm535, %v727, 0.0
  %v813 = vadd.f32 %v811, %v812
  %v814 = vsel %vm535, %v728, 0.0
  %v815 = vadd.f32 %v813, %v814
  %v816 = vsel %vm535, %v729, 0.0
  %v817 = vadd.f32 %v815, %v816
  %v818 = vsel %vm535, %v730, 0.0
  %v819 = vadd.f32 %v817, %v818
  %v820 = vsel %vm535, %v731, 0.0
  %v821 = vadd.f32 %v819, %v820
  %v822 = vsel %vm535, %v732, 0.0
  %v823 = vadd.f32 %v821, %v822
  %v824 = vsel %vm535, %v733, 0.0
  %v825 = vadd.f32 %v823, %v824
  %v826 = vsel %vm535, %v734, 0.0
  %v827 = vadd.f32 %v825, %v826
  %v828 = vsel %vm535, %v735, 0.0
  %v829 = vadd.f32 %v827, %v828
  %v830 = vsel %vm535, %v736, 0.0
  %v831 = vadd.f32 %v829, %v830
  %v832 = vsel %vm535, %v737, 0.0
  %v833 = vadd.f32 %v831, %v832
  %v834 = vsel %vm535, %v738, 0.0
  %v835 = vadd.f32 %v833, %v834
  %v836 = vrot.slane %v835, 4
  %v837 = vadd.f32 %v835, %v836
  %v838 = vrot.slane %v837, 2
  %v839 = vadd.f32 %v837, %v838
  %v840 = vrot.slane %v839, 1
  %v841 = vadd.f32 %v839, %v840
  %v842 = vmul.f32 %v841, %v639
  %v843 = vadd.f32 %v842, 1e-05
  %v844 = vrsqrt.pop %v843
  %v845 = vmul.f32 %v641, %v844
  %v846 = vmul.f32 %v642, %v844
  %v847 = vmul.f32 %v643, %v844
  %v848 = vmul.f32 %v644, %v844
  %v849 = vmul.f32 %v645, %v844
  %v850 = vmul.f32 %v646, %v844
  %v851 = vmul.f32 %v647, %v844
  %v852 = vmul.f32 %v648, %v844
  %v853 = vmul.f32 %v649, %v844
  %v854 = vmul.f32 %v650, %v844
  %v855 = vmul.f32 %v651, %v844
  %v856 = vmul.f32 %v652, %v844
  %v857 = vmul.f32 %v653, %v844
  %v858 = vmul.f32 %v654, %v844
  %v859 = vmul.f32 %v655, %v844
  %v860 = vmul.f32 %v656, %v844
  %v861 = vmul.f32 %v657, %v844
  %v862 = vmul.f32 %v658, %v844
  %v863 = vmul.f32 %v659, %v844
  %v864 = vmul.f32 %v660, %v844
  %v865 = vmul.f32 %v661, %v844
  %v866 = vmul.f32 %v662, %v844
  %v867 = vmul.f32 %v663, %v844
  %v868 = vmul.f32 %v664, %v844
  %v869 = vmul.f32 %v665, %v844
  %v870 = vmul.f32 %v666, %v844
  %v871 = vmul.f32 %v667, %v844
  %v872 = vmul.f32 %v668, %v844
  %v873 = vmul.f32 %v669, %v844
  %v874 = vmul.f32 %v670, %v844
  %v875 = vmul.f32 %v671, %v844
  %v876 = vmul.f32 %v672, %v844
  %v877 = vmul.f32 %v673, %v844
  %v878 = vmul.f32 %v674, %v844
  %v879 = vmul.f32 %v675, %v844
  %v880 = vmul.f32 %v676, %v844
  %v881 = vmul.f32 %v677, %v844
  %v882 = vmul.f32 %v678, %v844
  %v883 = vmul.f32 %v679, %v844
  %v884 = vmul.f32 %v680, %v844
  %v885 = vmul.f32 %v681, %v844
  %v886 = vmul.f32 %v682, %v844
  %v887 = vmul.f32 %v683, %v844
  %v888 = vmul.f32 %v684, %v844
  %v889 = vmul.f32 %v685, %v844
  %v890 = vmul.f32 %v686, %v844
  %v891 = vmul.f32 %v687, %v844
  %v892 = vmul.f32 %v688, %v844
  %v893 = vmul.f32 %v689, %v844
  %v894 = vld [vmem:[%s3] sm:$0x1]
  %v896 = vlaneseq
  %v897 = vshrl.u32 %v896, 7
  %v898 = vsub.s32 0, %v897
  %v899 = vrot.slane %v894, %v898
  %v901 = vmul.f32 %v845, %v899
  %v902 = vmul.f32 %v846, %v899
  %v903 = vmul.f32 %v847, %v899
  %v904 = vmul.f32 %v848, %v899
  %v905 = vmul.f32 %v849, %v899
  %v906 = vmul.f32 %v850, %v899
  %v907 = vmul.f32 %v851, %v899
  %v908 = vmul.f32 %v852, %v899
  %v909 = vmul.f32 %v853, %v899
  %v910 = vmul.f32 %v854, %v899
  %v911 = vmul.f32 %v855, %v899
  %v912 = vmul.f32 %v856, %v899
  %v913 = vmul.f32 %v857, %v899
  %v914 = vmul.f32 %v858, %v899
  %v915 = vmul.f32 %v859, %v899
  %v916 = vmul.f32 %v860, %v899
  %v917 = vmul.f32 %v861, %v899
  %v918 = vmul.f32 %v862, %v899
  %v919 = vmul.f32 %v863, %v899
  %v920 = vmul.f32 %v864, %v899
  %v921 = vmul.f32 %v865, %v899
  %v922 = vmul.f32 %v866, %v899
  %v923 = vmul.f32 %v867, %v899
  %v924 = vmul.f32 %v868, %v899
  %v925 = vmul.f32 %v869, %v899
  %v926 = vmul.f32 %v870, %v899
  %v927 = vmul.f32 %v871, %v899
  %v928 = vmul.f32 %v872, %v899
  %v929 = vmul.f32 %v873, %v899
  %v930 = vmul.f32 %v874, %v899
  %v931 = vmul.f32 %v875, %v899
  %v932 = vmul.f32 %v876, %v899
  %v933 = vmul.f32 %v877, %v899
  %v934 = vmul.f32 %v878, %v899
  %v935 = vmul.f32 %v879, %v899
  %v936 = vmul.f32 %v880, %v899
  %v937 = vmul.f32 %v881, %v899
  %v938 = vmul.f32 %v882, %v899
  %v939 = vmul.f32 %v883, %v899
  %v940 = vmul.f32 %v884, %v899
  %v941 = vmul.f32 %v885, %v899
  %v942 = vmul.f32 %v886, %v899
  %v943 = vmul.f32 %v887, %v899
  %v944 = vmul.f32 %v888, %v899
  %v945 = vmul.f32 %v889, %v899
  %v946 = vmul.f32 %v890, %v899
  %v947 = vmul.f32 %v891, %v899
  %v948 = vmul.f32 %v892, %v899
  %v949 = vmul.f32 %v893, %v899
  %v950 = vld [vmem:[%s4] sm:$0x1]
  %v952 = vlaneseq
  %v953 = vshrl.u32 %v952, 7
  %v954 = vsub.s32 0, %v953
  %v955 = vrot.slane %v950, %v954
  %v957 = vadd.f32 %v901, %v955
  %v958 = vadd.f32 %v902, %v955
  %v959 = vadd.f32 %v903, %v955
  %v960 = vadd.f32 %v904, %v955
  %v961 = vadd.f32 %v905, %v955
  %v962 = vadd.f32 %v906, %v955
  %v963 = vadd.f32 %v907, %v955
  %v964 = vadd.f32 %v908, %v955
  %v965 = vadd.f32 %v909, %v955
  %v966 = vadd.f32 %v910, %v955
  %v967 = vadd.f32 %v911, %v955
  %v968 = vadd.f32 %v912, %v955
  %v969 = vadd.f32 %v913, %v955
  %v970 = vadd.f32 %v914, %v955
  %v971 = vadd.f32 %v915, %v955
  %v972 = vadd.f32 %v916, %v955
  %v973 = vadd.f32 %v917, %v955
  %v974 = vadd.f32 %v918, %v955
  %v975 = vadd.f32 %v919, %v955
  %v976 = vadd.f32 %v920, %v955
  %v977 = vadd.f32 %v921, %v955
  %v978 = vadd.f32 %v922, %v955
  %v979 = vadd.f32 %v923, %v955
  %v980 = vadd.f32 %v924, %v955
  %v981 = vadd.f32 %v925, %v955
  %v982 = vadd.f32 %v926, %v955
  %v983 = vadd.f32 %v927, %v955
  %v984 = vadd.f32 %v928, %v955
  %v985 = vadd.f32 %v929, %v955
  %v986 = vadd.f32 %v930, %v955
  %v987 = vadd.f32 %v931, %v955
  %v988 = vadd.f32 %v932, %v955
  %v989 = vadd.f32 %v933, %v955
  %v990 = vadd.f32 %v934, %v955
  %v991 = vadd.f32 %v935, %v955
  %v992 = vadd.f32 %v936, %v955
  %v993 = vadd.f32 %v937, %v955
  %v994 = vadd.f32 %v938, %v955
  %v995 = vadd.f32 %v939, %v955
  %v996 = vadd.f32 %v940, %v955
  %v997 = vadd.f32 %v941, %v955
  %v998 = vadd.f32 %v942, %v955
  %v999 = vadd.f32 %v943, %v955
  %v1000 = vadd.f32 %v944, %v955
  %v1001 = vadd.f32 %v945, %v955
  %v1002 = vadd.f32 %v946, %v955
  %v1003 = vadd.f32 %v947, %v955
  %v1004 = vadd.f32 %v948, %v955
  %v1005 = vadd.f32 %v949, %v955
  %v1006 = vmax.f32 %v957, 0.0
  %v1007 = vmax.f32 %v958, 0.0
  %v1008 = vmax.f32 %v959, 0.0
  %v1009 = vmax.f32 %v960, 0.0
  %v1010 = vmax.f32 %v961, 0.0
  %v1011 = vmax.f32 %v962, 0.0
  %v1012 = vmax.f32 %v963, 0.0
  %v1013 = vmax.f32 %v964, 0.0
  %v1014 = vmax.f32 %v965, 0.0
  %v1015 = vmax.f32 %v966, 0.0
  %v1016 = vmax.f32 %v967, 0.0
  %v1017 = vmax.f32 %v968, 0.0
  %v1018 = vmax.f32 %v969, 0.0
  %v1019 = vmax.f32 %v970, 0.0
  %v1020 = vmax.f32 %v971, 0.0
  %v1021 = vmax.f32 %v972, 0.0
  %v1022 = vmax.f32 %v973, 0.0
  %v1023 = vmax.f32 %v974, 0.0
  %v1024 = vmax.f32 %v975, 0.0
  %v1025 = vmax.f32 %v976, 0.0
  %v1026 = vmax.f32 %v977, 0.0
  %v1027 = vmax.f32 %v978, 0.0
  %v1028 = vmax.f32 %v979, 0.0
  %v1029 = vmax.f32 %v980, 0.0
  %v1030 = vmax.f32 %v981, 0.0
  %v1031 = vmax.f32 %v982, 0.0
  %v1032 = vmax.f32 %v983, 0.0
  %v1033 = vmax.f32 %v984, 0.0
  %v1034 = vmax.f32 %v985, 0.0
  %v1035 = vmax.f32 %v986, 0.0
  %v1036 = vmax.f32 %v987, 0.0
  %v1037 = vmax.f32 %v988, 0.0
  %v1038 = vmax.f32 %v989, 0.0
  %v1039 = vmax.f32 %v990, 0.0
  %v1040 = vmax.f32 %v991, 0.0
  %v1041 = vmax.f32 %v992, 0.0
  %v1042 = vmax.f32 %v993, 0.0
  %v1043 = vmax.f32 %v994, 0.0
  %v1044 = vmax.f32 %v995, 0.0
  %v1045 = vmax.f32 %v996, 0.0
  %v1046 = vmax.f32 %v997, 0.0
  %v1047 = vmax.f32 %v998, 0.0
  %v1048 = vmax.f32 %v999, 0.0
  %v1049 = vmax.f32 %v1000, 0.0
  %v1050 = vmax.f32 %v1001, 0.0
  %v1051 = vmax.f32 %v1002, 0.0
  %v1052 = vmax.f32 %v1003, 0.0
  %v1053 = vmax.f32 %v1004, 0.0
  %v1054 = vmax.f32 %v1005, 0.0
  %1055 = vst.msk [vmem:[%s5] sm:$0xff] %vm535, %v1006
  %1056 = vst.msk [vmem:[%s5 + $0x8] sm:$0xff] %vm535, %v1007
  %1057 = vst.msk [vmem:[%s5 + $0x10] sm:$0xff] %vm535, %v1008
  %1058 = vst.msk [vmem:[%s5 + $0x18] sm:$0xff] %vm535, %v1009
  %1059 = vst.msk [vmem:[%s5 + $0x20] sm:$0xff] %vm535, %v1010
  %1060 = vst.msk [vmem:[%s5 + $0x28] sm:$0xff] %vm535, %v1011
  %1061 = vst.msk [vmem:[%s5 + $0x30] sm:$0xff] %vm535, %v1012
  %1062 = vst.msk [vmem:[%s5 + $0x38] sm:$0xff] %vm535, %v1013
  %1063 = vst.msk [vmem:[%s5 + $0x40] sm:$0xff] %vm535, %v1014
  %1064 = vst.msk [vmem:[%s5 + $0x48] sm:$0xff] %vm535, %v1015
  %1065 = vst.msk [vmem:[%s5 + $0x50] sm:$0xff] %vm535, %v1016
  %1066 = vst.msk [vmem:[%s5 + $0x58] sm:$0xff] %vm535, %v1017
  %1067 = vst.msk [vmem:[%s5 + $0x60] sm:$0xff] %vm535, %v1018
  %1068 = vst.msk [vmem:[%s5 + $0x68] sm:$0xff] %vm535, %v1019
  %1069 = vst.msk [vmem:[%s5 + $0x70] sm:$0xff] %vm535, %v1020
  %1070 = vst.msk [vmem:[%s5 + $0x78] sm:$0xff] %vm535, %v1021
  %1071 = vst.msk [vmem:[%s5 + $0x80] sm:$0xff] %vm535, %v1022
  %1072 = vst.msk [vmem:[%s5 + $0x88] sm:$0xff] %vm535, %v1023
  %1073 = vst.msk [vmem:[%s5 + $0x90] sm:$0xff] %vm535, %v1024
  %1074 = vst.msk [vmem:[%s5 + $0x98] sm:$0xff] %vm535, %v1025
  %1075 = vst.msk [vmem:[%s5 + $0xa0] sm:$0xff] %vm535, %v1026
  %1076 = vst.msk [vmem:[%s5 + $0xa8] sm:$0xff] %vm535, %v1027
  %1077 = vst.msk [vmem:[%s5 + $0xb0] sm:$0xff] %vm535, %v1028
  %1078 = vst.msk [vmem:[%s5 + $0xb8] sm:$0xff] %vm535, %v1029
  %1079 = vst.msk [vmem:[%s5 + $0xc0] sm:$0xff] %vm535, %v1030
  %1080 = vst.msk [vmem:[%s5 + $0xc8] sm:$0xff] %vm535, %v1031
  %1081 = vst.msk [vmem:[%s5 + $0xd0] sm:$0xff] %vm535, %v1032
  %1082 = vst.msk [vmem:[%s5 + $0xd8] sm:$0xff] %vm535, %v1033
  %1083 = vst.msk [vmem:[%s5 + $0xe0] sm:$0xff] %vm535, %v1034
  %1084 = vst.msk [vmem:[%s5 + $0xe8] sm:$0xff] %vm535, %v1035
  %1085 = vst.msk [vmem:[%s5 + $0xf0] sm:$0xff] %vm535, %v1036
  %1086 = vst.msk [vmem:[%s5 + $0xf8] sm:$0xff] %vm535, %v1037
  %1087 = vst.msk [vmem:[%s5 + $0x100] sm:$0xff] %vm535, %v1038
  %1088 = vst.msk [vmem:[%s5 + $0x108] sm:$0xff] %vm535, %v1039
  %1089 = vst.msk [vmem:[%s5 + $0x110] sm:$0xff] %vm535, %v1040
  %1090 = vst.msk [vmem:[%s5 + $0x118] sm:$0xff] %vm535, %v1041
  %1091 = vst.msk [vmem:[%s5 + $0x120] sm:$0xff] %vm535, %v1042
  %1092 = vst.msk [vmem:[%s5 + $0x128] sm:$0xff] %vm535, %v1043
  %1093 = vst.msk [vmem:[%s5 + $0x130] sm:$0xff] %vm535, %v1044
  %1094 = vst.msk [vmem:[%s5 + $0x138] sm:$0xff] %vm535, %v1045
  %1095 = vst.msk [vmem:[%s5 + $0x140] sm:$0xff] %vm535, %v1046
  %1096 = vst.msk [vmem:[%s5 + $0x148] sm:$0xff] %vm535, %v1047
  %1097 = vst.msk [vmem:[%s5 + $0x150] sm:$0xff] %vm535, %v1048
  %1098 = vst.msk [vmem:[%s5 + $0x158] sm:$0xff] %vm535, %v1049
  %1099 = vst.msk [vmem:[%s5 + $0x160] sm:$0xff] %vm535, %v1050
  %1100 = vst.msk [vmem:[%s5 + $0x168] sm:$0xff] %vm535, %v1051
  %1101 = vst.msk [vmem:[%s5 + $0x170] sm:$0xff] %vm535, %v1052
  %1102 = vst.msk [vmem:[%s5 + $0x178] sm:$0xff] %vm535, %v1053
  %1103 = vst.msk [vmem:[%s5 + $0x180] sm:$0xff] %vm535, %v1054
  // Predicated region
  $region22: #{forward.5} parent=0 // pred_check
    _
  $region23: #{forward.5} parent=0 // pred_check_branch
    %1105 = sbr.rel (0) target = $region25
  $region24: #{forward.5} parent=0 // pred_region
    _
  $region25: #{forward.5} parent=0 // pred_fallthru
    _
  // Predicated region
  $region26: #{forward.5} parent=0 // pred_check
    _
  $region27: #{forward.5} parent=0 // pred_check_branch
    %1107 = sbr.rel (0) target = $region29
  $region28: #{forward.5} parent=0 // pred_region
    _
  $region29: #{forward.5} parent=0 // pred_fallthru
    _

// kernel: forward.8
$region0: #{forward.8}
  #allocation0 [shape = 'u32[]', space=smem, size = 0x4, offset = 0x4, fixed_abs, tag = 'smem constant byte address 0x4 - core index']
  #allocation1 [shape = 'u32[144,128]{1,0:T(1,128)}', space=vmem, size = 0x12000, scoped, tag = 'internal scratch']
  %s0 = inlined_call_operand.vmem [shape: f32[98,128], index: 0, kind: input, shape index: {}]
  %s1 = inlined_call_operand.vmem [shape: f32[1,128], index: 1, kind: input, shape index: {}]
  %s2 = inlined_call_operand.vmem [shape: f32[1,128], index: 2, kind: input, shape index: {}]
  %s3 = inlined_call_operand.vmem [shape: f32[1,128], index: 3, kind: input, shape index: {}]
  %s4 = inlined_call_operand.vmem [shape: f32[128,256], index: 4, kind: input, shape index: {}]
  %s5 = inlined_call_operand.vmem [shape: f32[1,256], index: 5, kind: input, shape index: {}]
  %s6 = inlined_call_operand.vmem [shape: f32[1,256], index: 6, kind: input, shape index: {}]
  %s7 = inlined_call_operand.vmem [shape: f32[1,256], index: 7, kind: input, shape index: {}]
  %s8 = inlined_call_operand.vmem [shape: f32[256,16], index: 8, kind: input, shape index: {}]
  %s9 = inlined_call_operand.vmem [shape: f32[1,16], index: 9, kind: input, shape index: {}]
  %s10 = inlined_call_operand.vmem [shape: f32[98,16], index: 10, kind: output, shape index: {}]
  %s11 = sld [smem:[#allocation0]]
  $region50: #{forward.8} parent=0
    _
  %s13 = ssub.s32 1, %s11
  %s14 = scalar_select 0, %s13, %s11
  // Predicated region
  $region2: #{forward.8} parent=0 // pred_check
    _
  $region3: #{forward.8} parent=0 // pred_check_branch
    %16 = sbr.rel (0) target = $region5
  $region4: #{forward.8} parent=0 // pred_region
    _
  $region5: #{forward.8} parent=0 // pred_fallthru
    _
  // Predicated region
  $region6: #{forward.8} parent=0 // pred_check
    _
  $region7: #{forward.8} parent=0 // pred_check_branch
    %18 = sbr.rel (0) target = $region9
  $region8: #{forward.8} parent=0 // pred_region
    _
  $region9: #{forward.8} parent=0 // pred_fallthru
    _
  // Predicated region
  $region10: #{forward.8} parent=0 // pred_check
    _
  $region11: #{forward.8} parent=0 // pred_check_branch
    %20 = sbr.rel (0) target = $region13
  $region12: #{forward.8} parent=0 // pred_region
    _
  $region13: #{forward.8} parent=0 // pred_fallthru
    _
  // Predicated region
  $region14: #{forward.8} parent=0 // pred_check
    _
  $region15: #{forward.8} parent=0 // pred_check_branch
    %22 = sbr.rel (0) target = $region17
  $region16: #{forward.8} parent=0 // pred_region
    _
  $region17: #{forward.8} parent=0 // pred_fallthru
    _
  // Predicated region
  $region18: #{forward.8} parent=0 // pred_check
    _
  $region19: #{forward.8} parent=0 // pred_check_branch
    %24 = sbr.rel (0) target = $region21
  $region20: #{forward.8} parent=0 // pred_region
    _
  $region21: #{forward.8} parent=0 // pred_fallthru
    _
  // Predicated region
  $region22: #{forward.8} parent=0 // pred_check
    _
  $region23: #{forward.8} parent=0 // pred_check_branch
    %26 = sbr.rel (0) target = $region25
  $region24: #{forward.8} parent=0 // pred_region
    _
  $region25: #{forward.8} parent=0 // pred_fallthru
    _
  // Predicated region
  $region26: #{forward.8} parent=0 // pred_check
    _
  $region27: #{forward.8} parent=0 // pred_check_branch
    %28 = sbr.rel (0) target = $region29
  $region28: #{forward.8} parent=0 // pred_region
    _
  $region29: #{forward.8} parent=0 // pred_fallthru
    _
  // Predicated region
  $region30: #{forward.8} parent=0 // pred_check
    _
  $region31: #{forward.8} parent=0 // pred_check_branch
    %30 = sbr.rel (0) target = $region33
  $region32: #{forward.8} parent=0 // pred_region
    _
  $region33: #{forward.8} parent=0 // pred_fallthru
    _
  // Predicated region
  $region34: #{forward.8} parent=0 // pred_check
    _
  $region35: #{forward.8} parent=0 // pred_check_branch
    %32 = sbr.rel (0) target = $region37
  $region36: #{forward.8} parent=0 // pred_region
    _
  $region37: #{forward.8} parent=0 // pred_fallthru
    _
  // Predicated region
  $region38: #{forward.8} parent=0 // pred_check
    _
  $region39: #{forward.8} parent=0 // pred_check_branch
    %34 = sbr.rel (0) target = $region41
  $region40: #{forward.8} parent=0 // pred_region
    _
  $region41: #{forward.8} parent=0 // pred_fallthru
    _
  %v35 = vld [vmem:[%s0] sm:$0xff]
  %v36 = vld [vmem:[%s0 + $0x8] sm:$0xff]
  %v37 = vld [vmem:[%s0 + $0x10] sm:$0xff]
  %v38 = vld [vmem:[%s0 + $0x18] sm:$0xff]
  %v39 = vld [vmem:[%s0 + $0x20] sm:$0xff]
  %v40 = vld [vmem:[%s0 + $0x28] sm:$0xff]
  %v41 = vld [vmem:[%s0 + $0x30] sm:$0xff]
  %v42 = vld [vmem:[%s0 + $0x38] sm:$0xff]
  %v43 = vld [vmem:[%s0 + $0x40] sm:$0xff]
  %v44 = vld [vmem:[%s0 + $0x48] sm:$0xff]
  %v45 = vld [vmem:[%s0 + $0x50] sm:$0xff]
  %v46 = vld [vmem:[%s0 + $0x58] sm:$0xff]
  %v47 = vld [vmem:[%s0 + $0x60] sm:$0x3]
  %v48 = vld [vmem:[%s1] sm:$0x1]
  %v50 = vlaneseq
  %v51 = vshrl.u32 %v50, 7
  %v52 = vsub.s32 0, %v51
  %v53 = vrot.slane %v48, %v52
  %v55 = vadd.f32 %v35, %v53
  %v56 = vadd.f32 %v36, %v53
  %v57 = vadd.f32 %v37, %v53
  %v58 = vadd.f32 %v38, %v53
  %v59 = vadd.f32 %v39, %v53
  %v60 = vadd.f32 %v40, %v53
  %v61 = vadd.f32 %v41, %v53
  %v62 = vadd.f32 %v42, %v53
  %v63 = vadd.f32 %v43, %v53
  %v64 = vadd.f32 %v44, %v53
  %v65 = vadd.f32 %v45, %v53
  %v66 = vadd.f32 %v46, %v53
  %v67 = vadd.f32 %v47, %v53
  %v68 = vadd.f32 %v55, %v56
  %v69 = vadd.f32 %v68, %v57
  %v70 = vadd.f32 %v69, %v58
  %v71 = vadd.f32 %v70, %v59
  %v72 = vadd.f32 %v71, %v60
  %v73 = vadd.f32 %v72, %v61
  %v74 = vadd.f32 %v73, %v62
  %v75 = vadd.f32 %v74, %v63
  %v76 = vadd.f32 %v75, %v64
  %v77 = vadd.f32 %v76, %v65
  %v78 = vadd.f32 %v77, %v66
  %vm79 = vcmask 1041408
  %v80 = vsel %vm79, %v67, 0.0
  %v81 = vadd.f32 %v78, %v80
  %v82 = vrot.slane %v81, 4
  %v83 = vadd.f32 %v81, %v82
  %v84 = vrot.slane %v83, 2
  %v85 = vadd.f32 %v83, %v84
  %v86 = vrot.slane %v85, 1
  %v87 = vadd.f32 %v85, %v86
  %v88 = vrcp.pop 98.0
  %v89 = vmul.f32 %v87, %v88
  %v90 = vsub.f32 %v55, %v89
  %v91 = vsub.f32 %v56, %v89
  %v92 = vsub.f32 %v57, %v89
  %v93 = vsub.f32 %v58, %v89
  %v94 = vsub.f32 %v59, %v89
  %v95 = vsub.f32 %v60, %v89
  %v96 = vsub.f32 %v61, %v89
  %v97 = vsub.f32 %v62, %v89
  %v98 = vsub.f32 %v63, %v89
  %v99 = vsub.f32 %v64, %v89
  %v100 = vsub.f32 %v65, %v89
  %v101 = vsub.f32 %v66, %v89
  %v102 = vsub.f32 %v67, %v89
  %v103 = vmul.f32 %v90, %v90
  %v104 = vmul.f32 %v91, %v91
  %v105 = vmul.f32 %v92, %v92
  %v106 = vmul.f32 %v93, %v93
  %v107 = vmul.f32 %v94, %v94
  %v108 = vmul.f32 %v95, %v95
  %v109 = vmul.f32 %v96, %v96
  %v110 = vmul.f32 %v97, %v97
  %v111 = vmul.f32 %v98, %v98
  %v112 = vmul.f32 %v99, %v99
  %v113 = vmul.f32 %v100, %v100
  %v114 = vmul.f32 %v101, %v101
  %v115 = vmul.f32 %v102, %v102
  %v116 = vadd.f32 %v103, %v104
  %v117 = vadd.f32 %v116, %v105
  %v118 = vadd.f32 %v117, %v106
  %v119 = vadd.f32 %v118, %v107
  %v120 = vadd.f32 %v119, %v108
  %v121 = vadd.f32 %v120, %v109
  %v122 = vadd.f32 %v121, %v110
  %v123 = vadd.f32 %v122, %v111
  %v124 = vadd.f32 %v123, %v112
  %v125 = vadd.f32 %v124, %v113
  %v126 = vadd.f32 %v125, %v114
  %v127 = vsel %vm79, %v115, 0.0
  %v128 = vadd.f32 %v126, %v127
  %v129 = vrot.slane %v128, 4
  %v130 = vadd.f32 %v128, %v129
  %v131 = vrot.slane %v130, 2
  %v132 = vadd.f32 %v130, %v131
  %v133 = vrot.slane %v132, 1
  %v134 = vadd.f32 %v132, %v133
  %v135 = vmul.f32 %v134, %v88
  %v136 = vadd.f32 %v135, 1e-05
  %v137 = vrsqrt.pop %v136
  %v138 = vmul.f32 %v90, %v137
  %v139 = vmul.f32 %v91, %v137
  %v140 = vmul.f32 %v92, %v137
  %v141 = vmul.f32 %v93, %v137
  %v142 = vmul.f32 %v94, %v137
  %v143 = vmul.f32 %v95, %v137
  %v144 = vmul.f32 %v96, %v137
  %v145 = vmul.f32 %v97, %v137
  %v146 = vmul.f32 %v98, %v137
  %v147 = vmul.f32 %v99, %v137
  %v148 = vmul.f32 %v100, %v137
  %v149 = vmul.f32 %v101, %v137
  %v150 = vmul.f32 %v102, %v137
  %v151 = vld [vmem:[%s2] sm:$0x1]
  %v153 = vlaneseq
  %v154 = vshrl.u32 %v153, 7
  %v155 = vsub.s32 0, %v154
  %v156 = vrot.slane %v151, %v155
  %v158 = vmul.f32 %v138, %v156
  %v159 = vmul.f32 %v139, %v156
  %v160 = vmul.f32 %v140, %v156
  %v161 = vmul.f32 %v141, %v156
  %v162 = vmul.f32 %v142, %v156
  %v163 = vmul.f32 %v143, %v156
  %v164 = vmul.f32 %v144, %v156
  %v165 = vmul.f32 %v145, %v156
  %v166 = vmul.f32 %v146, %v156
  %v167 = vmul.f32 %v147, %v156
  %v168 = vmul.f32 %v148, %v156
  %v169 = vmul.f32 %v149, %v156
  %v170 = vmul.f32 %v150, %v156
  %v171 = vld [vmem:[%s3] sm:$0x1]
  %v173 = vlaneseq
  %v174 = vshrl.u32 %v173, 7
  %v175 = vsub.s32 0, %v174
  %v176 = vrot.slane %v171, %v175
  %v178 = vadd.f32 %v158, %v176
  %v179 = vadd.f32 %v159, %v176
  %v180 = vadd.f32 %v160, %v176
  %v181 = vadd.f32 %v161, %v176
  %v182 = vadd.f32 %v162, %v176
  %v183 = vadd.f32 %v163, %v176
  %v184 = vadd.f32 %v164, %v176
  %v185 = vadd.f32 %v165, %v176
  %v186 = vadd.f32 %v166, %v176
  %v187 = vadd.f32 %v167, %v176
  %v188 = vadd.f32 %v168, %v176
  %v189 = vadd.f32 %v169, %v176
  %v190 = vadd.f32 %v170, %v176
  %v191 = vmax.f32 %v178, 0.0
  %v192 = vmax.f32 %v179, 0.0
  %v193 = vmax.f32 %v180, 0.0
  %v194 = vmax.f32 %v181, 0.0
  %v195 = vmax.f32 %v182, 0.0
  %v196 = vmax.f32 %v183, 0.0
  %v197 = vmax.f32 %v184, 0.0
  %v198 = vmax.f32 %v185, 0.0
  %v199 = vmax.f32 %v186, 0.0
  %v200 = vmax.f32 %v187, 0.0
  %v201 = vmax.f32 %v188, 0.0
  %v202 = vmax.f32 %v189, 0.0
  %v203 = vmax.f32 %v190, 0.0
  %v204 = vld [vmem:[%s4] sm:$0xff]
  %v205 = vld [vmem:[%s4 + $0x8] sm:$0xff]
  %v206 = vld [vmem:[%s4 + $0x10] sm:$0xff]
  %v207 = vld [vmem:[%s4 + $0x18] sm:$0xff]
  %v208 = vld [vmem:[%s4 + $0x20] sm:$0xff]
  %v209 = vld [vmem:[%s4 + $0x28] sm:$0xff]
  %v210 = vld [vmem:[%s4 + $0x30] sm:$0xff]
  %v211 = vld [vmem:[%s4 + $0x38] sm:$0xff]
  %v212 = vld [vmem:[%s4 + $0x40] sm:$0xff]
  %v213 = vld [vmem:[%s4 + $0x48] sm:$0xff]
  %v214 = vld [vmem:[%s4 + $0x50] sm:$0xff]
  %v215 = vld [vmem:[%s4 + $0x58] sm:$0xff]
  %v216 = vld [vmem:[%s4 + $0x60] sm:$0xff]
  %v217 = vld [vmem:[%s4 + $0x68] sm:$0xff]
  %v218 = vld [vmem:[%s4 + $0x70] sm:$0xff]
  %v219 = vld [vmem:[%s4 + $0x78] sm:$0xff]
  %v220 = vld [vmem:[%s4 + $0x80] sm:$0xff]
  %v221 = vld [vmem:[%s4 + $0x88] sm:$0xff]
  %v222 = vld [vmem:[%s4 + $0x90] sm:$0xff]
  %v223 = vld [vmem:[%s4 + $0x98] sm:$0xff]
  %v224 = vld [vmem:[%s4 + $0xa0] sm:$0xff]
  %v225 = vld [vmem:[%s4 + $0xa8] sm:$0xff]
  %v226 = vld [vmem:[%s4 + $0xb0] sm:$0xff]
  %v227 = vld [vmem:[%s4 + $0xb8] sm:$0xff]
  %v228 = vld [vmem:[%s4 + $0xc0] sm:$0xff]
  %v229 = vld [vmem:[%s4 + $0xc8] sm:$0xff]
  %v230 = vld [vmem:[%s4 + $0xd0] sm:$0xff]
  %v231 = vld [vmem:[%s4 + $0xd8] sm:$0xff]
  %v232 = vld [vmem:[%s4 + $0xe0] sm:$0xff]
  %v233 = vld [vmem:[%s4 + $0xe8] sm:$0xff]
  %v234 = vld [vmem:[%s4 + $0xf0] sm:$0xff]
  %v235 = vld [vmem:[%s4 + $0xf8] sm:$0xff]
  %v236 = vld [vmem:[%s5] sm:$0x3]
  %v238 = vlaneseq
  %v239 = vshrl.u32 %v238, 7
  %v240 = vsub.s32 0, %v239
  %v241 = vrot.slane %v236, %v240
  %v242 = vlaneseq
  %v243 = vshrl.u32 %v242, 7
  %v244 = vsub.s32 1, %v243
  %v245 = vrot.slane %v236, %v244
  %248 = vmatprep.subr.mxu0 %v205
  %249 = vmatpush1.msra.mxu0 %v204
  %250 = vmatprep.subr.mxu0 %v207
  %251 = vmatpush1.msra.mxu0 %v206
  %252 = vmatprep.subr.mxu0 %v209
  %253 = vmatpush1.msra.mxu0 %v208
  %254 = vmatprep.subr.mxu0 %v211
  %255 = vmatpush1.msra.mxu0 %v210
  %256 = vmatprep.subr.mxu0 %v213
  %257 = vmatpush1.msra.mxu0 %v212
  %258 = vmatprep.subr.mxu0 %v215
  %259 = vmatpush1.msra.mxu0 %v214
  %260 = vmatprep.subr.mxu0 %v217
  %261 = vmatpush1.msra.mxu0 %v216
  %262 = vmatprep.subr.mxu0 %v219
  %263 = vmatpush1.msra.mxu0 %v218
  %264 = vmatprep.subr.mxu0 %v221
  %265 = vmatpush1.msra.mxu0 %v220
  %266 = vmatprep.subr.mxu0 %v223
  %267 = vmatpush1.msra.mxu0 %v222
  %268 = vmatprep.subr.mxu0 %v225
  %269 = vmatpush1.msra.mxu0 %v224
  %270 = vmatprep.subr.mxu0 %v227
  %271 = vmatpush1.msra.mxu0 %v226
  %272 = vmatprep.subr.mxu0 %v229
  %273 = vmatpush1.msra.mxu0 %v228
  %274 = vmatprep.subr.mxu0 %v231
  %275 = vmatpush1.msra.mxu0 %v230
  %276 = vmatprep.subr.mxu0 %v233
  %277 = vmatpush1.msra.mxu0 %v232
  %278 = vmatprep.subr.mxu0 %v235
  %279 = vmatpush1.msra.mxu0 %v234
  %280 = vmatprep.subr.mxu0 0.0
  %281 = vmatpush1.msra.mxu0 0.0
  %282 = vmatprep.subr.mxu0 0.0
  %283 = vmatpush1.msra.mxu0 0.0
  %284 = vmatprep.subr.mxu0 0.0
  %285 = vmatpush1.msra.mxu0 0.0
  %286 = vmatprep.subr.mxu0 0.0
  %287 = vmatpush1.msra.mxu0 0.0
  %288 = vmatprep.subr.mxu0 0.0
  %289 = vmatpush1.msra.mxu0 0.0
  %290 = vmatprep.subr.mxu0 0.0
  %291 = vmatpush1.msra.mxu0 0.0
  %292 = vmatprep.subr.mxu0 0.0
  %293 = vmatpush1.msra.mxu0 0.0
  %294 = vmatprep.subr.mxu0 0.0
  %295 = vmatpush1.msra.mxu0 0.0
  %296 = vmatprep.subr.mxu0 0.0
  %297 = vmatpush1.msra.mxu0 0.0
  %298 = vmatprep.subr.mxu0 0.0
  %299 = vmatpush1.msra.mxu0 0.0
  %300 = vmatprep.subr.mxu0 0.0
  %301 = vmatpush1.msra.mxu0 0.0
  %302 = vmatprep.subr.mxu0 0.0
  %303 = vmatpush1.msra.mxu0 0.0
  %304 = vmatprep.subr.mxu0 0.0
  %305 = vmatpush1.msra.mxu0 0.0
  %306 = vmatprep.subr.mxu0 0.0
  %307 = vmatpush1.msra.mxu0 0.0
  %308 = vmatprep.subr.mxu0 0.0
  %309 = vmatpush1.msra.mxu0 0.0
  %310 = vmatprep.subr.mxu0 0.0
  %311 = vmatpush1.msra.mxu0 0.0
  %312 = vmatprep.mubr.f32.mxu0 0.0
  %313 = vmatmul.mubr.f32.gmra.mrb[0].mxu0 %v191
  %v314 = vpop.f32.mrb[0].mxu0
  %v315 = vadd.f32 %v241, %v314
  %v316 = vpop.f32.mrb[0].mxu0
  %v317 = vadd.f32 %v245, %v316
  %318 = vmatprep.mubr.f32.mxu0 0.0
  %319 = vmatmul.mubr.f32.gmra.mrb[0].mxu0 %v192
  %v320 = vpop.f32.mrb[0].mxu0
  %v321 = vadd.f32 %v241, %v320
  %v322 = vpop.f32.mrb[0].mxu0
  %v323 = vadd.f32 %v245, %v322
  %324 = vmatprep.mubr.f32.mxu0 0.0
  %325 = vmatmul.mubr.f32.gmra.mrb[0].mxu0 %v193
  %v326 = vpop.f32.mrb[0].mxu0
  %v327 = vadd.f32 %v241, %v326
  %v328 = vpop.f32.mrb[0].mxu0
  %v329 = vadd.f32 %v245, %v328
  %330 = vmatprep.mubr.f32.mxu0 0.0
  %331 = vmatmul.mubr.f32.gmra.mrb[0].mxu0 %v194
  %v332 = vpop.f32.mrb[0].mxu0
  %v333 = vadd.f32 %v241, %v332
  %v334 = vpop.f32.mrb[0].mxu0
  %v335 = vadd.f32 %v245, %v334
  %336 = vmatprep.mubr.f32.mxu0 0.0
  %337 = vmatmul.mubr.f32.gmra.mrb[0].mxu0 %v195
  %v338 = vpop.f32.mrb[0].mxu0
  %v339 = vadd.f32 %v241, %v338
  %v340 = vpop.f32.mrb[0].mxu0
  %v341 = vadd.f32 %v245, %v340
  %342 = vmatprep.mubr.f32.mxu0 0.0
  %343 = vmatmul.mubr.f32.gmra.mrb[0].mxu0 %v196
  %v344 = vpop.f32.mrb[0].mxu0
  %v345 = vadd.f32 %v241, %v344
  %v346 = vpop.f32.mrb[0].mxu0
  %v347 = vadd.f32 %v245, %v346
  %348 = vmatprep.mubr.f32.mxu0 0.0
  %349 = vmatmul.mubr.f32.gmra.mrb[0].mxu0 %v197
  %v350 = vpop.f32.mrb[0].mxu0
  %v351 = vadd.f32 %v241, %v350
  %v352 = vpop.f32.mrb[0].mxu0
  %v353 = vadd.f32 %v245, %v352
  %354 = vmatprep.mubr.f32.mxu0 0.0
  %355 = vmatmul.mubr.f32.gmra.mrb[0].mxu0 %v198
  %v356 = vpop.f32.mrb[0].mxu0
  %v357 = vadd.f32 %v241, %v356
  %v358 = vpop.f32.mrb[0].mxu0
  %v359 = vadd.f32 %v245, %v358
  %360 = vmatprep.mubr.f32.mxu0 0.0
  %361 = vmatmul.mubr.f32.gmra.mrb[0].mxu0 %v199
  %v362 = vpop.f32.mrb[0].mxu0
  %v363 = vadd.f32 %v241, %v362
  %v364 = vpop.f32.mrb[0].mxu0
  %v365 = vadd.f32 %v245, %v364
  %366 = vmatprep.mubr.f32.mxu0 0.0
  %367 = vmatmul.mubr.f32.gmra.mrb[0].mxu0 %v200
  %v368 = vpop.f32.mrb[0].mxu0
  %v369 = vadd.f32 %v241, %v368
  %v370 = vpop.f32.mrb[0].mxu0
  %v371 = vadd.f32 %v245, %v370
  %372 = vmatprep.mubr.f32.mxu0 0.0
  %373 = vmatmul.mubr.f32.gmra.mrb[0].mxu0 %v201
  %v374 = vpop.f32.mrb[0].mxu0
  %v375 = vadd.f32 %v241, %v374
  %v376 = vpop.f32.mrb[0].mxu0
  %v377 = vadd.f32 %v245, %v376
  %378 = vmatprep.mubr.f32.mxu0 0.0
  %379 = vmatmul.mubr.f32.gmra.mrb[0].mxu0 %v202
  %v380 = vpop.f32.mrb[0].mxu0
  %v381 = vadd.f32 %v241, %v380
  %v382 = vpop.f32.mrb[0].mxu0
  %v383 = vadd.f32 %v245, %v382
  %384 = vmatprep.mubr.f32.mxu0 0.0
  %385 = vmatmul.mubr.f32.gmra.mrb[0].mxu0 %v203
  %v386 = vpop.f32.mrb[0].mxu0
  %v387 = vadd.f32 %v241, %v386
  %v388 = vpop.f32.mrb[0].mxu0
  %v389 = vadd.f32 %v245, %v388
  %390 = vdwg.mxu0
  %v391 = vadd.f32 %v315, %v321
  %v392 = vadd.f32 %v391, %v327
  %v393 = vadd.f32 %v392, %v333
  %v394 = vadd.f32 %v393, %v339
  %v395 = vadd.f32 %v394, %v345
  %v396 = vadd.f32 %v395, %v351
  %v397 = vadd.f32 %v396, %v357
  %v398 = vadd.f32 %v397, %v363
  %v399 = vadd.f32 %v398, %v369
  %v400 = vadd.f32 %v399, %v375
  %v401 = vadd.f32 %v400, %v381
  %v402 = vsel %vm79, %v387, 0.0
  %v403 = vadd.f32 %v401, %v402
  %v404 = vrot.slane %v403, 4
  %v405 = vadd.f32 %v403, %v404
  %v406 = vrot.slane %v405, 2
  %v407 = vadd.f32 %v405, %v406
  %v408 = vrot.slane %v407, 1
  %v409 = vadd.f32 %v407, %v408
  %v410 = vadd.f32 %v317, %v323
  %v411 = vadd.f32 %v410, %v329
  %v412 = vadd.f32 %v411, %v335
  %v413 = vadd.f32 %v412, %v341
  %v414 = vadd.f32 %v413, %v347
  %v415 = vadd.f32 %v414, %v353
  %v416 = vadd.f32 %v415, %v359
  %v417 = vadd.f32 %v416, %v365
  %v418 = vadd.f32 %v417, %v371
  %v419 = vadd.f32 %v418, %v377
  %v420 = vadd.f32 %v419, %v383
  %v421 = vsel %vm79, %v389, 0.0
  %v422 = vadd.f32 %v420, %v421
  %v423 = vrot.slane %v422, 4
  %v424 = vadd.f32 %v422, %v423
  %v425 = vrot.slane %v424, 2
  %v426 = vadd.f32 %v424, %v425
  %v427 = vrot.slane %v426, 1
  %v428 = vadd.f32 %v426, %v427
  %430 = vrot.lane.b32.xlu0 %v409, 64
  %v431 = vpop.permute.xlu0 %430
  %v433 = vadd.f32 %v409, %v431
  %v434 = vadd.f32 %v433, %v428
  %436 = vrot.lane.b32.xlu0 %v428, 64
  %v437 = vpop.permute.xlu0 %436
  %v439 = vadd.f32 %v434, %v437
  %v440 = vrcp.pop 392.0
  %v441 = vmul.f32 %v439, %v440
  %443 = vrot.lane.b32.xlu0 %v441, 64
  %v444 = vpop.permute.xlu0 %443
  %vm446 = vcmask 523264
  %v447 = vsel %vm446, %v441, %v444
  %v448 = vlaneseq
  %v449 = vshrl.u32 %v448, 7
  %v450 = vsub.s32 0, %v449
  %v451 = vrot.slane %v447, %v450
  %v452 = vsub.f32 %v315, %v451
  %v453 = vsub.f32 %v317, %v451
  %v454 = vsub.f32 %v321, %v451
  %v455 = vsub.f32 %v323, %v451
  %v456 = vsub.f32 %v327, %v451
  %v457 = vsub.f32 %v329, %v451
  %v458 = vsub.f32 %v333, %v451
  %v459 = vsub.f32 %v335, %v451
  %v460 = vsub.f32 %v339, %v451
  %v461 = vsub.f32 %v341, %v451
  %v462 = vsub.f32 %v345, %v451
  %v463 = vsub.f32 %v347, %v451
  %v464 = vsub.f32 %v351, %v451
  %v465 = vsub.f32 %v353, %v451
  %v466 = vsub.f32 %v357, %v451
  %v467 = vsub.f32 %v359, %v451
  %v468 = vsub.f32 %v363, %v451
  %v469 = vsub.f32 %v365, %v451
  %v470 = vsub.f32 %v369, %v451
  %v471 = vsub.f32 %v371, %v451
  %v472 = vsub.f32 %v375, %v451
  %v473 = vsub.f32 %v377, %v451
  %v474 = vsub.f32 %v381, %v451
  %v475 = vsub.f32 %v383, %v451
  %v476 = vsub.f32 %v387, %v451
  %v477 = vsub.f32 %v389, %v451
  %v478 = vmul.f32 %v452, %v452
  %v479 = vmul.f32 %v453, %v453
  %v480 = vmul.f32 %v454, %v454
  %v481 = vmul.f32 %v455, %v455
  %v482 = vmul.f32 %v456, %v456
  %v483 = vmul.f32 %v457, %v457
  %v484 = vmul.f32 %v458, %v458
  %v485 = vmul.f32 %v459, %v459
  %v486 = vmul.f32 %v460, %v460
  %v487 = vmul.f32 %v461, %v461
  %v488 = vmul.f32 %v462, %v462
  %v489 = vmul.f32 %v463, %v463
  %v490 = vmul.f32 %v464, %v464
  %v491 = vmul.f32 %v465, %v465
  %v492 = vmul.f32 %v466, %v466
  %v493 = vmul.f32 %v467, %v467
  %v494 = vmul.f32 %v468, %v468
  %v495 = vmul.f32 %v469, %v469
  %v496 = vmul.f32 %v470, %v470
  %v497 = vmul.f32 %v471, %v471
  %v498 = vmul.f32 %v472, %v472
  %v499 = vmul.f32 %v473, %v473
  %v500 = vmul.f32 %v474, %v474
  %v501 = vmul.f32 %v475, %v475
  %v502 = vmul.f32 %v476, %v476
  %v503 = vmul.f32 %v477, %v477
  %v504 = vadd.f32 %v478, %v480
  %v505 = vadd.f32 %v504, %v482
  %v506 = vadd.f32 %v505, %v484
  %v507 = vadd.f32 %v506, %v486
  %v508 = vadd.f32 %v507, %v488
  %v509 = vadd.f32 %v508, %v490
  %v510 = vadd.f32 %v509, %v492
  %v511 = vadd.f32 %v510, %v494
  %v512 = vadd.f32 %v511, %v496
  %v513 = vadd.f32 %v512, %v498
  %v514 = vadd.f32 %v513, %v500
  %v515 = vsel %vm79, %v502, 0.0
  %v516 = vadd.f32 %v514, %v515
  %v517 = vrot.slane %v516, 4
  %v518 = vadd.f32 %v516, %v517
  %v519 = vrot.slane %v518, 2
  %v520 = vadd.f32 %v518, %v519
  %v521 = vrot.slane %v520, 1
  %v522 = vadd.f32 %v520, %v521
  %v523 = vadd.f32 %v479, %v481
  %v524 = vadd.f32 %v523, %v483
  %v525 = vadd.f32 %v524, %v485
  %v526 = vadd.f32 %v525, %v487
  %v527 = vadd.f32 %v526, %v489
  %v528 = vadd.f32 %v527, %v491
  %v529 = vadd.f32 %v528, %v493
  %v530 = vadd.f32 %v529, %v495
  %v531 = vadd.f32 %v530, %v497
  %v532 = vadd.f32 %v531, %v499
  %v533 = vadd.f32 %v532, %v501
  %v534 = vsel %vm79, %v503, 0.0
  %v535 = vadd.f32 %v533, %v534
  %v536 = vrot.slane %v535, 4
  %v537 = vadd.f32 %v535, %v536
  %v538 = vrot.slane %v537, 2
  %v539 = vadd.f32 %v537, %v538
  %v540 = vrot.slane %v539, 1
  %v541 = vadd.f32 %v539, %v540
  %543 = vrot.lane.b32.xlu0 %v522, 64
  %v544 = vpop.permute.xlu0 %543
  %v546 = vadd.f32 %v522, %v544
  %v547 = vadd.f32 %v546, %v541
  %549 = vrot.lane.b32.xlu0 %v541, 64
  %v550 = vpop.permute.xlu0 %549
  %v552 = vadd.f32 %v547, %v550
  %v553 = vmul.f32 %v552, %v440
  %555 = vrot.lane.b32.xlu0 %v553, 64
  %v556 = vpop.permute.xlu0 %555
  %v558 = vsel %vm446, %v553, %v556
  %v559 = vadd.f32 %v558, 1e-05
  %v560 = vrsqrt.pop %v559
  %v561 = vlaneseq
  %v562 = vshrl.u32 %v561, 7
  %v563 = vsub.s32 0, %v562
  %v564 = vrot.slane %v560, %v563
  %v565 = vmul.f32 %v452, %v564
  %v566 = vmul.f32 %v453, %v564
  %v567 = vmul.f32 %v454, %v564
  %v568 = vmul.f32 %v455, %v564
  %v569 = vmul.f32 %v456, %v564
  %v570 = vmul.f32 %v457, %v564
  %v571 = vmul.f32 %v458, %v564
  %v572 = vmul.f32 %v459, %v564
  %v573 = vmul.f32 %v460, %v564
  %v574 = vmul.f32 %v461, %v564
  %v575 = vmul.f32 %v462, %v564
  %v576 = vmul.f32 %v463, %v564
  %v577 = vmul.f32 %v464, %v564
  %v578 = vmul.f32 %v465, %v564
  %v579 = vmul.f32 %v466, %v564
  %v580 = vmul.f32 %v467, %v564
  %v581 = vmul.f32 %v468, %v564
  %v582 = vmul.f32 %v469, %v564
  %v583 = vmul.f32 %v470, %v564
  %v584 = vmul.f32 %v471, %v564
  %v585 = vmul.f32 %v472, %v564
  %v586 = vmul.f32 %v473, %v564
  %v587 = vmul.f32 %v474, %v564
  %v588 = vmul.f32 %v475, %v564
  %v589 = vmul.f32 %v476, %v564
  %v590 = vmul.f32 %v477, %v564
  %v591 = vld [vmem:[%s6] sm:$0x3]
  %v593 = vlaneseq
  %v594 = vshrl.u32 %v593, 7
  %v595 = vsub.s32 0, %v594
  %v596 = vrot.slane %v591, %v595
  %v597 = vlaneseq
  %v598 = vshrl.u32 %v597, 7
  %v599 = vsub.s32 1, %v598
  %v600 = vrot.slane %v591, %v599
  %v603 = vmul.f32 %v565, %v596
  %v604 = vmul.f32 %v566, %v600
  %v605 = vmul.f32 %v567, %v596
  %v606 = vmul.f32 %v568, %v600
  %v607 = vmul.f32 %v569, %v596
  %v608 = vmul.f32 %v570, %v600
  %v609 = vmul.f32 %v571, %v596
  %v610 = vmul.f32 %v572, %v600
  %v611 = vmul.f32 %v573, %v596
  %v612 = vmul.f32 %v574, %v600
  %v613 = vmul.f32 %v575, %v596
  %v614 = vmul.f32 %v576, %v600
  %v615 = vmul.f32 %v577, %v596
  %v616 = vmul.f32 %v578, %v600
  %v617 = vmul.f32 %v579, %v596
  %v618 = vmul.f32 %v580, %v600
  %v619 = vmul.f32 %v581, %v596
  %v620 = vmul.f32 %v582, %v600
  %v621 = vmul.f32 %v583, %v596
  %v622 = vmul.f32 %v584, %v600
  %v623 = vmul.f32 %v585, %v596
  %v624 = vmul.f32 %v586, %v600
  %v625 = vmul.f32 %v587, %v596
  %v626 = vmul.f32 %v588, %v600
  %v627 = vmul.f32 %v589, %v596
  %v628 = vmul.f32 %v590, %v600
  %v629 = vld [vmem:[%s7] sm:$0x3]
  %v631 = vlaneseq
  %v632 = vshrl.u32 %v631, 7
  %v633 = vsub.s32 0, %v632
  %v634 = vrot.slane %v629, %v633
  %v635 = vlaneseq
  %v636 = vshrl.u32 %v635, 7
  %v637 = vsub.s32 1, %v636
  %v638 = vrot.slane %v629, %v637
  %v641 = vadd.f32 %v603, %v634
  %v642 = vadd.f32 %v604, %v638
  %v643 = vadd.f32 %v605, %v634
  %v644 = vadd.f32 %v606, %v638
  %v645 = vadd.f32 %v607, %v634
  %v646 = vadd.f32 %v608, %v638
  %v647 = vadd.f32 %v609, %v634
  %v648 = vadd.f32 %v610, %v638
  %v649 = vadd.f32 %v611, %v634
  %v650 = vadd.f32 %v612, %v638
  %v651 = vadd.f32 %v613, %v634
  %v652 = vadd.f32 %v614, %v638
  %v653 = vadd.f32 %v615, %v634
  %v654 = vadd.f32 %v616, %v638
  %v655 = vadd.f32 %v617, %v634
  %v656 = vadd.f32 %v618, %v638
  %v657 = vadd.f32 %v619, %v634
  %v658 = vadd.f32 %v620, %v638
  %v659 = vadd.f32 %v621, %v634
  %v660 = vadd.f32 %v622, %v638
  %v661 = vadd.f32 %v623, %v634
  %v662 = vadd.f32 %v624, %v638
  %v663 = vadd.f32 %v625, %v634
  %v664 = vadd.f32 %v626, %v638
  %v665 = vadd.f32 %v627, %v634
  %v666 = vadd.f32 %v628, %v638
  %v667 = vmax.f32 %v641, 0.0
  %v668 = vmax.f32 %v642, 0.0
  %v669 = vmax.f32 %v643, 0.0
  %v670 = vmax.f32 %v644, 0.0
  %v671 = vmax.f32 %v645, 0.0
  %v672 = vmax.f32 %v646, 0.0
  %v673 = vmax.f32 %v647, 0.0
  %v674 = vmax.f32 %v648, 0.0
  %v675 = vmax.f32 %v649, 0.0
  %v676 = vmax.f32 %v650, 0.0
  %v677 = vmax.f32 %v651, 0.0
  %v678 = vmax.f32 %v652, 0.0
  %v679 = vmax.f32 %v653, 0.0
  %v680 = vmax.f32 %v654, 0.0
  %v681 = vmax.f32 %v655, 0.0
  %v682 = vmax.f32 %v656, 0.0
  %v683 = vmax.f32 %v657, 0.0
  %v684 = vmax.f32 %v658, 0.0
  %v685 = vmax.f32 %v659, 0.0
  %v686 = vmax.f32 %v660, 0.0
  %v687 = vmax.f32 %v661, 0.0
  %v688 = vmax.f32 %v662, 0.0
  %v689 = vmax.f32 %v663, 0.0
  %v690 = vmax.f32 %v664, 0.0
  %v691 = vmax.f32 %v665, 0.0
  %v692 = vmax.f32 %v666, 0.0
  %v693 = vld [vmem:[%s8] sm:$0xff]
  %v694 = vld [vmem:[%s8 + $0x8] sm:$0xff]
  %v695 = vld [vmem:[%s8 + $0x10] sm:$0xff]
  %v696 = vld [vmem:[%s8 + $0x18] sm:$0xff]
  %v697 = vld [vmem:[%s8 + $0x20] sm:$0xff]
  %v698 = vld [vmem:[%s8 + $0x28] sm:$0xff]
  %v699 = vld [vmem:[%s8 + $0x30] sm:$0xff]
  %v700 = vld [vmem:[%s8 + $0x38] sm:$0xff]
  %v701 = vld [vmem:[%s8 + $0x40] sm:$0xff]
  %v702 = vld [vmem:[%s8 + $0x48] sm:$0xff]
  %v703 = vld [vmem:[%s8 + $0x50] sm:$0xff]
  %v704 = vld [vmem:[%s8 + $0x58] sm:$0xff]
  %v705 = vld [vmem:[%s8 + $0x60] sm:$0xff]
  %v706 = vld [vmem:[%s8 + $0x68] sm:$0xff]
  %v707 = vld [vmem:[%s8 + $0x70] sm:$0xff]
  %v708 = vld [vmem:[%s8 + $0x78] sm:$0xff]
  %v709 = vld [vmem:[%s8 + $0x80] sm:$0xff]
  %v710 = vld [vmem:[%s8 + $0x88] sm:$0xff]
  %v711 = vld [vmem:[%s8 + $0x90] sm:$0xff]
  %v712 = vld [vmem:[%s8 + $0x98] sm:$0xff]
  %v713 = vld [vmem:[%s8 + $0xa0] sm:$0xff]
  %v714 = vld [vmem:[%s8 + $0xa8] sm:$0xff]
  %v715 = vld [vmem:[%s8 + $0xb0] sm:$0xff]
  %v716 = vld [vmem:[%s8 + $0xb8] sm:$0xff]
  %v717 = vld [vmem:[%s8 + $0xc0] sm:$0xff]
  %v718 = vld [vmem:[%s8 + $0xc8] sm:$0xff]
  %v719 = vld [vmem:[%s8 + $0xd0] sm:$0xff]
  %v720 = vld [vmem:[%s8 + $0xd8] sm:$0xff]
  %v721 = vld [vmem:[%s8 + $0xe0] sm:$0xff]
  %v722 = vld [vmem:[%s8 + $0xe8] sm:$0xff]
  %v723 = vld [vmem:[%s8 + $0xf0] sm:$0xff]
  %v724 = vld [vmem:[%s8 + $0xf8] sm:$0xff]
  %v725 = vld [vmem:[%s9] sm:$0x1]
  %v727 = vlaneseq
  %v728 = vshrl.u32 %v727, 7
  %v729 = vsub.s32 0, %v728
  %v730 = vrot.slane %v725, %v729
  %732 = vmatprep.subr.mxu0 0.0
  %733 = vmatpush1.msra.mxu0 %v693
  %734 = vmatprep.subr.mxu0 0.0
  %735 = vmatpush1.msra.mxu0 %v694
  %736 = vmatprep.subr.mxu0 0.0
  %737 = vmatpush1.msra.mxu0 %v695
  %738 = vmatprep.subr.mxu0 0.0
  %739 = vmatpush1.msra.mxu0 %v696
  %740 = vmatprep.subr.mxu0 0.0
  %741 = vmatpush1.msra.mxu0 %v697
  %742 = vmatprep.subr.mxu0 0.0
  %743 = vmatpush1.msra.mxu0 %v698
  %744 = vmatprep.subr.mxu0 0.0
  %745 = vmatpush1.msra.mxu0 %v699
  %746 = vmatprep.subr.mxu0 0.0
  %747 = vmatpush1.msra.mxu0 %v700
  %748 = vmatprep.subr.mxu0 0.0
  %749 = vmatpush1.msra.mxu0 %v701
  %750 = vmatprep.subr.mxu0 0.0
  %751 = vmatpush1.msra.mxu0 %v702
  %752 = vmatprep.subr.mxu0 0.0
  %753 = vmatpush1.msra.mxu0 %v703
  %754 = vmatprep.subr.mxu0 0.0
  %755 = vmatpush1.msra.mxu0 %v704
  %756 = vmatprep.subr.mxu0 0.0
  %757 = vmatpush1.msra.mxu0 %v705
  %758 = vmatprep.subr.mxu0 0.0
  %759 = vmatpush1.msra.mxu0 %v706
  %760 = vmatprep.subr.mxu0 0.0
  %761 = vmatpush1.msra.mxu0 %v707
  %762 = vmatprep.subr.mxu0 0.0
  %763 = vmatpush1.msra.mxu0 %v708
  %764 = vmatprep.subr.mxu0 0.0
  %765 = vmatpush1.msra.mxu0 %v709
  %766 = vmatprep.subr.mxu0 0.0
  %767 = vmatpush1.msra.mxu0 %v710
  %768 = vmatprep.subr.mxu0 0.0
  %769 = vmatpush1.msra.mxu0 %v711
  %770 = vmatprep.subr.mxu0 0.0
  %771 = vmatpush1.msra.mxu0 %v712
  %772 = vmatprep.subr.mxu0 0.0
  %773 = vmatpush1.msra.mxu0 %v713
  %774 = vmatprep.subr.mxu0 0.0
  %775 = vmatpush1.msra.mxu0 %v714
  %776 = vmatprep.subr.mxu0 0.0
  %777 = vmatpush1.msra.mxu0 %v715
  %778 = vmatprep.subr.mxu0 0.0
  %779 = vmatpush1.msra.mxu0 %v716
  %780 = vmatprep.subr.mxu0 0.0
  %781 = vmatpush1.msra.mxu0 %v717
  %782 = vmatprep.subr.mxu0 0.0
  %783 = vmatpush1.msra.mxu0 %v718
  %784 = vmatprep.subr.mxu0 0.0
  %785 = vmatpush1.msra.mxu0 %v719
  %786 = vmatprep.subr.mxu0 0.0
  %787 = vmatpush1.msra.mxu0 %v720
  %788 = vmatprep.subr.mxu0 0.0
  %789 = vmatpush1.msra.mxu0 %v721
  %790 = vmatprep.subr.mxu0 0.0
  %791 = vmatpush1.msra.mxu0 %v722
  %792 = vmatprep.subr.mxu0 0.0
  %793 = vmatpush1.msra.mxu0 %v723
  %794 = vmatprep.subr.mxu0 0.0
  %795 = vmatpush1.msra.mxu0 %v724
  %796 = vmatprep.mubr.f32.mxu0 %v668
  %797 = vmatmul.mubr.f32.gmra.mrb[0].mxu0 %v667
  %v798 = vpop.f32.mrb[0].mxu0
  %v799 = vadd.f32 %v730, %v798
  %v800 = vpop.f32.mrb[0].mxu0
  %801 = vmatprep.mubr.f32.mxu0 %v670
  %802 = vmatmul.mubr.f32.gmra.mrb[0].mxu0 %v669
  %v803 = vpop.f32.mrb[0].mxu0
  %v804 = vadd.f32 %v730, %v803
  %v805 = vpop.f32.mrb[0].mxu0
  %806 = vmatprep.mubr.f32.mxu0 %v672
  %807 = vmatmul.mubr.f32.gmra.mrb[0].mxu0 %v671
  %v808 = vpop.f32.mrb[0].mxu0
  %v809 = vadd.f32 %v730, %v808
  %v810 = vpop.f32.mrb[0].mxu0
  %811 = vmatprep.mubr.f32.mxu0 %v674
  %812 = vmatmul.mubr.f32.gmra.mrb[0].mxu0 %v673
  %v813 = vpop.f32.mrb[0].mxu0
  %v814 = vadd.f32 %v730, %v813
  %v815 = vpop.f32.mrb[0].mxu0
  %816 = vmatprep.mubr.f32.mxu0 %v676
  %817 = vmatmul.mubr.f32.gmra.mrb[0].mxu0 %v675
  %v818 = vpop.f32.mrb[0].mxu0
  %v819 = vadd.f32 %v730, %v818
  %v820 = vpop.f32.mrb[0].mxu0
  %821 = vmatprep.mubr.f32.mxu0 %v678
  %822 = vmatmul.mubr.f32.gmra.mrb[0].mxu0 %v677
  %v823 = vpop.f32.mrb[0].mxu0
  %v824 = vadd.f32 %v730, %v823
  %v825 = vpop.f32.mrb[0].mxu0
  %826 = vmatprep.mubr.f32.mxu0 %v680
  %827 = vmatmul.mubr.f32.gmra.mrb[0].mxu0 %v679
  %v828 = vpop.f32.mrb[0].mxu0
  %v829 = vadd.f32 %v730, %v828
  %v830 = vpop.f32.mrb[0].mxu0
  %831 = vmatprep.mubr.f32.mxu0 %v682
  %832 = vmatmul.mubr.f32.gmra.mrb[0].mxu0 %v681
  %v833 = vpop.f32.mrb[0].mxu0
  %v834 = vadd.f32 %v730, %v833
  %v835 = vpop.f32.mrb[0].mxu0
  %836 = vmatprep.mubr.f32.mxu0 %v684
  %837 = vmatmul.mubr.f32.gmra.mrb[0].mxu0 %v683
  %v838 = vpop.f32.mrb[0].mxu0
  %v839 = vadd.f32 %v730, %v838
  %v840 = vpop.f32.mrb[0].mxu0
  %841 = vmatprep.mubr.f32.mxu0 %v686
  %842 = vmatmul.mubr.f32.gmra.mrb[0].mxu0 %v685
  %v843 = vpop.f32.mrb[0].mxu0
  %v844 = vadd.f32 %v730, %v843
  %v845 = vpop.f32.mrb[0].mxu0
  %846 = vmatprep.mubr.f32.mxu0 %v688
  %847 = vmatmul.mubr.f32.gmra.mrb[0].mxu0 %v687
  %v848 = vpop.f32.mrb[0].mxu0
  %v849 = vadd.f32 %v730, %v848
  %v850 = vpop.f32.mrb[0].mxu0
  %851 = vmatprep.mubr.f32.mxu0 %v690
  %852 = vmatmul.mubr.f32.gmra.mrb[0].mxu0 %v689
  %v853 = vpop.f32.mrb[0].mxu0
  %v854 = vadd.f32 %v730, %v853
  %v855 = vpop.f32.mrb[0].mxu0
  %856 = vmatprep.mubr.f32.mxu0 %v692
  %857 = vmatmul.mubr.f32.gmra.mrb[0].mxu0 %v691
  %v858 = vpop.f32.mrb[0].mxu0
  %v859 = vadd.f32 %v730, %v858
  %v860 = vpop.f32.mrb[0].mxu0
  %861 = vdwg.mxu0
  %v862 = vtanh.pop %v799
  %v863 = vtanh.pop %v804
  %v864 = vtanh.pop %v809
  %v865 = vtanh.pop %v814
  %v866 = vtanh.pop %v819
  %v867 = vtanh.pop %v824
  %v868 = vtanh.pop %v829
  %v869 = vtanh.pop %v834
  %v870 = vtanh.pop %v839
  %v871 = vtanh.pop %v844
  %v872 = vtanh.pop %v849
  %v873 = vtanh.pop %v854
  %v874 = vtanh.pop %v859
  %vm875 = vcmask 130048
  %876 = vst.msk [vmem:[%s10] sm:$0xff] %vm875, %v862
  %877 = vst.msk [vmem:[%s10 + $0x8] sm:$0xff] %vm875, %v863
  %878 = vst.msk [vmem:[%s10 + $0x10] sm:$0xff] %vm875, %v864
  %879 = vst.msk [vmem:[%s10 + $0x18] sm:$0xff] %vm875, %v865
  %880 = vst.msk [vmem:[%s10 + $0x20] sm:$0xff] %vm875, %v866
  %881 = vst.msk [vmem:[%s10 + $0x28] sm:$0xff] %vm875, %v867
  %882 = vst.msk [vmem:[%s10 + $0x30] sm:$0xff] %vm875, %v868
  %883 = vst.msk [vmem:[%s10 + $0x38] sm:$0xff] %vm875, %v869
  %884 = vst.msk [vmem:[%s10 + $0x40] sm:$0xff] %vm875, %v870
  %885 = vst.msk [vmem:[%s10 + $0x48] sm:$0xff] %vm875, %v871
  %886 = vst.msk [vmem:[%s10 + $0x50] sm:$0xff] %vm875, %v872
  %887 = vst.msk [vmem:[%s10 + $0x58] sm:$0xff] %vm875, %v873
  %vm888 = vcmask 123904
  %889 = vst.msk [vmem:[%s10 + $0x60] sm:$0x3] %vm888, %v874
  // Predicated region
  $region42: #{forward.8} parent=0 // pred_check
    _
  $region43: #{forward.8} parent=0 // pred_check_branch
    %891 = sbr.rel (0) target = $region45
  $region44: #{forward.8} parent=0 // pred_region
    _
  $region45: #{forward.8} parent=0 // pred_fallthru
    _
  // Predicated region
  $region46: #{forward.8} parent=0 // pred_check
    _
  $region47: #{forward.8} parent=0 // pred_check_branch
    %893 = sbr.rel (0) target = $region49
  $region48: #{forward.8} parent=0 // pred_region
    _
  $region49: #{forward.8} parent=0 // pred_fallthru
    _

// kernel: forward.7
$region0: #{forward.7}
  #allocation0 [shape = 'u32[]', space=smem, size = 0x4, offset = 0x4, fixed_abs, tag = 'smem constant byte address 0x4 - core index']
  #allocation1 [shape = 'u32[144,128]{1,0:T(1,128)}', space=vmem, size = 0x12000, scoped, tag = 'internal scratch']
  %s0 = inlined_call_operand.vmem [shape: f32[18,1152], index: 0, kind: input, shape index: {}]
  %s1 = inlined_call_operand.vmem [shape: f32[1152,256], index: 1, kind: input, shape index: {}]
  %s2 = inlined_call_operand.vmem [shape: f32[1,256], index: 2, kind: input, shape index: {}]
  %s3 = inlined_call_operand.vmem [shape: f32[1,256], index: 3, kind: input, shape index: {}]
  %s4 = inlined_call_operand.vmem [shape: f32[1,256], index: 4, kind: input, shape index: {}]
  %s5 = inlined_call_operand.vmem [shape: f32[256,1152], index: 5, kind: input, shape index: {}]
  %s6 = inlined_call_operand.vmem [shape: f32[18,1152], index: 6, kind: output, shape index: {}]
  %s7 = sld [smem:[#allocation0]]
  $region34: #{forward.7} parent=0
    _
  %s9 = ssub.s32 1, %s7
  %s10 = scalar_select 0, %s9, %s7
  // Predicated region
  $region2: #{forward.7} parent=0 // pred_check
    _
  $region3: #{forward.7} parent=0 // pred_check_branch
    %12 = sbr.rel (0) target = $region5
  $region4: #{forward.7} parent=0 // pred_region
    _
  $region5: #{forward.7} parent=0 // pred_fallthru
    _
  // Predicated region
  $region6: #{forward.7} parent=0 // pred_check
    _
  $region7: #{forward.7} parent=0 // pred_check_branch
    %14 = sbr.rel (0) target = $region9
  $region8: #{forward.7} parent=0 // pred_region
    _
  $region9: #{forward.7} parent=0 // pred_fallthru
    _
  // Predicated region
  $region10: #{forward.7} parent=0 // pred_check
    _
  $region11: #{forward.7} parent=0 // pred_check_branch
    %16 = sbr.rel (0) target = $region13
  $region12: #{forward.7} parent=0 // pred_region
    _
  $region13: #{forward.7} parent=0 // pred_fallthru
    _
  // Predicated region
  $region14: #{forward.7} parent=0 // pred_check
    _
  $region15: #{forward.7} parent=0 // pred_check_branch
    %18 = sbr.rel (0) target = $region17
  $region16: #{forward.7} parent=0 // pred_region
    _
  $region17: #{forward.7} parent=0 // pred_fallthru
    _
  // Predicated region
  $region18: #{forward.7} parent=0 // pred_check
    _
  $region19: #{forward.7} parent=0 // pred_check_branch
    %20 = sbr.rel (0) target = $region21
  $region20: #{forward.7} parent=0 // pred_region
    _
  $region21: #{forward.7} parent=0 // pred_fallthru
    _
  // Predicated region
  $region22: #{forward.7} parent=0 // pred_check
    _
  $region23: #{forward.7} parent=0 // pred_check_branch
    %22 = sbr.rel (0) target = $region25
  $region24: #{forward.7} parent=0 // pred_region
    _
  $region25: #{forward.7} parent=0 // pred_fallthru
    _
  %v23 = vld [vmem:[%s0] sm:$0xff]
  %v24 = vld [vmem:[%s0 + $0x8] sm:$0xff]
  %v25 = vld [vmem:[%s0 + $0x10] sm:$0xff]
  %v26 = vld [vmem:[%s0 + $0x18] sm:$0xff]
  %v27 = vld [vmem:[%s0 + $0x20] sm:$0xff]
  %v28 = vld [vmem:[%s0 + $0x28] sm:$0xff]
  %v29 = vld [vmem:[%s0 + $0x30] sm:$0xff]
  %v30 = vld [vmem:[%s0 + $0x38] sm:$0xff]
  %v31 = vld [vmem:[%s0 + $0x40] sm:$0xff]
  %v32 = vld [vmem:[%s0 + $0x48] sm:$0xff]
  %v33 = vld [vmem:[%s0 + $0x50] sm:$0xff]
  %v34 = vld [vmem:[%s0 + $0x58] sm:$0xff]
  %v35 = vld [vmem:[%s0 + $0x60] sm:$0xff]
  %v36 = vld [vmem:[%s0 + $0x68] sm:$0xff]
  %v37 = vld [vmem:[%s0 + $0x70] sm:$0xff]
  %v38 = vld [vmem:[%s0 + $0x78] sm:$0xff]
  %v39 = vld [vmem:[%s0 + $0x80] sm:$0xff]
  %v40 = vld [vmem:[%s0 + $0x88] sm:$0xff]
  %v41 = vld [vmem:[%s0 + $0x90] sm:$0x3]
  %v42 = vld [vmem:[%s0 + $0x98] sm:$0x3]
  %v43 = vld [vmem:[%s0 + $0xa0] sm:$0x3]
  %v44 = vld [vmem:[%s0 + $0xa8] sm:$0x3]
  %v45 = vld [vmem:[%s0 + $0xb0] sm:$0x3]
  %v46 = vld [vmem:[%s0 + $0xb8] sm:$0x3]
  %v47 = vld [vmem:[%s0 + $0xc0] sm:$0x3]
  %v48 = vld [vmem:[%s0 + $0xc8] sm:$0x3]
  %v49 = vld [vmem:[%s0 + $0xd0] sm:$0x3]
  %v50 = vld [vmem:[%s1] sm:$0xff]
  %v51 = vld [vmem:[%s1 + $0x8] sm:$0xff]
  %v52 = vld [vmem:[%s1 + $0x10] sm:$0xff]
  %v53 = vld [vmem:[%s1 + $0x18] sm:$0xff]
  %v54 = vld [vmem:[%s1 + $0x20] sm:$0xff]
  %v55 = vld [vmem:[%s1 + $0x28] sm:$0xff]
  %v56 = vld [vmem:[%s1 + $0x30] sm:$0xff]
  %v57 = vld [vmem:[%s1 + $0x38] sm:$0xff]
  %v58 = vld [vmem:[%s1 + $0x40] sm:$0xff]
  %v59 = vld [vmem:[%s1 + $0x48] sm:$0xff]
  %v60 = vld [vmem:[%s1 + $0x50] sm:$0xff]
  %v61 = vld [vmem:[%s1 + $0x58] sm:$0xff]
  %v62 = vld [vmem:[%s1 + $0x60] sm:$0xff]
  %v63 = vld [vmem:[%s1 + $0x68] sm:$0xff]
  %v64 = vld [vmem:[%s1 + $0x70] sm:$0xff]
  %v65 = vld [vmem:[%s1 + $0x78] sm:$0xff]
  %v66 = vld [vmem:[%s1 + $0x80] sm:$0xff]
  %v67 = vld [vmem:[%s1 + $0x88] sm:$0xff]
  %v68 = vld [vmem:[%s1 + $0x90] sm:$0xff]
  %v69 = vld [vmem:[%s1 + $0x98] sm:$0xff]
  %v70 = vld [vmem:[%s1 + $0xa0] sm:$0xff]
  %v71 = vld [vmem:[%s1 + $0xa8] sm:$0xff]
  %v72 = vld [vmem:[%s1 + $0xb0] sm:$0xff]
  %v73 = vld [vmem:[%s1 + $0xb8] sm:$0xff]
  %v74 = vld [vmem:[%s1 + $0xc0] sm:$0xff]
  %v75 = vld [vmem:[%s1 + $0xc8] sm:$0xff]
  %v76 = vld [vmem:[%s1 + $0xd0] sm:$0xff]
  %v77 = vld [vmem:[%s1 + $0xd8] sm:$0xff]
  %v78 = vld [vmem:[%s1 + $0xe0] sm:$0xff]
  %v79 = vld [vmem:[%s1 + $0xe8] sm:$0xff]
  %v80 = vld [vmem:[%s1 + $0xf0] sm:$0xff]
  %v81 = vld [vmem:[%s1 + $0xf8] sm:$0xff]
  %v82 = vld [vmem:[%s1 + $0x100] sm:$0xff]
  %v83 = vld [vmem:[%s1 + $0x108] sm:$0xff]
  %v84 = vld [vmem:[%s1 + $0x110] sm:$0xff]
  %v85 = vld [vmem:[%s1 + $0x118] sm:$0xff]
  %v86 = vld [vmem:[%s1 + $0x120] sm:$0xff]
  %v87 = vld [vmem:[%s1 + $0x128] sm:$0xff]
  %v88 = vld [vmem:[%s1 + $0x130] sm:$0xff]
  %v89 = vld [vmem:[%s1 + $0x138] sm:$0xff]
  %v90 = vld [vmem:[%s1 + $0x140] sm:$0xff]
  %v91 = vld [vmem:[%s1 + $0x148] sm:$0xff]
  %v92 = vld [vmem:[%s1 + $0x150] sm:$0xff]
  %v93 = vld [vmem:[%s1 + $0x158] sm:$0xff]
  %v94 = vld [vmem:[%s1 + $0x160] sm:$0xff]
  %v95 = vld [vmem:[%s1 + $0x168] sm:$0xff]
  %v96 = vld [vmem:[%s1 + $0x170] sm:$0xff]
  %v97 = vld [vmem:[%s1 + $0x178] sm:$0xff]
  %v98 = vld [vmem:[%s1 + $0x180] sm:$0xff]
  %v99 = vld [vmem:[%s1 + $0x188] sm:$0xff]
  %v100 = vld [vmem:[%s1 + $0x190] sm:$0xff]
  %v101 = vld [vmem:[%s1 + $0x198] sm:$0xff]
  %v102 = vld [vmem:[%s1 + $0x1a0] sm:$0xff]
  %v103 = vld [vmem:[%s1 + $0x1a8] sm:$0xff]
  %v104 = vld [vmem:[%s1 + $0x1b0] sm:$0xff]
  %v105 = vld [vmem:[%s1 + $0x1b8] sm:$0xff]
  %v106 = vld [vmem:[%s1 + $0x1c0] sm:$0xff]
  %v107 = vld [vmem:[%s1 + $0x1c8] sm:$0xff]
  %v108 = vld [vmem:[%s1 + $0x1d0] sm:$0xff]
  %v109 = vld [vmem:[%s1 + $0x1d8] sm:$0xff]
  %v110 = vld [vmem:[%s1 + $0x1e0] sm:$0xff]
  %v111 = vld [vmem:[%s1 + $0x1e8] sm:$0xff]
  %v112 = vld [vmem:[%s1 + $0x1f0] sm:$0xff]
  %v113 = vld [vmem:[%s1 + $0x1f8] sm:$0xff]
  %v114 = vld [vmem:[%s1 + $0x200] sm:$0xff]
  %v115 = vld [vmem:[%s1 + $0x208] sm:$0xff]
  %v116 = vld [vmem:[%s1 + $0x210] sm:$0xff]
  %v117 = vld [vmem:[%s1 + $0x218] sm:$0xff]
  %v118 = vld [vmem:[%s1 + $0x220] sm:$0xff]
  %v119 = vld [vmem:[%s1 + $0x228] sm:$0xff]
  %v120 = vld [vmem:[%s1 + $0x230] sm:$0xff]
  %v121 = vld [vmem:[%s1 + $0x238] sm:$0xff]
  %v122 = vld [vmem:[%s1 + $0x240] sm:$0xff]
  %v123 = vld [vmem:[%s1 + $0x248] sm:$0xff]
  %v124 = vld [vmem:[%s1 + $0x250] sm:$0xff]
  %v125 = vld [vmem:[%s1 + $0x258] sm:$0xff]
  %v126 = vld [vmem:[%s1 + $0x260] sm:$0xff]
  %v127 = vld [vmem:[%s1 + $0x268] sm:$0xff]
  %v128 = vld [vmem:[%s1 + $0x270] sm:$0xff]
  %v129 = vld [vmem:[%s1 + $0x278] sm:$0xff]
  %v130 = vld [vmem:[%s1 + $0x280] sm:$0xff]
  %v131 = vld [vmem:[%s1 + $0x288] sm:$0xff]
  %v132 = vld [vmem:[%s1 + $0x290] sm:$0xff]
  %v133 = vld [vmem:[%s1 + $0x298] sm:$0xff]
  %v134 = vld [vmem:[%s1 + $0x2a0] sm:$0xff]
  %v135 = vld [vmem:[%s1 + $0x2a8] sm:$0xff]
  %v136 = vld [vmem:[%s1 + $0x2b0] sm:$0xff]
  %v137 = vld [vmem:[%s1 + $0x2b8] sm:$0xff]
  %v138 = vld [vmem:[%s1 + $0x2c0] sm:$0xff]
  %v139 = vld [vmem:[%s1 + $0x2c8] sm:$0xff]
  %v140 = vld [vmem:[%s1 + $0x2d0] sm:$0xff]
  %v141 = vld [vmem:[%s1 + $0x2d8] sm:$0xff]
  %v142 = vld [vmem:[%s1 + $0x2e0] sm:$0xff]
  %v143 = vld [vmem:[%s1 + $0x2e8] sm:$0xff]
  %v144 = vld [vmem:[%s1 + $0x2f0] sm:$0xff]
  %v145 = vld [vmem:[%s1 + $0x2f8] sm:$0xff]
  %v146 = vld [vmem:[%s1 + $0x300] sm:$0xff]
  %v147 = vld [vmem:[%s1 + $0x308] sm:$0xff]
  %v148 = vld [vmem:[%s1 + $0x310] sm:$0xff]
  %v149 = vld [vmem:[%s1 + $0x318] sm:$0xff]
  %v150 = vld [vmem:[%s1 + $0x320] sm:$0xff]
  %v151 = vld [vmem:[%s1 + $0x328] sm:$0xff]
  %v152 = vld [vmem:[%s1 + $0x330] sm:$0xff]
  %v153 = vld [vmem:[%s1 + $0x338] sm:$0xff]
  %v154 = vld [vmem:[%s1 + $0x340] sm:$0xff]
  %v155 = vld [vmem:[%s1 + $0x348] sm:$0xff]
  %v156 = vld [vmem:[%s1 + $0x350] sm:$0xff]
  %v157 = vld [vmem:[%s1 + $0x358] sm:$0xff]
  %v158 = vld [vmem:[%s1 + $0x360] sm:$0xff]
  %v159 = vld [vmem:[%s1 + $0x368] sm:$0xff]
  %v160 = vld [vmem:[%s1 + $0x370] sm:$0xff]
  %v161 = vld [vmem:[%s1 + $0x378] sm:$0xff]
  %v162 = vld [vmem:[%s1 + $0x380] sm:$0xff]
  %v163 = vld [vmem:[%s1 + $0x388] sm:$0xff]
  %v164 = vld [vmem:[%s1 + $0x390] sm:$0xff]
  %v165 = vld [vmem:[%s1 + $0x398] sm:$0xff]
  %v166 = vld [vmem:[%s1 + $0x3a0] sm:$0xff]
  %v167 = vld [vmem:[%s1 + $0x3a8] sm:$0xff]
  %v168 = vld [vmem:[%s1 + $0x3b0] sm:$0xff]
  %v169 = vld [vmem:[%s1 + $0x3b8] sm:$0xff]
  %v170 = vld [vmem:[%s1 + $0x3c0] sm:$0xff]
  %v171 = vld [vmem:[%s1 + $0x3c8] sm:$0xff]
  %v172 = vld [vmem:[%s1 + $0x3d0] sm:$0xff]
  %v173 = vld [vmem:[%s1 + $0x3d8] sm:$0xff]
  %v174 = vld [vmem:[%s1 + $0x3e0] sm:$0xff]
  %v175 = vld [vmem:[%s1 + $0x3e8] sm:$0xff]
  %v176 = vld [vmem:[%s1 + $0x3f0] sm:$0xff]
  %v177 = vld [vmem:[%s1 + $0x3f8] sm:$0xff]
  %v178 = vld [vmem:[%s1 + $0x400] sm:$0xff]
  %v179 = vld [vmem:[%s1 + $0x408] sm:$0xff]
  %v180 = vld [vmem:[%s1 + $0x410] sm:$0xff]
  %v181 = vld [vmem:[%s1 + $0x418] sm:$0xff]
  %v182 = vld [vmem:[%s1 + $0x420] sm:$0xff]
  %v183 = vld [vmem:[%s1 + $0x428] sm:$0xff]
  %v184 = vld [vmem:[%s1 + $0x430] sm:$0xff]
  %v185 = vld [vmem:[%s1 + $0x438] sm:$0xff]
  %v186 = vld [vmem:[%s1 + $0x440] sm:$0xff]
  %v187 = vld [vmem:[%s1 + $0x448] sm:$0xff]
  %v188 = vld [vmem:[%s1 + $0x450] sm:$0xff]
  %v189 = vld [vmem:[%s1 + $0x458] sm:$0xff]
  %v190 = vld [vmem:[%s1 + $0x460] sm:$0xff]
  %v191 = vld [vmem:[%s1 + $0x468] sm:$0xff]
  %v192 = vld [vmem:[%s1 + $0x470] sm:$0xff]
  %v193 = vld [vmem:[%s1 + $0x478] sm:$0xff]
  %v194 = vld [vmem:[%s1 + $0x480] sm:$0xff]
  %v195 = vld [vmem:[%s1 + $0x488] sm:$0xff]
  %v196 = vld [vmem:[%s1 + $0x490] sm:$0xff]
  %v197 = vld [vmem:[%s1 + $0x498] sm:$0xff]
  %v198 = vld [vmem:[%s1 + $0x4a0] sm:$0xff]
  %v199 = vld [vmem:[%s1 + $0x4a8] sm:$0xff]
  %v200 = vld [vmem:[%s1 + $0x4b0] sm:$0xff]
  %v201 = vld [vmem:[%s1 + $0x4b8] sm:$0xff]
  %v202 = vld [vmem:[%s1 + $0x4c0] sm:$0xff]
  %v203 = vld [vmem:[%s1 + $0x4c8] sm:$0xff]
  %v204 = vld [vmem:[%s1 + $0x4d0] sm:$0xff]
  %v205 = vld [vmem:[%s1 + $0x4d8] sm:$0xff]
  %v206 = vld [vmem:[%s1 + $0x4e0] sm:$0xff]
  %v207 = vld [vmem:[%s1 + $0x4e8] sm:$0xff]
  %v208 = vld [vmem:[%s1 + $0x4f0] sm:$0xff]
  %v209 = vld [vmem:[%s1 + $0x4f8] sm:$0xff]
  %v210 = vld [vmem:[%s1 + $0x500] sm:$0xff]
  %v211 = vld [vmem:[%s1 + $0x508] sm:$0xff]
  %v212 = vld [vmem:[%s1 + $0x510] sm:$0xff]
  %v213 = vld [vmem:[%s1 + $0x518] sm:$0xff]
  %v214 = vld [vmem:[%s1 + $0x520] sm:$0xff]
  %v215 = vld [vmem:[%s1 + $0x528] sm:$0xff]
  %v216 = vld [vmem:[%s1 + $0x530] sm:$0xff]
  %v217 = vld [vmem:[%s1 + $0x538] sm:$0xff]
  %v218 = vld [vmem:[%s1 + $0x540] sm:$0xff]
  %v219 = vld [vmem:[%s1 + $0x548] sm:$0xff]
  %v220 = vld [vmem:[%s1 + $0x550] sm:$0xff]
  %v221 = vld [vmem:[%s1 + $0x558] sm:$0xff]
  %v222 = vld [vmem:[%s1 + $0x560] sm:$0xff]
  %v223 = vld [vmem:[%s1 + $0x568] sm:$0xff]
  %v224 = vld [vmem:[%s1 + $0x570] sm:$0xff]
  %v225 = vld [vmem:[%s1 + $0x578] sm:$0xff]
  %v226 = vld [vmem:[%s1 + $0x580] sm:$0xff]
  %v227 = vld [vmem:[%s1 + $0x588] sm:$0xff]
  %v228 = vld [vmem:[%s1 + $0x590] sm:$0xff]
  %v229 = vld [vmem:[%s1 + $0x598] sm:$0xff]
  %v230 = vld [vmem:[%s1 + $0x5a0] sm:$0xff]
  %v231 = vld [vmem:[%s1 + $0x5a8] sm:$0xff]
  %v232 = vld [vmem:[%s1 + $0x5b0] sm:$0xff]
  %v233 = vld [vmem:[%s1 + $0x5b8] sm:$0xff]
  %v234 = vld [vmem:[%s1 + $0x5c0] sm:$0xff]
  %v235 = vld [vmem:[%s1 + $0x5c8] sm:$0xff]
  %v236 = vld [vmem:[%s1 + $0x5d0] sm:$0xff]
  %v237 = vld [vmem:[%s1 + $0x5d8] sm:$0xff]
  %v238 = vld [vmem:[%s1 + $0x5e0] sm:$0xff]
  %v239 = vld [vmem:[%s1 + $0x5e8] sm:$0xff]
  %v240 = vld [vmem:[%s1 + $0x5f0] sm:$0xff]
  %v241 = vld [vmem:[%s1 + $0x5f8] sm:$0xff]
  %v242 = vld [vmem:[%s1 + $0x600] sm:$0xff]
  %v243 = vld [vmem:[%s1 + $0x608] sm:$0xff]
  %v244 = vld [vmem:[%s1 + $0x610] sm:$0xff]
  %v245 = vld [vmem:[%s1 + $0x618] sm:$0xff]
  %v246 = vld [vmem:[%s1 + $0x620] sm:$0xff]
  %v247 = vld [vmem:[%s1 + $0x628] sm:$0xff]
  %v248 = vld [vmem:[%s1 + $0x630] sm:$0xff]
  %v249 = vld [vmem:[%s1 + $0x638] sm:$0xff]
  %v250 = vld [vmem:[%s1 + $0x640] sm:$0xff]
  %v251 = vld [vmem:[%s1 + $0x648] sm:$0xff]
  %v252 = vld [vmem:[%s1 + $0x650] sm:$0xff]
  %v253 = vld [vmem:[%s1 + $0x658] sm:$0xff]
  %v254 = vld [vmem:[%s1 + $0x660] sm:$0xff]
  %v255 = vld [vmem:[%s1 + $0x668] sm:$0xff]
  %v256 = vld [vmem:[%s1 + $0x670] sm:$0xff]
  %v257 = vld [vmem:[%s1 + $0x678] sm:$0xff]
  %v258 = vld [vmem:[%s1 + $0x680] sm:$0xff]
  %v259 = vld [vmem:[%s1 + $0x688] sm:$0xff]
  %v260 = vld [vmem:[%s1 + $0x690] sm:$0xff]
  %v261 = vld [vmem:[%s1 + $0x698] sm:$0xff]
  %v262 = vld [vmem:[%s1 + $0x6a0] sm:$0xff]
  %v263 = vld [vmem:[%s1 + $0x6a8] sm:$0xff]
  %v264 = vld [vmem:[%s1 + $0x6b0] sm:$0xff]
  %v265 = vld [vmem:[%s1 + $0x6b8] sm:$0xff]
  %v266 = vld [vmem:[%s1 + $0x6c0] sm:$0xff]
  %v267 = vld [vmem:[%s1 + $0x6c8] sm:$0xff]
  %v268 = vld [vmem:[%s1 + $0x6d0] sm:$0xff]
  %v269 = vld [vmem:[%s1 + $0x6d8] sm:$0xff]
  %v270 = vld [vmem:[%s1 + $0x6e0] sm:$0xff]
  %v271 = vld [vmem:[%s1 + $0x6e8] sm:$0xff]
  %v272 = vld [vmem:[%s1 + $0x6f0] sm:$0xff]
  %v273 = vld [vmem:[%s1 + $0x6f8] sm:$0xff]
  %v274 = vld [vmem:[%s1 + $0x700] sm:$0xff]
  %v275 = vld [vmem:[%s1 + $0x708] sm:$0xff]
  %v276 = vld [vmem:[%s1 + $0x710] sm:$0xff]
  %v277 = vld [vmem:[%s1 + $0x718] sm:$0xff]
  %v278 = vld [vmem:[%s1 + $0x720] sm:$0xff]
  %v279 = vld [vmem:[%s1 + $0x728] sm:$0xff]
  %v280 = vld [vmem:[%s1 + $0x730] sm:$0xff]
  %v281 = vld [vmem:[%s1 + $0x738] sm:$0xff]
  %v282 = vld [vmem:[%s1 + $0x740] sm:$0xff]
  %v283 = vld [vmem:[%s1 + $0x748] sm:$0xff]
  %v284 = vld [vmem:[%s1 + $0x750] sm:$0xff]
  %v285 = vld [vmem:[%s1 + $0x758] sm:$0xff]
  %v286 = vld [vmem:[%s1 + $0x760] sm:$0xff]
  %v287 = vld [vmem:[%s1 + $0x768] sm:$0xff]
  %v288 = vld [vmem:[%s1 + $0x770] sm:$0xff]
  %v289 = vld [vmem:[%s1 + $0x778] sm:$0xff]
  %v290 = vld [vmem:[%s1 + $0x780] sm:$0xff]
  %v291 = vld [vmem:[%s1 + $0x788] sm:$0xff]
  %v292 = vld [vmem:[%s1 + $0x790] sm:$0xff]
  %v293 = vld [vmem:[%s1 + $0x798] sm:$0xff]
  %v294 = vld [vmem:[%s1 + $0x7a0] sm:$0xff]
  %v295 = vld [vmem:[%s1 + $0x7a8] sm:$0xff]
  %v296 = vld [vmem:[%s1 + $0x7b0] sm:$0xff]
  %v297 = vld [vmem:[%s1 + $0x7b8] sm:$0xff]
  %v298 = vld [vmem:[%s1 + $0x7c0] sm:$0xff]
  %v299 = vld [vmem:[%s1 + $0x7c8] sm:$0xff]
  %v300 = vld [vmem:[%s1 + $0x7d0] sm:$0xff]
  %v301 = vld [vmem:[%s1 + $0x7d8] sm:$0xff]
  %v302 = vld [vmem:[%s1 + $0x7e0] sm:$0xff]
  %v303 = vld [vmem:[%s1 + $0x7e8] sm:$0xff]
  %v304 = vld [vmem:[%s1 + $0x7f0] sm:$0xff]
  %v305 = vld [vmem:[%s1 + $0x7f8] sm:$0xff]
  %v306 = vld [vmem:[%s1 + $0x800] sm:$0xff]
  %v307 = vld [vmem:[%s1 + $0x808] sm:$0xff]
  %v308 = vld [vmem:[%s1 + $0x810] sm:$0xff]
  %v309 = vld [vmem:[%s1 + $0x818] sm:$0xff]
  %v310 = vld [vmem:[%s1 + $0x820] sm:$0xff]
  %v311 = vld [vmem:[%s1 + $0x828] sm:$0xff]
  %v312 = vld [vmem:[%s1 + $0x830] sm:$0xff]
  %v313 = vld [vmem:[%s1 + $0x838] sm:$0xff]
  %v314 = vld [vmem:[%s1 + $0x840] sm:$0xff]
  %v315 = vld [vmem:[%s1 + $0x848] sm:$0xff]
  %v316 = vld [vmem:[%s1 + $0x850] sm:$0xff]
  %v317 = vld [vmem:[%s1 + $0x858] sm:$0xff]
  %v318 = vld [vmem:[%s1 + $0x860] sm:$0xff]
  %v319 = vld [vmem:[%s1 + $0x868] sm:$0xff]
  %v320 = vld [vmem:[%s1 + $0x870] sm:$0xff]
  %v321 = vld [vmem:[%s1 + $0x878] sm:$0xff]
  %v322 = vld [vmem:[%s1 + $0x880] sm:$0xff]
  %v323 = vld [vmem:[%s1 + $0x888] sm:$0xff]
  %v324 = vld [vmem:[%s1 + $0x890] sm:$0xff]
  %v325 = vld [vmem:[%s1 + $0x898] sm:$0xff]
  %v326 = vld [vmem:[%s1 + $0x8a0] sm:$0xff]
  %v327 = vld [vmem:[%s1 + $0x8a8] sm:$0xff]
  %v328 = vld [vmem:[%s1 + $0x8b0] sm:$0xff]
  %v329 = vld [vmem:[%s1 + $0x8b8] sm:$0xff]
  %v330 = vld [vmem:[%s1 + $0x8c0] sm:$0xff]
  %v331 = vld [vmem:[%s1 + $0x8c8] sm:$0xff]
  %v332 = vld [vmem:[%s1 + $0x8d0] sm:$0xff]
  %v333 = vld [vmem:[%s1 + $0x8d8] sm:$0xff]
  %v334 = vld [vmem:[%s1 + $0x8e0] sm:$0xff]
  %v335 = vld [vmem:[%s1 + $0x8e8] sm:$0xff]
  %v336 = vld [vmem:[%s1 + $0x8f0] sm:$0xff]
  %v337 = vld [vmem:[%s1 + $0x8f8] sm:$0xff]
  %v338 = vld [vmem:[%s2] sm:$0x3]
  %v340 = vlaneseq
  %v341 = vshrl.u32 %v340, 7
  %v342 = vsub.s32 0, %v341
  %v343 = vrot.slane %v338, %v342
  %v344 = vlaneseq
  %v345 = vshrl.u32 %v344, 7
  %v346 = vsub.s32 1, %v345
  %v347 = vrot.slane %v338, %v346
  %350 = vmatprep.subr.mxu0 %v51
  %351 = vmatpush1.msra.mxu0 %v50
  %352 = vmatprep.subr.mxu0 %v53
  %353 = vmatpush1.msra.mxu0 %v52
  %354 = vmatprep.subr.mxu0 %v55
  %355 = vmatpush1.msra.mxu0 %v54
  %356 = vmatprep.subr.mxu0 %v57
  %357 = vmatpush1.msra.mxu0 %v56
  %358 = vmatprep.subr.mxu0 %v59
  %359 = vmatpush1.msra.mxu0 %v58
  %360 = vmatprep.subr.mxu0 %v61
  %361 = vmatpush1.msra.mxu0 %v60
  %362 = vmatprep.subr.mxu0 %v63
  %363 = vmatpush1.msra.mxu0 %v62
  %364 = vmatprep.subr.mxu0 %v65
  %365 = vmatpush1.msra.mxu0 %v64
  %366 = vmatprep.subr.mxu0 %v67
  %367 = vmatpush1.msra.mxu0 %v66
  %368 = vmatprep.subr.mxu0 %v69
  %369 = vmatpush1.msra.mxu0 %v68
  %370 = vmatprep.subr.mxu0 %v71
  %371 = vmatpush1.msra.mxu0 %v70
  %372 = vmatprep.subr.mxu0 %v73
  %373 = vmatpush1.msra.mxu0 %v72
  %374 = vmatprep.subr.mxu0 %v75
  %375 = vmatpush1.msra.mxu0 %v74
  %376 = vmatprep.subr.mxu0 %v77
  %377 = vmatpush1.msra.mxu0 %v76
  %378 = vmatprep.subr.mxu0 %v79
  %379 = vmatpush1.msra.mxu0 %v78
  %380 = vmatprep.subr.mxu0 %v81
  %381 = vmatpush1.msra.mxu0 %v80
  %382 = vmatprep.subr.mxu0 %v83
  %383 = vmatpush1.msra.mxu0 %v82
  %384 = vmatprep.subr.mxu0 %v85
  %385 = vmatpush1.msra.mxu0 %v84
  %386 = vmatprep.subr.mxu0 %v87
  %387 = vmatpush1.msra.mxu0 %v86
  %388 = vmatprep.subr.mxu0 %v89
  %389 = vmatpush1.msra.mxu0 %v88
  %390 = vmatprep.subr.mxu0 %v91
  %391 = vmatpush1.msra.mxu0 %v90
  %392 = vmatprep.subr.mxu0 %v93
  %393 = vmatpush1.msra.mxu0 %v92
  %394 = vmatprep.subr.mxu0 %v95
  %395 = vmatpush1.msra.mxu0 %v94
  %396 = vmatprep.subr.mxu0 %v97
  %397 = vmatpush1.msra.mxu0 %v96
  %398 = vmatprep.subr.mxu0 %v99
  %399 = vmatpush1.msra.mxu0 %v98
  %400 = vmatprep.subr.mxu0 %v101
  %401 = vmatpush1.msra.mxu0 %v100
  %402 = vmatprep.subr.mxu0 %v103
  %403 = vmatpush1.msra.mxu0 %v102
  %404 = vmatprep.subr.mxu0 %v105
  %405 = vmatpush1.msra.mxu0 %v104
  %406 = vmatprep.subr.mxu0 %v107
  %407 = vmatpush1.msra.mxu0 %v106
  %408 = vmatprep.subr.mxu0 %v109
  %409 = vmatpush1.msra.mxu0 %v108
  %410 = vmatprep.subr.mxu0 %v111
  %411 = vmatpush1.msra.mxu0 %v110
  %412 = vmatprep.subr.mxu0 %v113
  %413 = vmatpush1.msra.mxu0 %v112
  %414 = vmatprep.mubr.f32.mxu0 %v24
  %415 = vmatmul.mubr.f32.gmra.mrb[0].mxu0 %v23
  %v416 = vpop.f32.mrb[0].mxu0
  %v417 = vadd.f32 %v343, %v416
  %v418 = vpop.f32.mrb[0].mxu0
  %v419 = vadd.f32 %v347, %v418
  %420 = vmatprep.mubr.f32.mxu0 %v33
  %421 = vmatmul.mubr.f32.gmra.mrb[0].mxu0 %v32
  %v422 = vpop.f32.mrb[0].mxu0
  %v423 = vadd.f32 %v343, %v422
  %v424 = vpop.f32.mrb[0].mxu0
  %v425 = vadd.f32 %v347, %v424
  %426 = vmatprep.mubr.f32.mxu0 %v42
  %427 = vmatmul.mubr.f32.gmra.mrb[0].mxu0 %v41
  %v428 = vpop.f32.mrb[0].mxu0
  %v429 = vadd.f32 %v343, %v428
  %v430 = vpop.f32.mrb[0].mxu0
  %v431 = vadd.f32 %v347, %v430
  %432 = vdwg.mxu0
  %433 = vmatprep.subr.mxu0 %v115
  %434 = vmatpush1.msra.mxu0 %v114
  %435 = vmatprep.subr.mxu0 %v117
  %436 = vmatpush1.msra.mxu0 %v116
  %437 = vmatprep.subr.mxu0 %v119
  %438 = vmatpush1.msra.mxu0 %v118
  %439 = vmatprep.subr.mxu0 %v121
  %440 = vmatpush1.msra.mxu0 %v120
  %441 = vmatprep.subr.mxu0 %v123
  %442 = vmatpush1.msra.mxu0 %v122
  %443 = vmatprep.subr.mxu0 %v125
  %444 = vmatpush1.msra.mxu0 %v124
  %445 = vmatprep.subr.mxu0 %v127
  %446 = vmatpush1.msra.mxu0 %v126
  %447 = vmatprep.subr.mxu0 %v129
  %448 = vmatpush1.msra.mxu0 %v128
  %449 = vmatprep.subr.mxu0 %v131
  %450 = vmatpush1.msra.mxu0 %v130
  %451 = vmatprep.subr.mxu0 %v133
  %452 = vmatpush1.msra.mxu0 %v132
  %453 = vmatprep.subr.mxu0 %v135
  %454 = vmatpush1.msra.mxu0 %v134
  %455 = vmatprep.subr.mxu0 %v137
  %456 = vmatpush1.msra.mxu0 %v136
  %457 = vmatprep.subr.mxu0 %v139
  %458 = vmatpush1.msra.mxu0 %v138
  %459 = vmatprep.subr.mxu0 %v141
  %460 = vmatpush1.msra.mxu0 %v140
  %461 = vmatprep.subr.mxu0 %v143
  %462 = vmatpush1.msra.mxu0 %v142
  %463 = vmatprep.subr.mxu0 %v145
  %464 = vmatpush1.msra.mxu0 %v144
  %465 = vmatprep.subr.mxu0 %v147
  %466 = vmatpush1.msra.mxu0 %v146
  %467 = vmatprep.subr.mxu0 %v149
  %468 = vmatpush1.msra.mxu0 %v148
  %469 = vmatprep.subr.mxu0 %v151
  %470 = vmatpush1.msra.mxu0 %v150
  %471 = vmatprep.subr.mxu0 %v153
  %472 = vmatpush1.msra.mxu0 %v152
  %473 = vmatprep.subr.mxu0 %v155
  %474 = vmatpush1.msra.mxu0 %v154
  %475 = vmatprep.subr.mxu0 %v157
  %476 = vmatpush1.msra.mxu0 %v156
  %477 = vmatprep.subr.mxu0 %v159
  %478 = vmatpush1.msra.mxu0 %v158
  %479 = vmatprep.subr.mxu0 %v161
  %480 = vmatpush1.msra.mxu0 %v160
  %481 = vmatprep.subr.mxu0 %v163
  %482 = vmatpush1.msra.mxu0 %v162
  %483 = vmatprep.subr.mxu0 %v165
  %484 = vmatpush1.msra.mxu0 %v164
  %485 = vmatprep.subr.mxu0 %v167
  %486 = vmatpush1.msra.mxu0 %v166
  %487 = vmatprep.subr.mxu0 %v169
  %488 = vmatpush1.msra.mxu0 %v168
  %489 = vmatprep.subr.mxu0 %v171
  %490 = vmatpush1.msra.mxu0 %v170
  %491 = vmatprep.subr.mxu0 %v173
  %492 = vmatpush1.msra.mxu0 %v172
  %493 = vmatprep.subr.mxu0 %v175
  %494 = vmatpush1.msra.mxu0 %v174
  %495 = vmatprep.subr.mxu0 %v177
  %496 = vmatpush1.msra.mxu0 %v176
  %497 = vmatprep.mubr.f32.mxu0 %v26
  %498 = vmatmul.mubr.f32.gmra.mrb[0].mxu0 %v25
  %v499 = vpop.f32.mrb[0].mxu0
  %v500 = vadd.f32 %v417, %v499
  %v501 = vpop.f32.mrb[0].mxu0
  %v502 = vadd.f32 %v419, %v501
  %503 = vmatprep.mubr.f32.mxu0 %v35
  %504 = vmatmul.mubr.f32.gmra.mrb[0].mxu0 %v34
  %v505 = vpop.f32.mrb[0].mxu0
  %v506 = vadd.f32 %v423, %v505
  %v507 = vpop.f32.mrb[0].mxu0
  %v508 = vadd.f32 %v425, %v507
  %509 = vmatprep.mubr.f32.mxu0 %v44
  %510 = vmatmul.mubr.f32.gmra.mrb[0].mxu0 %v43
  %v511 = vpop.f32.mrb[0].mxu0
  %v512 = vadd.f32 %v429, %v511
  %v513 = vpop.f32.mrb[0].mxu0
  %v514 = vadd.f32 %v431, %v513
  %515 = vdwg.mxu0
  %516 = vmatprep.subr.mxu0 %v179
  %517 = vmatpush1.msra.mxu0 %v178
  %518 = vmatprep.subr.mxu0 %v181
  %519 = vmatpush1.msra.mxu0 %v180
  %520 = vmatprep.subr.mxu0 %v183
  %521 = vmatpush1.msra.mxu0 %v182
  %522 = vmatprep.subr.mxu0 %v185
  %523 = vmatpush1.msra.mxu0 %v184
  %524 = vmatprep.subr.mxu0 %v187
  %525 = vmatpush1.msra.mxu0 %v186
  %526 = vmatprep.subr.mxu0 %v189
  %527 = vmatpush1.msra.mxu0 %v188
  %528 = vmatprep.subr.mxu0 %v191
  %529 = vmatpush1.msra.mxu0 %v190
  %530 = vmatprep.subr.mxu0 %v193
  %531 = vmatpush1.msra.mxu0 %v192
  %532 = vmatprep.subr.mxu0 %v195
  %533 = vmatpush1.msra.mxu0 %v194
  %534 = vmatprep.subr.mxu0 %v197
  %535 = vmatpush1.msra.mxu0 %v196
  %536 = vmatprep.subr.mxu0 %v199
  %537 = vmatpush1.msra.mxu0 %v198
  %538 = vmatprep.subr.mxu0 %v201
  %539 = vmatpush1.msra.mxu0 %v200
  %540 = vmatprep.subr.mxu0 %v203
  %541 = vmatpush1.msra.mxu0 %v202
  %542 = vmatprep.subr.mxu0 %v205
  %543 = vmatpush1.msra.mxu0 %v204
  %544 = vmatprep.subr.mxu0 %v207
  %545 = vmatpush1.msra.mxu0 %v206
  %546 = vmatprep.subr.mxu0 %v209
  %547 = vmatpush1.msra.mxu0 %v208
  %548 = vmatprep.subr.mxu0 %v211
  %549 = vmatpush1.msra.mxu0 %v210
  %550 = vmatprep.subr.mxu0 %v213
  %551 = vmatpush1.msra.mxu0 %v212
  %552 = vmatprep.subr.mxu0 %v215
  %553 = vmatpush1.msra.mxu0 %v214
  %554 = vmatprep.subr.mxu0 %v217
  %555 = vmatpush1.msra.mxu0 %v216
  %556 = vmatprep.subr.mxu0 %v219
  %557 = vmatpush1.msra.mxu0 %v218
  %558 = vmatprep.subr.mxu0 %v221
  %559 = vmatpush1.msra.mxu0 %v220
  %560 = vmatprep.subr.mxu0 %v223
  %561 = vmatpush1.msra.mxu0 %v222
  %562 = vmatprep.subr.mxu0 %v225
  %563 = vmatpush1.msra.mxu0 %v224
  %564 = vmatprep.subr.mxu0 %v227
  %565 = vmatpush1.msra.mxu0 %v226
  %566 = vmatprep.subr.mxu0 %v229
  %567 = vmatpush1.msra.mxu0 %v228
  %568 = vmatprep.subr.mxu0 %v231
  %569 = vmatpush1.msra.mxu0 %v230
  %570 = vmatprep.subr.mxu0 %v233
  %571 = vmatpush1.msra.mxu0 %v232
  %572 = vmatprep.subr.mxu0 %v235
  %573 = vmatpush1.msra.mxu0 %v234
  %574 = vmatprep.subr.mxu0 %v237
  %575 = vmatpush1.msra.mxu0 %v236
  %576 = vmatprep.subr.mxu0 %v239
  %577 = vmatpush1.msra.mxu0 %v238
  %578 = vmatprep.subr.mxu0 %v241
  %579 = vmatpush1.msra.mxu0 %v240
  %580 = vmatprep.mubr.f32.mxu0 %v28
  %581 = vmatmul.mubr.f32.gmra.mrb[0].mxu0 %v27
  %v582 = vpop.f32.mrb[0].mxu0
  %v583 = vadd.f32 %v500, %v582
  %v584 = vpop.f32.mrb[0].mxu0
  %v585 = vadd.f32 %v502, %v584
  %586 = vmatprep.mubr.f32.mxu0 %v37
  %587 = vmatmul.mubr.f32.gmra.mrb[0].mxu0 %v36
  %v588 = vpop.f32.mrb[0].mxu0
  %v589 = vadd.f32 %v506, %v588
  %v590 = vpop.f32.mrb[0].mxu0
  %v591 = vadd.f32 %v508, %v590
  %592 = vmatprep.mubr.f32.mxu0 %v46
  %593 = vmatmul.mubr.f32.gmra.mrb[0].mxu0 %v45
  %v594 = vpop.f32.mrb[0].mxu0
  %v595 = vadd.f32 %v512, %v594
  %v596 = vpop.f32.mrb[0].mxu0
  %v597 = vadd.f32 %v514, %v596
  %598 = vdwg.mxu0
  %599 = vmatprep.subr.mxu0 %v243
  %600 = vmatpush1.msra.mxu0 %v242
  %601 = vmatprep.subr.mxu0 %v245
  %602 = vmatpush1.msra.mxu0 %v244
  %603 = vmatprep.subr.mxu0 %v247
  %604 = vmatpush1.msra.mxu0 %v246
  %605 = vmatprep.subr.mxu0 %v249
  %606 = vmatpush1.msra.mxu0 %v248
  %607 = vmatprep.subr.mxu0 %v251
  %608 = vmatpush1.msra.mxu0 %v250
  %609 = vmatprep.subr.mxu0 %v253
  %610 = vmatpush1.msra.mxu0 %v252
  %611 = vmatprep.subr.mxu0 %v255
  %612 = vmatpush1.msra.mxu0 %v254
  %613 = vmatprep.subr.mxu0 %v257
  %614 = vmatpush1.msra.mxu0 %v256
  %615 = vmatprep.subr.mxu0 %v259
  %616 = vmatpush1.msra.mxu0 %v258
  %617 = vmatprep.subr.mxu0 %v261
  %618 = vmatpush1.msra.mxu0 %v260
  %619 = vmatprep.subr.mxu0 %v263
  %620 = vmatpush1.msra.mxu0 %v262
  %621 = vmatprep.subr.mxu0 %v265
  %622 = vmatpush1.msra.mxu0 %v264
  %623 = vmatprep.subr.mxu0 %v267
  %624 = vmatpush1.msra.mxu0 %v266
  %625 = vmatprep.subr.mxu0 %v269
  %626 = vmatpush1.msra.mxu0 %v268
  %627 = vmatprep.subr.mxu0 %v271
  %628 = vmatpush1.msra.mxu0 %v270
  %629 = vmatprep.subr.mxu0 %v273
  %630 = vmatpush1.msra.mxu0 %v272
  %631 = vmatprep.subr.mxu0 %v275
  %632 = vmatpush1.msra.mxu0 %v274
  %633 = vmatprep.subr.mxu0 %v277
  %634 = vmatpush1.msra.mxu0 %v276
  %635 = vmatprep.subr.mxu0 %v279
  %636 = vmatpush1.msra.mxu0 %v278
  %637 = vmatprep.subr.mxu0 %v281
  %638 = vmatpush1.msra.mxu0 %v280
  %639 = vmatprep.subr.mxu0 %v283
  %640 = vmatpush1.msra.mxu0 %v282
  %641 = vmatprep.subr.mxu0 %v285
  %642 = vmatpush1.msra.mxu0 %v284
  %643 = vmatprep.subr.mxu0 %v287
  %644 = vmatpush1.msra.mxu0 %v286
  %645 = vmatprep.subr.mxu0 %v289
  %646 = vmatpush1.msra.mxu0 %v288
  %647 = vmatprep.subr.mxu0 %v291
  %648 = vmatpush1.msra.mxu0 %v290
  %649 = vmatprep.subr.mxu0 %v293
  %650 = vmatpush1.msra.mxu0 %v292
  %651 = vmatprep.subr.mxu0 %v295
  %652 = vmatpush1.msra.mxu0 %v294
  %653 = vmatprep.subr.mxu0 %v297
  %654 = vmatpush1.msra.mxu0 %v296
  %655 = vmatprep.subr.mxu0 %v299
  %656 = vmatpush1.msra.mxu0 %v298
  %657 = vmatprep.subr.mxu0 %v301
  %658 = vmatpush1.msra.mxu0 %v300
  %659 = vmatprep.subr.mxu0 %v303
  %660 = vmatpush1.msra.mxu0 %v302
  %661 = vmatprep.subr.mxu0 %v305
  %662 = vmatpush1.msra.mxu0 %v304
  %663 = vmatprep.mubr.f32.mxu0 %v30
  %664 = vmatmul.mubr.f32.gmra.mrb[0].mxu0 %v29
  %v665 = vpop.f32.mrb[0].mxu0
  %v666 = vadd.f32 %v583, %v665
  %v667 = vpop.f32.mrb[0].mxu0
  %v668 = vadd.f32 %v585, %v667
  %669 = vmatprep.mubr.f32.mxu0 %v39
  %670 = vmatmul.mubr.f32.gmra.mrb[0].mxu0 %v38
  %v671 = vpop.f32.mrb[0].mxu0
  %v672 = vadd.f32 %v589, %v671
  %v673 = vpop.f32.mrb[0].mxu0
  %v674 = vadd.f32 %v591, %v673
  %675 = vmatprep.mubr.f32.mxu0 %v48
  %676 = vmatmul.mubr.f32.gmra.mrb[0].mxu0 %v47
  %v677 = vpop.f32.mrb[0].mxu0
  %v678 = vadd.f32 %v595, %v677
  %v679 = vpop.f32.mrb[0].mxu0
  %v680 = vadd.f32 %v597, %v679
  %681 = vdwg.mxu0
  %682 = vmatprep.subr.mxu0 %v307
  %683 = vmatpush1.msra.mxu0 %v306
  %684 = vmatprep.subr.mxu0 %v309
  %685 = vmatpush1.msra.mxu0 %v308
  %686 = vmatprep.subr.mxu0 %v311
  %687 = vmatpush1.msra.mxu0 %v310
  %688 = vmatprep.subr.mxu0 %v313
  %689 = vmatpush1.msra.mxu0 %v312
  %690 = vmatprep.subr.mxu0 %v315
  %691 = vmatpush1.msra.mxu0 %v314
  %692 = vmatprep.subr.mxu0 %v317
  %693 = vmatpush1.msra.mxu0 %v316
  %694 = vmatprep.subr.mxu0 %v319
  %695 = vmatpush1.msra.mxu0 %v318
  %696 = vmatprep.subr.mxu0 %v321
  %697 = vmatpush1.msra.mxu0 %v320
  %698 = vmatprep.subr.mxu0 %v323
  %699 = vmatpush1.msra.mxu0 %v322
  %700 = vmatprep.subr.mxu0 %v325
  %701 = vmatpush1.msra.mxu0 %v324
  %702 = vmatprep.subr.mxu0 %v327
  %703 = vmatpush1.msra.mxu0 %v326
  %704 = vmatprep.subr.mxu0 %v329
  %705 = vmatpush1.msra.mxu0 %v328
  %706 = vmatprep.subr.mxu0 %v331
  %707 = vmatpush1.msra.mxu0 %v330
  %708 = vmatprep.subr.mxu0 %v333
  %709 = vmatpush1.msra.mxu0 %v332
  %710 = vmatprep.subr.mxu0 %v335
  %711 = vmatpush1.msra.mxu0 %v334
  %712 = vmatprep.subr.mxu0 %v337
  %713 = vmatpush1.msra.mxu0 %v336
  %714 = vmatprep.subr.mxu0 0.0
  %715 = vmatpush1.msra.mxu0 0.0
  %716 = vmatprep.subr.mxu0 0.0
  %717 = vmatpush1.msra.mxu0 0.0
  %718 = vmatprep.subr.mxu0 0.0
  %719 = vmatpush1.msra.mxu0 0.0
  %720 = vmatprep.subr.mxu0 0.0
  %721 = vmatpush1.msra.mxu0 0.0
  %722 = vmatprep.subr.mxu0 0.0
  %723 = vmatpush1.msra.mxu0 0.0
  %724 = vmatprep.subr.mxu0 0.0
  %725 = vmatpush1.msra.mxu0 0.0
  %726 = vmatprep.subr.mxu0 0.0
  %727 = vmatpush1.msra.mxu0 0.0
  %728 = vmatprep.subr.mxu0 0.0
  %729 = vmatpush1.msra.mxu0 0.0
  %730 = vmatprep.subr.mxu0 0.0
  %731 = vmatpush1.msra.mxu0 0.0
  %732 = vmatprep.subr.mxu0 0.0
  %733 = vmatpush1.msra.mxu0 0.0
  %734 = vmatprep.subr.mxu0 0.0
  %735 = vmatpush1.msra.mxu0 0.0
  %736 = vmatprep.subr.mxu0 0.0
  %737 = vmatpush1.msra.mxu0 0.0
  %738 = vmatprep.subr.mxu0 0.0
  %739 = vmatpush1.msra.mxu0 0.0
  %740 = vmatprep.subr.mxu0 0.0
  %741 = vmatpush1.msra.mxu0 0.0
  %742 = vmatprep.subr.mxu0 0.0
  %743 = vmatpush1.msra.mxu0 0.0
  %744 = vmatprep.subr.mxu0 0.0
  %745 = vmatpush1.msra.mxu0 0.0
  %746 = vmatprep.mubr.f32.mxu0 0.0
  %747 = vmatmul.mubr.f32.gmra.mrb[0].mxu0 %v31
  %v748 = vpop.f32.mrb[0].mxu0
  %v749 = vadd.f32 %v666, %v748
  %v750 = vpop.f32.mrb[0].mxu0
  %v751 = vadd.f32 %v668, %v750
  %752 = vmatprep.mubr.f32.mxu0 0.0
  %753 = vmatmul.mubr.f32.gmra.mrb[0].mxu0 %v40
  %v754 = vpop.f32.mrb[0].mxu0
  %v755 = vadd.f32 %v672, %v754
  %v756 = vpop.f32.mrb[0].mxu0
  %v757 = vadd.f32 %v674, %v756
  %758 = vmatprep.mubr.f32.mxu0 0.0
  %759 = vmatmul.mubr.f32.gmra.mrb[0].mxu0 %v49
  %v760 = vpop.f32.mrb[0].mxu0
  %v761 = vadd.f32 %v678, %v760
  %v762 = vpop.f32.mrb[0].mxu0
  %v763 = vadd.f32 %v680, %v762
  %764 = vdwg.mxu0
  %v765 = vadd.f32 %v749, %v755
  %vm766 = vcmask 1041408
  %v767 = vsel %vm766, %v761, 0.0
  %v768 = vadd.f32 %v765, %v767
  %v769 = vrot.slane %v768, 4
  %v770 = vadd.f32 %v768, %v769
  %v771 = vrot.slane %v770, 2
  %v772 = vadd.f32 %v770, %v771
  %v773 = vrot.slane %v772, 1
  %v774 = vadd.f32 %v772, %v773
  %v775 = vadd.f32 %v751, %v757
  %v776 = vsel %vm766, %v763, 0.0
  %v777 = vadd.f32 %v775, %v776
  %v778 = vrot.slane %v777, 4
  %v779 = vadd.f32 %v777, %v778
  %v780 = vrot.slane %v779, 2
  %v781 = vadd.f32 %v779, %v780
  %v782 = vrot.slane %v781, 1
  %v783 = vadd.f32 %v781, %v782
  %v784 = vrcp.pop 18.0
  %v785 = vmul.f32 %v774, %v784
  %v786 = vmul.f32 %v783, %v784
  %v787 = vsub.f32 %v749, %v785
  %v788 = vsub.f32 %v751, %v786
  %v789 = vsub.f32 %v755, %v785
  %v790 = vsub.f32 %v757, %v786
  %v791 = vsub.f32 %v761, %v785
  %v792 = vsub.f32 %v763, %v786
  %v793 = vmul.f32 %v787, %v787
  %v794 = vmul.f32 %v788, %v788
  %v795 = vmul.f32 %v789, %v789
  %v796 = vmul.f32 %v790, %v790
  %v797 = vmul.f32 %v791, %v791
  %v798 = vmul.f32 %v792, %v792
  %v799 = vadd.f32 %v793, %v795
  %v800 = vsel %vm766, %v797, 0.0
  %v801 = vadd.f32 %v799, %v800
  %v802 = vrot.slane %v801, 4
  %v803 = vadd.f32 %v801, %v802
  %v804 = vrot.slane %v803, 2
  %v805 = vadd.f32 %v803, %v804
  %v806 = vrot.slane %v805, 1
  %v807 = vadd.f32 %v805, %v806
  %v808 = vadd.f32 %v794, %v796
  %v809 = vsel %vm766, %v798, 0.0
  %v810 = vadd.f32 %v808, %v809
  %v811 = vrot.slane %v810, 4
  %v812 = vadd.f32 %v810, %v811
  %v813 = vrot.slane %v812, 2
  %v814 = vadd.f32 %v812, %v813
  %v815 = vrot.slane %v814, 1
  %v816 = vadd.f32 %v814, %v815
  %v817 = vmul.f32 %v807, %v784
  %v818 = vmul.f32 %v816, %v784
  %v819 = vadd.f32 %v817, 1e-05
  %v820 = vadd.f32 %v818, 1e-05
  %v821 = vrsqrt.pop %v819
  %v822 = vrsqrt.pop %v820
  %v823 = vmul.f32 %v787, %v821
  %v824 = vmul.f32 %v788, %v822
  %v825 = vmul.f32 %v789, %v821
  %v826 = vmul.f32 %v790, %v822
  %v827 = vmul.f32 %v791, %v821
  %v828 = vmul.f32 %v792, %v822
  %v829 = vld [vmem:[%s3] sm:$0x3]
  %v831 = vlaneseq
  %v832 = vshrl.u32 %v831, 7
  %v833 = vsub.s32 0, %v832
  %v834 = vrot.slane %v829, %v833
  %v835 = vlaneseq
  %v836 = vshrl.u32 %v835, 7
  %v837 = vsub.s32 1, %v836
  %v838 = vrot.slane %v829, %v837
  %v841 = vmul.f32 %v823, %v834
  %v842 = vmul.f32 %v824, %v838
  %v843 = vmul.f32 %v825, %v834
  %v844 = vmul.f32 %v826, %v838
  %v845 = vmul.f32 %v827, %v834
  %v846 = vmul.f32 %v828, %v838
  %v847 = vld [vmem:[%s4] sm:$0x3]
  %v849 = vlaneseq
  %v850 = vshrl.u32 %v849, 7
  %v851 = vsub.s32 0, %v850
  %v852 = vrot.slane %v847, %v851
  %v853 = vlaneseq
  %v854 = vshrl.u32 %v853, 7
  %v855 = vsub.s32 1, %v854
  %v856 = vrot.slane %v847, %v855
  %v859 = vadd.f32 %v841, %v852
  %v860 = vadd.f32 %v842, %v856
  %v861 = vadd.f32 %v843, %v852
  %v862 = vadd.f32 %v844, %v856
  %v863 = vadd.f32 %v845, %v852
  %v864 = vadd.f32 %v846, %v856
  %v865 = vld [vmem:[%s5] sm:$0xff]
  %v866 = vld [vmem:[%s5 + $0x8] sm:$0xff]
  %v867 = vld [vmem:[%s5 + $0x10] sm:$0xff]
  %v868 = vld [vmem:[%s5 + $0x18] sm:$0xff]
  %v869 = vld [vmem:[%s5 + $0x20] sm:$0xff]
  %v870 = vld [vmem:[%s5 + $0x28] sm:$0xff]
  %v871 = vld [vmem:[%s5 + $0x30] sm:$0xff]
  %v872 = vld [vmem:[%s5 + $0x38] sm:$0xff]
  %v873 = vld [vmem:[%s5 + $0x40] sm:$0xff]
  %v874 = vld [vmem:[%s5 + $0x48] sm:$0xff]
  %v875 = vld [vmem:[%s5 + $0x50] sm:$0xff]
  %v876 = vld [vmem:[%s5 + $0x58] sm:$0xff]
  %v877 = vld [vmem:[%s5 + $0x60] sm:$0xff]
  %v878 = vld [vmem:[%s5 + $0x68] sm:$0xff]
  %v879 = vld [vmem:[%s5 + $0x70] sm:$0xff]
  %v880 = vld [vmem:[%s5 + $0x78] sm:$0xff]
  %v881 = vld [vmem:[%s5 + $0x80] sm:$0xff]
  %v882 = vld [vmem:[%s5 + $0x88] sm:$0xff]
  %v883 = vld [vmem:[%s5 + $0x90] sm:$0xff]
  %v884 = vld [vmem:[%s5 + $0x98] sm:$0xff]
  %v885 = vld [vmem:[%s5 + $0xa0] sm:$0xff]
  %v886 = vld [vmem:[%s5 + $0xa8] sm:$0xff]
  %v887 = vld [vmem:[%s5 + $0xb0] sm:$0xff]
  %v888 = vld [vmem:[%s5 + $0xb8] sm:$0xff]
  %v889 = vld [vmem:[%s5 + $0xc0] sm:$0xff]
  %v890 = vld [vmem:[%s5 + $0xc8] sm:$0xff]
  %v891 = vld [vmem:[%s5 + $0xd0] sm:$0xff]
  %v892 = vld [vmem:[%s5 + $0xd8] sm:$0xff]
  %v893 = vld [vmem:[%s5 + $0xe0] sm:$0xff]
  %v894 = vld [vmem:[%s5 + $0xe8] sm:$0xff]
  %v895 = vld [vmem:[%s5 + $0xf0] sm:$0xff]
  %v896 = vld [vmem:[%s5 + $0xf8] sm:$0xff]
  %v897 = vld [vmem:[%s5 + $0x100] sm:$0xff]
  %v898 = vld [vmem:[%s5 + $0x108] sm:$0xff]
  %v899 = vld [vmem:[%s5 + $0x110] sm:$0xff]
  %v900 = vld [vmem:[%s5 + $0x118] sm:$0xff]
  %v901 = vld [vmem:[%s5 + $0x120] sm:$0xff]
  %v902 = vld [vmem:[%s5 + $0x128] sm:$0xff]
  %v903 = vld [vmem:[%s5 + $0x130] sm:$0xff]
  %v904 = vld [vmem:[%s5 + $0x138] sm:$0xff]
  %v905 = vld [vmem:[%s5 + $0x140] sm:$0xff]
  %v906 = vld [vmem:[%s5 + $0x148] sm:$0xff]
  %v907 = vld [vmem:[%s5 + $0x150] sm:$0xff]
  %v908 = vld [vmem:[%s5 + $0x158] sm:$0xff]
  %v909 = vld [vmem:[%s5 + $0x160] sm:$0xff]
  %v910 = vld [vmem:[%s5 + $0x168] sm:$0xff]
  %v911 = vld [vmem:[%s5 + $0x170] sm:$0xff]
  %v912 = vld [vmem:[%s5 + $0x178] sm:$0xff]
  %v913 = vld [vmem:[%s5 + $0x180] sm:$0xff]
  %v914 = vld [vmem:[%s5 + $0x188] sm:$0xff]
  %v915 = vld [vmem:[%s5 + $0x190] sm:$0xff]
  %v916 = vld [vmem:[%s5 + $0x198] sm:$0xff]
  %v917 = vld [vmem:[%s5 + $0x1a0] sm:$0xff]
  %v918 = vld [vmem:[%s5 + $0x1a8] sm:$0xff]
  %v919 = vld [vmem:[%s5 + $0x1b0] sm:$0xff]
  %v920 = vld [vmem:[%s5 + $0x1b8] sm:$0xff]
  %v921 = vld [vmem:[%s5 + $0x1c0] sm:$0xff]
  %v922 = vld [vmem:[%s5 + $0x1c8] sm:$0xff]
  %v923 = vld [vmem:[%s5 + $0x1d0] sm:$0xff]
  %v924 = vld [vmem:[%s5 + $0x1d8] sm:$0xff]
  %v925 = vld [vmem:[%s5 + $0x1e0] sm:$0xff]
  %v926 = vld [vmem:[%s5 + $0x1e8] sm:$0xff]
  %v927 = vld [vmem:[%s5 + $0x1f0] sm:$0xff]
  %v928 = vld [vmem:[%s5 + $0x1f8] sm:$0xff]
  %v929 = vld [vmem:[%s5 + $0x200] sm:$0xff]
  %v930 = vld [vmem:[%s5 + $0x208] sm:$0xff]
  %v931 = vld [vmem:[%s5 + $0x210] sm:$0xff]
  %v932 = vld [vmem:[%s5 + $0x218] sm:$0xff]
  %v933 = vld [vmem:[%s5 + $0x220] sm:$0xff]
  %v934 = vld [vmem:[%s5 + $0x228] sm:$0xff]
  %v935 = vld [vmem:[%s5 + $0x230] sm:$0xff]
  %v936 = vld [vmem:[%s5 + $0x238] sm:$0xff]
  %v937 = vld [vmem:[%s5 + $0x240] sm:$0xff]
  %v938 = vld [vmem:[%s5 + $0x248] sm:$0xff]
  %v939 = vld [vmem:[%s5 + $0x250] sm:$0xff]
  %v940 = vld [vmem:[%s5 + $0x258] sm:$0xff]
  %v941 = vld [vmem:[%s5 + $0x260] sm:$0xff]
  %v942 = vld [vmem:[%s5 + $0x268] sm:$0xff]
  %v943 = vld [vmem:[%s5 + $0x270] sm:$0xff]
  %v944 = vld [vmem:[%s5 + $0x278] sm:$0xff]
  %v945 = vld [vmem:[%s5 + $0x280] sm:$0xff]
  %v946 = vld [vmem:[%s5 + $0x288] sm:$0xff]
  %v947 = vld [vmem:[%s5 + $0x290] sm:$0xff]
  %v948 = vld [vmem:[%s5 + $0x298] sm:$0xff]
  %v949 = vld [vmem:[%s5 + $0x2a0] sm:$0xff]
  %v950 = vld [vmem:[%s5 + $0x2a8] sm:$0xff]
  %v951 = vld [vmem:[%s5 + $0x2b0] sm:$0xff]
  %v952 = vld [vmem:[%s5 + $0x2b8] sm:$0xff]
  %v953 = vld [vmem:[%s5 + $0x2c0] sm:$0xff]
  %v954 = vld [vmem:[%s5 + $0x2c8] sm:$0xff]
  %v955 = vld [vmem:[%s5 + $0x2d0] sm:$0xff]
  %v956 = vld [vmem:[%s5 + $0x2d8] sm:$0xff]
  %v957 = vld [vmem:[%s5 + $0x2e0] sm:$0xff]
  %v958 = vld [vmem:[%s5 + $0x2e8] sm:$0xff]
  %v959 = vld [vmem:[%s5 + $0x2f0] sm:$0xff]
  %v960 = vld [vmem:[%s5 + $0x2f8] sm:$0xff]
  %v961 = vld [vmem:[%s5 + $0x300] sm:$0xff]
  %v962 = vld [vmem:[%s5 + $0x308] sm:$0xff]
  %v963 = vld [vmem:[%s5 + $0x310] sm:$0xff]
  %v964 = vld [vmem:[%s5 + $0x318] sm:$0xff]
  %v965 = vld [vmem:[%s5 + $0x320] sm:$0xff]
  %v966 = vld [vmem:[%s5 + $0x328] sm:$0xff]
  %v967 = vld [vmem:[%s5 + $0x330] sm:$0xff]
  %v968 = vld [vmem:[%s5 + $0x338] sm:$0xff]
  %v969 = vld [vmem:[%s5 + $0x340] sm:$0xff]
  %v970 = vld [vmem:[%s5 + $0x348] sm:$0xff]
  %v971 = vld [vmem:[%s5 + $0x350] sm:$0xff]
  %v972 = vld [vmem:[%s5 + $0x358] sm:$0xff]
  %v973 = vld [vmem:[%s5 + $0x360] sm:$0xff]
  %v974 = vld [vmem:[%s5 + $0x368] sm:$0xff]
  %v975 = vld [vmem:[%s5 + $0x370] sm:$0xff]
  %v976 = vld [vmem:[%s5 + $0x378] sm:$0xff]
  %v977 = vld [vmem:[%s5 + $0x380] sm:$0xff]
  %v978 = vld [vmem:[%s5 + $0x388] sm:$0xff]
  %v979 = vld [vmem:[%s5 + $0x390] sm:$0xff]
  %v980 = vld [vmem:[%s5 + $0x398] sm:$0xff]
  %v981 = vld [vmem:[%s5 + $0x3a0] sm:$0xff]
  %v982 = vld [vmem:[%s5 + $0x3a8] sm:$0xff]
  %v983 = vld [vmem:[%s5 + $0x3b0] sm:$0xff]
  %v984 = vld [vmem:[%s5 + $0x3b8] sm:$0xff]
  %v985 = vld [vmem:[%s5 + $0x3c0] sm:$0xff]
  %v986 = vld [vmem:[%s5 + $0x3c8] sm:$0xff]
  %v987 = vld [vmem:[%s5 + $0x3d0] sm:$0xff]
  %v988 = vld [vmem:[%s5 + $0x3d8] sm:$0xff]
  %v989 = vld [vmem:[%s5 + $0x3e0] sm:$0xff]
  %v990 = vld [vmem:[%s5 + $0x3e8] sm:$0xff]
  %v991 = vld [vmem:[%s5 + $0x3f0] sm:$0xff]
  %v992 = vld [vmem:[%s5 + $0x3f8] sm:$0xff]
  %v993 = vld [vmem:[%s5 + $0x400] sm:$0xff]
  %v994 = vld [vmem:[%s5 + $0x408] sm:$0xff]
  %v995 = vld [vmem:[%s5 + $0x410] sm:$0xff]
  %v996 = vld [vmem:[%s5 + $0x418] sm:$0xff]
  %v997 = vld [vmem:[%s5 + $0x420] sm:$0xff]
  %v998 = vld [vmem:[%s5 + $0x428] sm:$0xff]
  %v999 = vld [vmem:[%s5 + $0x430] sm:$0xff]
  %v1000 = vld [vmem:[%s5 + $0x438] sm:$0xff]
  %v1001 = vld [vmem:[%s5 + $0x440] sm:$0xff]
  %v1002 = vld [vmem:[%s5 + $0x448] sm:$0xff]
  %v1003 = vld [vmem:[%s5 + $0x450] sm:$0xff]
  %v1004 = vld [vmem:[%s5 + $0x458] sm:$0xff]
  %v1005 = vld [vmem:[%s5 + $0x460] sm:$0xff]
  %v1006 = vld [vmem:[%s5 + $0x468] sm:$0xff]
  %v1007 = vld [vmem:[%s5 + $0x470] sm:$0xff]
  %v1008 = vld [vmem:[%s5 + $0x478] sm:$0xff]
  %v1009 = vld [vmem:[%s5 + $0x480] sm:$0xff]
  %v1010 = vld [vmem:[%s5 + $0x488] sm:$0xff]
  %v1011 = vld [vmem:[%s5 + $0x490] sm:$0xff]
  %v1012 = vld [vmem:[%s5 + $0x498] sm:$0xff]
  %v1013 = vld [vmem:[%s5 + $0x4a0] sm:$0xff]
  %v1014 = vld [vmem:[%s5 + $0x4a8] sm:$0xff]
  %v1015 = vld [vmem:[%s5 + $0x4b0] sm:$0xff]
  %v1016 = vld [vmem:[%s5 + $0x4b8] sm:$0xff]
  %v1017 = vld [vmem:[%s5 + $0x4c0] sm:$0xff]
  %v1018 = vld [vmem:[%s5 + $0x4c8] sm:$0xff]
  %v1019 = vld [vmem:[%s5 + $0x4d0] sm:$0xff]
  %v1020 = vld [vmem:[%s5 + $0x4d8] sm:$0xff]
  %v1021 = vld [vmem:[%s5 + $0x4e0] sm:$0xff]
  %v1022 = vld [vmem:[%s5 + $0x4e8] sm:$0xff]
  %v1023 = vld [vmem:[%s5 + $0x4f0] sm:$0xff]
  %v1024 = vld [vmem:[%s5 + $0x4f8] sm:$0xff]
  %v1025 = vld [vmem:[%s5 + $0x500] sm:$0xff]
  %v1026 = vld [vmem:[%s5 + $0x508] sm:$0xff]
  %v1027 = vld [vmem:[%s5 + $0x510] sm:$0xff]
  %v1028 = vld [vmem:[%s5 + $0x518] sm:$0xff]
  %v1029 = vld [vmem:[%s5 + $0x520] sm:$0xff]
  %v1030 = vld [vmem:[%s5 + $0x528] sm:$0xff]
  %v1031 = vld [vmem:[%s5 + $0x530] sm:$0xff]
  %v1032 = vld [vmem:[%s5 + $0x538] sm:$0xff]
  %v1033 = vld [vmem:[%s5 + $0x540] sm:$0xff]
  %v1034 = vld [vmem:[%s5 + $0x548] sm:$0xff]
  %v1035 = vld [vmem:[%s5 + $0x550] sm:$0xff]
  %v1036 = vld [vmem:[%s5 + $0x558] sm:$0xff]
  %v1037 = vld [vmem:[%s5 + $0x560] sm:$0xff]
  %v1038 = vld [vmem:[%s5 + $0x568] sm:$0xff]
  %v1039 = vld [vmem:[%s5 + $0x570] sm:$0xff]
  %v1040 = vld [vmem:[%s5 + $0x578] sm:$0xff]
  %v1041 = vld [vmem:[%s5 + $0x580] sm:$0xff]
  %v1042 = vld [vmem:[%s5 + $0x588] sm:$0xff]
  %v1043 = vld [vmem:[%s5 + $0x590] sm:$0xff]
  %v1044 = vld [vmem:[%s5 + $0x598] sm:$0xff]
  %v1045 = vld [vmem:[%s5 + $0x5a0] sm:$0xff]
  %v1046 = vld [vmem:[%s5 + $0x5a8] sm:$0xff]
  %v1047 = vld [vmem:[%s5 + $0x5b0] sm:$0xff]
  %v1048 = vld [vmem:[%s5 + $0x5b8] sm:$0xff]
  %v1049 = vld [vmem:[%s5 + $0x5c0] sm:$0xff]
  %v1050 = vld [vmem:[%s5 + $0x5c8] sm:$0xff]
  %v1051 = vld [vmem:[%s5 + $0x5d0] sm:$0xff]
  %v1052 = vld [vmem:[%s5 + $0x5d8] sm:$0xff]
  %v1053 = vld [vmem:[%s5 + $0x5e0] sm:$0xff]
  %v1054 = vld [vmem:[%s5 + $0x5e8] sm:$0xff]
  %v1055 = vld [vmem:[%s5 + $0x5f0] sm:$0xff]
  %v1056 = vld [vmem:[%s5 + $0x5f8] sm:$0xff]
  %v1057 = vld [vmem:[%s5 + $0x600] sm:$0xff]
  %v1058 = vld [vmem:[%s5 + $0x608] sm:$0xff]
  %v1059 = vld [vmem:[%s5 + $0x610] sm:$0xff]
  %v1060 = vld [vmem:[%s5 + $0x618] sm:$0xff]
  %v1061 = vld [vmem:[%s5 + $0x620] sm:$0xff]
  %v1062 = vld [vmem:[%s5 + $0x628] sm:$0xff]
  %v1063 = vld [vmem:[%s5 + $0x630] sm:$0xff]
  %v1064 = vld [vmem:[%s5 + $0x638] sm:$0xff]
  %v1065 = vld [vmem:[%s5 + $0x640] sm:$0xff]
  %v1066 = vld [vmem:[%s5 + $0x648] sm:$0xff]
  %v1067 = vld [vmem:[%s5 + $0x650] sm:$0xff]
  %v1068 = vld [vmem:[%s5 + $0x658] sm:$0xff]
  %v1069 = vld [vmem:[%s5 + $0x660] sm:$0xff]
  %v1070 = vld [vmem:[%s5 + $0x668] sm:$0xff]
  %v1071 = vld [vmem:[%s5 + $0x670] sm:$0xff]
  %v1072 = vld [vmem:[%s5 + $0x678] sm:$0xff]
  %v1073 = vld [vmem:[%s5 + $0x680] sm:$0xff]
  %v1074 = vld [vmem:[%s5 + $0x688] sm:$0xff]
  %v1075 = vld [vmem:[%s5 + $0x690] sm:$0xff]
  %v1076 = vld [vmem:[%s5 + $0x698] sm:$0xff]
  %v1077 = vld [vmem:[%s5 + $0x6a0] sm:$0xff]
  %v1078 = vld [vmem:[%s5 + $0x6a8] sm:$0xff]
  %v1079 = vld [vmem:[%s5 + $0x6b0] sm:$0xff]
  %v1080 = vld [vmem:[%s5 + $0x6b8] sm:$0xff]
  %v1081 = vld [vmem:[%s5 + $0x6c0] sm:$0xff]
  %v1082 = vld [vmem:[%s5 + $0x6c8] sm:$0xff]
  %v1083 = vld [vmem:[%s5 + $0x6d0] sm:$0xff]
  %v1084 = vld [vmem:[%s5 + $0x6d8] sm:$0xff]
  %v1085 = vld [vmem:[%s5 + $0x6e0] sm:$0xff]
  %v1086 = vld [vmem:[%s5 + $0x6e8] sm:$0xff]
  %v1087 = vld [vmem:[%s5 + $0x6f0] sm:$0xff]
  %v1088 = vld [vmem:[%s5 + $0x6f8] sm:$0xff]
  %v1089 = vld [vmem:[%s5 + $0x700] sm:$0xff]
  %v1090 = vld [vmem:[%s5 + $0x708] sm:$0xff]
  %v1091 = vld [vmem:[%s5 + $0x710] sm:$0xff]
  %v1092 = vld [vmem:[%s5 + $0x718] sm:$0xff]
  %v1093 = vld [vmem:[%s5 + $0x720] sm:$0xff]
  %v1094 = vld [vmem:[%s5 + $0x728] sm:$0xff]
  %v1095 = vld [vmem:[%s5 + $0x730] sm:$0xff]
  %v1096 = vld [vmem:[%s5 + $0x738] sm:$0xff]
  %v1097 = vld [vmem:[%s5 + $0x740] sm:$0xff]
  %v1098 = vld [vmem:[%s5 + $0x748] sm:$0xff]
  %v1099 = vld [vmem:[%s5 + $0x750] sm:$0xff]
  %v1100 = vld [vmem:[%s5 + $0x758] sm:$0xff]
  %v1101 = vld [vmem:[%s5 + $0x760] sm:$0xff]
  %v1102 = vld [vmem:[%s5 + $0x768] sm:$0xff]
  %v1103 = vld [vmem:[%s5 + $0x770] sm:$0xff]
  %v1104 = vld [vmem:[%s5 + $0x778] sm:$0xff]
  %v1105 = vld [vmem:[%s5 + $0x780] sm:$0xff]
  %v1106 = vld [vmem:[%s5 + $0x788] sm:$0xff]
  %v1107 = vld [vmem:[%s5 + $0x790] sm:$0xff]
  %v1108 = vld [vmem:[%s5 + $0x798] sm:$0xff]
  %v1109 = vld [vmem:[%s5 + $0x7a0] sm:$0xff]
  %v1110 = vld [vmem:[%s5 + $0x7a8] sm:$0xff]
  %v1111 = vld [vmem:[%s5 + $0x7b0] sm:$0xff]
  %v1112 = vld [vmem:[%s5 + $0x7b8] sm:$0xff]
  %v1113 = vld [vmem:[%s5 + $0x7c0] sm:$0xff]
  %v1114 = vld [vmem:[%s5 + $0x7c8] sm:$0xff]
  %v1115 = vld [vmem:[%s5 + $0x7d0] sm:$0xff]
  %v1116 = vld [vmem:[%s5 + $0x7d8] sm:$0xff]
  %v1117 = vld [vmem:[%s5 + $0x7e0] sm:$0xff]
  %v1118 = vld [vmem:[%s5 + $0x7e8] sm:$0xff]
  %v1119 = vld [vmem:[%s5 + $0x7f0] sm:$0xff]
  %v1120 = vld [vmem:[%s5 + $0x7f8] sm:$0xff]
  %v1121 = vld [vmem:[%s5 + $0x800] sm:$0xff]
  %v1122 = vld [vmem:[%s5 + $0x808] sm:$0xff]
  %v1123 = vld [vmem:[%s5 + $0x810] sm:$0xff]
  %v1124 = vld [vmem:[%s5 + $0x818] sm:$0xff]
  %v1125 = vld [vmem:[%s5 + $0x820] sm:$0xff]
  %v1126 = vld [vmem:[%s5 + $0x828] sm:$0xff]
  %v1127 = vld [vmem:[%s5 + $0x830] sm:$0xff]
  %v1128 = vld [vmem:[%s5 + $0x838] sm:$0xff]
  %v1129 = vld [vmem:[%s5 + $0x840] sm:$0xff]
  %v1130 = vld [vmem:[%s5 + $0x848] sm:$0xff]
  %v1131 = vld [vmem:[%s5 + $0x850] sm:$0xff]
  %v1132 = vld [vmem:[%s5 + $0x858] sm:$0xff]
  %v1133 = vld [vmem:[%s5 + $0x860] sm:$0xff]
  %v1134 = vld [vmem:[%s5 + $0x868] sm:$0xff]
  %v1135 = vld [vmem:[%s5 + $0x870] sm:$0xff]
  %v1136 = vld [vmem:[%s5 + $0x878] sm:$0xff]
  %v1137 = vld [vmem:[%s5 + $0x880] sm:$0xff]
  %v1138 = vld [vmem:[%s5 + $0x888] sm:$0xff]
  %v1139 = vld [vmem:[%s5 + $0x890] sm:$0xff]
  %v1140 = vld [vmem:[%s5 + $0x898] sm:$0xff]
  %v1141 = vld [vmem:[%s5 + $0x8a0] sm:$0xff]
  %v1142 = vld [vmem:[%s5 + $0x8a8] sm:$0xff]
  %v1143 = vld [vmem:[%s5 + $0x8b0] sm:$0xff]
  %v1144 = vld [vmem:[%s5 + $0x8b8] sm:$0xff]
  %v1145 = vld [vmem:[%s5 + $0x8c0] sm:$0xff]
  %v1146 = vld [vmem:[%s5 + $0x8c8] sm:$0xff]
  %v1147 = vld [vmem:[%s5 + $0x8d0] sm:$0xff]
  %v1148 = vld [vmem:[%s5 + $0x8d8] sm:$0xff]
  %v1149 = vld [vmem:[%s5 + $0x8e0] sm:$0xff]
  %v1150 = vld [vmem:[%s5 + $0x8e8] sm:$0xff]
  %v1151 = vld [vmem:[%s5 + $0x8f0] sm:$0xff]
  %v1152 = vld [vmem:[%s5 + $0x8f8] sm:$0xff]
  %1153 = vmatprep.subr.mxu0 %v866
  %1154 = vmatpush1.msra.mxu0 %v865
  %1155 = vmatprep.subr.mxu0 %v875
  %1156 = vmatpush1.msra.mxu0 %v874
  %1157 = vmatprep.subr.mxu0 %v884
  %1158 = vmatpush1.msra.mxu0 %v883
  %1159 = vmatprep.subr.mxu0 %v893
  %1160 = vmatpush1.msra.mxu0 %v892
  %1161 = vmatprep.subr.mxu0 %v902
  %1162 = vmatpush1.msra.mxu0 %v901
  %1163 = vmatprep.subr.mxu0 %v911
  %1164 = vmatpush1.msra.mxu0 %v910
  %1165 = vmatprep.subr.mxu0 %v920
  %1166 = vmatpush1.msra.mxu0 %v919
  %1167 = vmatprep.subr.mxu0 %v929
  %1168 = vmatpush1.msra.mxu0 %v928
  %1169 = vmatprep.subr.mxu0 %v938
  %1170 = vmatpush1.msra.mxu0 %v937
  %1171 = vmatprep.subr.mxu0 %v947
  %1172 = vmatpush1.msra.mxu0 %v946
  %1173 = vmatprep.subr.mxu0 %v956
  %1174 = vmatpush1.msra.mxu0 %v955
  %1175 = vmatprep.subr.mxu0 %v965
  %1176 = vmatpush1.msra.mxu0 %v964
  %1177 = vmatprep.subr.mxu0 %v974
  %1178 = vmatpush1.msra.mxu0 %v973
  %1179 = vmatprep.subr.mxu0 %v983
  %1180 = vmatpush1.msra.mxu0 %v982
  %1181 = vmatprep.subr.mxu0 %v992
  %1182 = vmatpush1.msra.mxu0 %v991
  %1183 = vmatprep.subr.mxu0 %v1001
  %1184 = vmatpush1.msra.mxu0 %v1000
  %1185 = vmatprep.subr.mxu0 %v1010
  %1186 = vmatpush1.msra.mxu0 %v1009
  %1187 = vmatprep.subr.mxu0 %v1019
  %1188 = vmatpush1.msra.mxu0 %v1018
  %1189 = vmatprep.subr.mxu0 %v1028
  %1190 = vmatpush1.msra.mxu0 %v1027
  %1191 = vmatprep.subr.mxu0 %v1037
  %1192 = vmatpush1.msra.mxu0 %v1036
  %1193 = vmatprep.subr.mxu0 %v1046
  %1194 = vmatpush1.msra.mxu0 %v1045
  %1195 = vmatprep.subr.mxu0 %v1055
  %1196 = vmatpush1.msra.mxu0 %v1054
  %1197 = vmatprep.subr.mxu0 %v1064
  %1198 = vmatpush1.msra.mxu0 %v1063
  %1199 = vmatprep.subr.mxu0 %v1073
  %1200 = vmatpush1.msra.mxu0 %v1072
  %1201 = vmatprep.subr.mxu0 %v1082
  %1202 = vmatpush1.msra.mxu0 %v1081
  %1203 = vmatprep.subr.mxu0 %v1091
  %1204 = vmatpush1.msra.mxu0 %v1090
  %1205 = vmatprep.subr.mxu0 %v1100
  %1206 = vmatpush1.msra.mxu0 %v1099
  %1207 = vmatprep.subr.mxu0 %v1109
  %1208 = vmatpush1.msra.mxu0 %v1108
  %1209 = vmatprep.subr.mxu0 %v1118
  %1210 = vmatpush1.msra.mxu0 %v1117
  %1211 = vmatprep.subr.mxu0 %v1127
  %1212 = vmatpush1.msra.mxu0 %v1126
  %1213 = vmatprep.subr.mxu0 %v1136
  %1214 = vmatpush1.msra.mxu0 %v1135
  %1215 = vmatprep.subr.mxu0 %v1145
  %1216 = vmatpush1.msra.mxu0 %v1144
  %1217 = vmatprep.mubr.f32.mxu0 %v860
  %1218 = vmatmul.mubr.f32.gmra.mrb[0].mxu0 %v859
  %v1219 = vpop.f32.mrb[0].mxu0
  %v1220 = vadd.f32 0.0, %v1219
  %v1221 = vpop.f32.mrb[0].mxu0
  %v1222 = vadd.f32 0.0, %v1221
  %1223 = vmatprep.mubr.f32.mxu0 %v862
  %1224 = vmatmul.mubr.f32.gmra.mrb[0].mxu0 %v861
  %v1225 = vpop.f32.mrb[0].mxu0
  %v1226 = vadd.f32 0.0, %v1225
  %v1227 = vpop.f32.mrb[0].mxu0
  %v1228 = vadd.f32 0.0, %v1227
  %1229 = vmatprep.mubr.f32.mxu0 %v864
  %1230 = vmatmul.mubr.f32.gmra.mrb[0].mxu0 %v863
  %v1231 = vpop.f32.mrb[0].mxu0
  %v1232 = vadd.f32 0.0, %v1231
  %v1233 = vpop.f32.mrb[0].mxu0
  %v1234 = vadd.f32 0.0, %v1233
  %1235 = vdwg.mxu0
  %1236 = vmatprep.subr.mxu0 %v868
  %1237 = vmatpush1.msra.mxu0 %v867
  %1238 = vmatprep.subr.mxu0 %v877
  %1239 = vmatpush1.msra.mxu0 %v876
  %1240 = vmatprep.subr.mxu0 %v886
  %1241 = vmatpush1.msra.mxu0 %v885
  %1242 = vmatprep.subr.mxu0 %v895
  %1243 = vmatpush1.msra.mxu0 %v894
  %1244 = vmatprep.subr.mxu0 %v904
  %1245 = vmatpush1.msra.mxu0 %v903
  %1246 = vmatprep.subr.mxu0 %v913
  %1247 = vmatpush1.msra.mxu0 %v912
  %1248 = vmatprep.subr.mxu0 %v922
  %1249 = vmatpush1.msra.mxu0 %v921
  %1250 = vmatprep.subr.mxu0 %v931
  %1251 = vmatpush1.msra.mxu0 %v930
  %1252 = vmatprep.subr.mxu0 %v940
  %1253 = vmatpush1.msra.mxu0 %v939
  %1254 = vmatprep.subr.mxu0 %v949
  %1255 = vmatpush1.msra.mxu0 %v948
  %1256 = vmatprep.subr.mxu0 %v958
  %1257 = vmatpush1.msra.mxu0 %v957
  %1258 = vmatprep.subr.mxu0 %v967
  %1259 = vmatpush1.msra.mxu0 %v966
  %1260 = vmatprep.subr.mxu0 %v976
  %1261 = vmatpush1.msra.mxu0 %v975
  %1262 = vmatprep.subr.mxu0 %v985
  %1263 = vmatpush1.msra.mxu0 %v984
  %1264 = vmatprep.subr.mxu0 %v994
  %1265 = vmatpush1.msra.mxu0 %v993
  %1266 = vmatprep.subr.mxu0 %v1003
  %1267 = vmatpush1.msra.mxu0 %v1002
  %1268 = vmatprep.subr.mxu0 %v1012
  %1269 = vmatpush1.msra.mxu0 %v1011
  %1270 = vmatprep.subr.mxu0 %v1021
  %1271 = vmatpush1.msra.mxu0 %v1020
  %1272 = vmatprep.subr.mxu0 %v1030
  %1273 = vmatpush1.msra.mxu0 %v1029
  %1274 = vmatprep.subr.mxu0 %v1039
  %1275 = vmatpush1.msra.mxu0 %v1038
  %1276 = vmatprep.subr.mxu0 %v1048
  %1277 = vmatpush1.msra.mxu0 %v1047
  %1278 = vmatprep.subr.mxu0 %v1057
  %1279 = vmatpush1.msra.mxu0 %v1056
  %1280 = vmatprep.subr.mxu0 %v1066
  %1281 = vmatpush1.msra.mxu0 %v1065
  %1282 = vmatprep.subr.mxu0 %v1075
  %1283 = vmatpush1.msra.mxu0 %v1074
  %1284 = vmatprep.subr.mxu0 %v1084
  %1285 = vmatpush1.msra.mxu0 %v1083
  %1286 = vmatprep.subr.mxu0 %v1093
  %1287 = vmatpush1.msra.mxu0 %v1092
  %1288 = vmatprep.subr.mxu0 %v1102
  %1289 = vmatpush1.msra.mxu0 %v1101
  %1290 = vmatprep.subr.mxu0 %v1111
  %1291 = vmatpush1.msra.mxu0 %v1110
  %1292 = vmatprep.subr.mxu0 %v1120
  %1293 = vmatpush1.msra.mxu0 %v1119
  %1294 = vmatprep.subr.mxu0 %v1129
  %1295 = vmatpush1.msra.mxu0 %v1128
  %1296 = vmatprep.subr.mxu0 %v1138
  %1297 = vmatpush1.msra.mxu0 %v1137
  %1298 = vmatprep.subr.mxu0 %v1147
  %1299 = vmatpush1.msra.mxu0 %v1146
  %1300 = vmatprep.mubr.f32.mxu0 %v860
  %1301 = vmatmul.mubr.f32.gmra.mrb[0].mxu0 %v859
  %v1302 = vpop.f32.mrb[0].mxu0
  %v1303 = vadd.f32 0.0, %v1302
  %v1304 = vpop.f32.mrb[0].mxu0
  %v1305 = vadd.f32 0.0, %v1304
  %1306 = vmatprep.mubr.f32.mxu0 %v862
  %1307 = vmatmul.mubr.f32.gmra.mrb[0].mxu0 %v861
  %v1308 = vpop.f32.mrb[0].mxu0
  %v1309 = vadd.f32 0.0, %v1308
  %v1310 = vpop.f32.mrb[0].mxu0
  %v1311 = vadd.f32 0.0, %v1310
  %1312 = vmatprep.mubr.f32.mxu0 %v864
  %1313 = vmatmul.mubr.f32.gmra.mrb[0].mxu0 %v863
  %v1314 = vpop.f32.mrb[0].mxu0
  %v1315 = vadd.f32 0.0, %v1314
  %v1316 = vpop.f32.mrb[0].mxu0
  %v1317 = vadd.f32 0.0, %v1316
  %1318 = vdwg.mxu0
  %1319 = vmatprep.subr.mxu0 %v870
  %1320 = vmatpush1.msra.mxu0 %v869
  %1321 = vmatprep.subr.mxu0 %v879
  %1322 = vmatpush1.msra.mxu0 %v878
  %1323 = vmatprep.subr.mxu0 %v888
  %1324 = vmatpush1.msra.mxu0 %v887
  %1325 = vmatprep.subr.mxu0 %v897
  %1326 = vmatpush1.msra.mxu0 %v896
  %1327 = vmatprep.subr.mxu0 %v906
  %1328 = vmatpush1.msra.mxu0 %v905
  %1329 = vmatprep.subr.mxu0 %v915
  %1330 = vmatpush1.msra.mxu0 %v914
  %1331 = vmatprep.subr.mxu0 %v924
  %1332 = vmatpush1.msra.mxu0 %v923
  %1333 = vmatprep.subr.mxu0 %v933
  %1334 = vmatpush1.msra.mxu0 %v932
  %1335 = vmatprep.subr.mxu0 %v942
  %1336 = vmatpush1.msra.mxu0 %v941
  %1337 = vmatprep.subr.mxu0 %v951
  %1338 = vmatpush1.msra.mxu0 %v950
  %1339 = vmatprep.subr.mxu0 %v960
  %1340 = vmatpush1.msra.mxu0 %v959
  %1341 = vmatprep.subr.mxu0 %v969
  %1342 = vmatpush1.msra.mxu0 %v968
  %1343 = vmatprep.subr.mxu0 %v978
  %1344 = vmatpush1.msra.mxu0 %v977
  %1345 = vmatprep.subr.mxu0 %v987
  %1346 = vmatpush1.msra.mxu0 %v986
  %1347 = vmatprep.subr.mxu0 %v996
  %1348 = vmatpush1.msra.mxu0 %v995
  %1349 = vmatprep.subr.mxu0 %v1005
  %1350 = vmatpush1.msra.mxu0 %v1004
  %1351 = vmatprep.subr.mxu0 %v1014
  %1352 = vmatpush1.msra.mxu0 %v1013
  %1353 = vmatprep.subr.mxu0 %v1023
  %1354 = vmatpush1.msra.mxu0 %v1022
  %1355 = vmatprep.subr.mxu0 %v1032
  %1356 = vmatpush1.msra.mxu0 %v1031
  %1357 = vmatprep.subr.mxu0 %v1041
  %1358 = vmatpush1.msra.mxu0 %v1040
  %1359 = vmatprep.subr.mxu0 %v1050
  %1360 = vmatpush1.msra.mxu0 %v1049
  %1361 = vmatprep.subr.mxu0 %v1059
  %1362 = vmatpush1.msra.mxu0 %v1058
  %1363 = vmatprep.subr.mxu0 %v1068
  %1364 = vmatpush1.msra.mxu0 %v1067
  %1365 = vmatprep.subr.mxu0 %v1077
  %1366 = vmatpush1.msra.mxu0 %v1076
  %1367 = vmatprep.subr.mxu0 %v1086
  %1368 = vmatpush1.msra.mxu0 %v1085
  %1369 = vmatprep.subr.mxu0 %v1095
  %1370 = vmatpush1.msra.mxu0 %v1094
  %1371 = vmatprep.subr.mxu0 %v1104
  %1372 = vmatpush1.msra.mxu0 %v1103
  %1373 = vmatprep.subr.mxu0 %v1113
  %1374 = vmatpush1.msra.mxu0 %v1112
  %1375 = vmatprep.subr.mxu0 %v1122
  %1376 = vmatpush1.msra.mxu0 %v1121
  %1377 = vmatprep.subr.mxu0 %v1131
  %1378 = vmatpush1.msra.mxu0 %v1130
  %1379 = vmatprep.subr.mxu0 %v1140
  %1380 = vmatpush1.msra.mxu0 %v1139
  %1381 = vmatprep.subr.mxu0 %v1149
  %1382 = vmatpush1.msra.mxu0 %v1148
  %1383 = vmatprep.mubr.f32.mxu0 %v860
  %1384 = vmatmul.mubr.f32.gmra.mrb[0].mxu0 %v859
  %v1385 = vpop.f32.mrb[0].mxu0
  %v1386 = vadd.f32 0.0, %v1385
  %v1387 = vpop.f32.mrb[0].mxu0
  %v1388 = vadd.f32 0.0, %v1387
  %1389 = vmatprep.mubr.f32.mxu0 %v862
  %1390 = vmatmul.mubr.f32.gmra.mrb[0].mxu0 %v861
  %v1391 = vpop.f32.mrb[0].mxu0
  %v1392 = vadd.f32 0.0, %v1391
  %v1393 = vpop.f32.mrb[0].mxu0
  %v1394 = vadd.f32 0.0, %v1393
  %1395 = vmatprep.mubr.f32.mxu0 %v864
  %1396 = vmatmul.mubr.f32.gmra.mrb[0].mxu0 %v863
  %v1397 = vpop.f32.mrb[0].mxu0
  %v1398 = vadd.f32 0.0, %v1397
  %v1399 = vpop.f32.mrb[0].mxu0
  %v1400 = vadd.f32 0.0, %v1399
  %1401 = vdwg.mxu0
  %1402 = vmatprep.subr.mxu0 %v872
  %1403 = vmatpush1.msra.mxu0 %v871
  %1404 = vmatprep.subr.mxu0 %v881
  %1405 = vmatpush1.msra.mxu0 %v880
  %1406 = vmatprep.subr.mxu0 %v890
  %1407 = vmatpush1.msra.mxu0 %v889
  %1408 = vmatprep.subr.mxu0 %v899
  %1409 = vmatpush1.msra.mxu0 %v898
  %1410 = vmatprep.subr.mxu0 %v908
  %1411 = vmatpush1.msra.mxu0 %v907
  %1412 = vmatprep.subr.mxu0 %v917
  %1413 = vmatpush1.msra.mxu0 %v916
  %1414 = vmatprep.subr.mxu0 %v926
  %1415 = vmatpush1.msra.mxu0 %v925
  %1416 = vmatprep.subr.mxu0 %v935
  %1417 = vmatpush1.msra.mxu0 %v934
  %1418 = vmatprep.subr.mxu0 %v944
  %1419 = vmatpush1.msra.mxu0 %v943
  %1420 = vmatprep.subr.mxu0 %v953
  %1421 = vmatpush1.msra.mxu0 %v952
  %1422 = vmatprep.subr.mxu0 %v962
  %1423 = vmatpush1.msra.mxu0 %v961
  %1424 = vmatprep.subr.mxu0 %v971
  %1425 = vmatpush1.msra.mxu0 %v970
  %1426 = vmatprep.subr.mxu0 %v980
  %1427 = vmatpush1.msra.mxu0 %v979
  %1428 = vmatprep.subr.mxu0 %v989
  %1429 = vmatpush1.msra.mxu0 %v988
  %1430 = vmatprep.subr.mxu0 %v998
  %1431 = vmatpush1.msra.mxu0 %v997
  %1432 = vmatprep.subr.mxu0 %v1007
  %1433 = vmatpush1.msra.mxu0 %v1006
  %1434 = vmatprep.subr.mxu0 %v1016
  %1435 = vmatpush1.msra.mxu0 %v1015
  %1436 = vmatprep.subr.mxu0 %v1025
  %1437 = vmatpush1.msra.mxu0 %v1024
  %1438 = vmatprep.subr.mxu0 %v1034
  %1439 = vmatpush1.msra.mxu0 %v1033
  %1440 = vmatprep.subr.mxu0 %v1043
  %1441 = vmatpush1.msra.mxu0 %v1042
  %1442 = vmatprep.subr.mxu0 %v1052
  %1443 = vmatpush1.msra.mxu0 %v1051
  %1444 = vmatprep.subr.mxu0 %v1061
  %1445 = vmatpush1.msra.mxu0 %v1060
  %1446 = vmatprep.subr.mxu0 %v1070
  %1447 = vmatpush1.msra.mxu0 %v1069
  %1448 = vmatprep.subr.mxu0 %v1079
  %1449 = vmatpush1.msra.mxu0 %v1078
  %1450 = vmatprep.subr.mxu0 %v1088
  %1451 = vmatpush1.msra.mxu0 %v1087
  %1452 = vmatprep.subr.mxu0 %v1097
  %1453 = vmatpush1.msra.mxu0 %v1096
  %1454 = vmatprep.subr.mxu0 %v1106
  %1455 = vmatpush1.msra.mxu0 %v1105
  %1456 = vmatprep.subr.mxu0 %v1115
  %1457 = vmatpush1.msra.mxu0 %v1114
  %1458 = vmatprep.subr.mxu0 %v1124
  %1459 = vmatpush1.msra.mxu0 %v1123
  %1460 = vmatprep.subr.mxu0 %v1133
  %1461 = vmatpush1.msra.mxu0 %v1132
  %1462 = vmatprep.subr.mxu0 %v1142
  %1463 = vmatpush1.msra.mxu0 %v1141
  %1464 = vmatprep.subr.mxu0 %v1151
  %1465 = vmatpush1.msra.mxu0 %v1150
  %1466 = vmatprep.mubr.f32.mxu0 %v860
  %1467 = vmatmul.mubr.f32.gmra.mrb[0].mxu0 %v859
  %v1468 = vpop.f32.mrb[0].mxu0
  %v1469 = vadd.f32 0.0, %v1468
  %v1470 = vpop.f32.mrb[0].mxu0
  %v1471 = vadd.f32 0.0, %v1470
  %1472 = vmatprep.mubr.f32.mxu0 %v862
  %1473 = vmatmul.mubr.f32.gmra.mrb[0].mxu0 %v861
  %v1474 = vpop.f32.mrb[0].mxu0
  %v1475 = vadd.f32 0.0, %v1474
  %v1476 = vpop.f32.mrb[0].mxu0
  %v1477 = vadd.f32 0.0, %v1476
  %1478 = vmatprep.mubr.f32.mxu0 %v864
  %1479 = vmatmul.mubr.f32.gmra.mrb[0].mxu0 %v863
  %v1480 = vpop.f32.mrb[0].mxu0
  %v1481 = vadd.f32 0.0, %v1480
  %v1482 = vpop.f32.mrb[0].mxu0
  %v1483 = vadd.f32 0.0, %v1482
  %1484 = vdwg.mxu0
  %1485 = vmatprep.subr.mxu0 0.0
  %1486 = vmatpush1.msra.mxu0 %v873
  %1487 = vmatprep.subr.mxu0 0.0
  %1488 = vmatpush1.msra.mxu0 %v882
  %1489 = vmatprep.subr.mxu0 0.0
  %1490 = vmatpush1.msra.mxu0 %v891
  %1491 = vmatprep.subr.mxu0 0.0
  %1492 = vmatpush1.msra.mxu0 %v900
  %1493 = vmatprep.subr.mxu0 0.0
  %1494 = vmatpush1.msra.mxu0 %v909
  %1495 = vmatprep.subr.mxu0 0.0
  %1496 = vmatpush1.msra.mxu0 %v918
  %1497 = vmatprep.subr.mxu0 0.0
  %1498 = vmatpush1.msra.mxu0 %v927
  %1499 = vmatprep.subr.mxu0 0.0
  %1500 = vmatpush1.msra.mxu0 %v936
  %1501 = vmatprep.subr.mxu0 0.0
  %1502 = vmatpush1.msra.mxu0 %v945
  %1503 = vmatprep.subr.mxu0 0.0
  %1504 = vmatpush1.msra.mxu0 %v954
  %1505 = vmatprep.subr.mxu0 0.0
  %1506 = vmatpush1.msra.mxu0 %v963
  %1507 = vmatprep.subr.mxu0 0.0
  %1508 = vmatpush1.msra.mxu0 %v972
  %1509 = vmatprep.subr.mxu0 0.0
  %1510 = vmatpush1.msra.mxu0 %v981
  %1511 = vmatprep.subr.mxu0 0.0
  %1512 = vmatpush1.msra.mxu0 %v990
  %1513 = vmatprep.subr.mxu0 0.0
  %1514 = vmatpush1.msra.mxu0 %v999
  %1515 = vmatprep.subr.mxu0 0.0
  %1516 = vmatpush1.msra.mxu0 %v1008
  %1517 = vmatprep.subr.mxu0 0.0
  %1518 = vmatpush1.msra.mxu0 %v1017
  %1519 = vmatprep.subr.mxu0 0.0
  %1520 = vmatpush1.msra.mxu0 %v1026
  %1521 = vmatprep.subr.mxu0 0.0
  %1522 = vmatpush1.msra.mxu0 %v1035
  %1523 = vmatprep.subr.mxu0 0.0
  %1524 = vmatpush1.msra.mxu0 %v1044
  %1525 = vmatprep.subr.mxu0 0.0
  %1526 = vmatpush1.msra.mxu0 %v1053
  %1527 = vmatprep.subr.mxu0 0.0
  %1528 = vmatpush1.msra.mxu0 %v1062
  %1529 = vmatprep.subr.mxu0 0.0
  %1530 = vmatpush1.msra.mxu0 %v1071
  %1531 = vmatprep.subr.mxu0 0.0
  %1532 = vmatpush1.msra.mxu0 %v1080
  %1533 = vmatprep.subr.mxu0 0.0
  %1534 = vmatpush1.msra.mxu0 %v1089
  %1535 = vmatprep.subr.mxu0 0.0
  %1536 = vmatpush1.msra.mxu0 %v1098
  %1537 = vmatprep.subr.mxu0 0.0
  %1538 = vmatpush1.msra.mxu0 %v1107
  %1539 = vmatprep.subr.mxu0 0.0
  %1540 = vmatpush1.msra.mxu0 %v1116
  %1541 = vmatprep.subr.mxu0 0.0
  %1542 = vmatpush1.msra.mxu0 %v1125
  %1543 = vmatprep.subr.mxu0 0.0
  %1544 = vmatpush1.msra.mxu0 %v1134
  %1545 = vmatprep.subr.mxu0 0.0
  %1546 = vmatpush1.msra.mxu0 %v1143
  %1547 = vmatprep.subr.mxu0 0.0
  %1548 = vmatpush1.msra.mxu0 %v1152
  %1549 = vmatprep.mubr.f32.mxu0 %v860
  %1550 = vmatmul.mubr.f32.gmra.mrb[0].mxu0 %v859
  %v1551 = vpop.f32.mrb[0].mxu0
  %v1552 = vadd.f32 0.0, %v1551
  %v1553 = vpop.f32.mrb[0].mxu0
  %1554 = vmatprep.mubr.f32.mxu0 %v862
  %1555 = vmatmul.mubr.f32.gmra.mrb[0].mxu0 %v861
  %v1556 = vpop.f32.mrb[0].mxu0
  %v1557 = vadd.f32 0.0, %v1556
  %v1558 = vpop.f32.mrb[0].mxu0
  %1559 = vmatprep.mubr.f32.mxu0 %v864
  %1560 = vmatmul.mubr.f32.gmra.mrb[0].mxu0 %v863
  %v1561 = vpop.f32.mrb[0].mxu0
  %v1562 = vadd.f32 0.0, %v1561
  %v1563 = vpop.f32.mrb[0].mxu0
  %1564 = vdwg.mxu0
  %1565 = vst [vmem:[%s6] sm:$0xff] %v1220
  %1566 = vst [vmem:[%s6 + $0x8] sm:$0xff] %v1222
  %1567 = vst [vmem:[%s6 + $0x10] sm:$0xff] %v1303
  %1568 = vst [vmem:[%s6 + $0x18] sm:$0xff] %v1305
  %1569 = vst [vmem:[%s6 + $0x20] sm:$0xff] %v1386
  %1570 = vst [vmem:[%s6 + $0x28] sm:$0xff] %v1388
  %1571 = vst [vmem:[%s6 + $0x30] sm:$0xff] %v1469
  %1572 = vst [vmem:[%s6 + $0x38] sm:$0xff] %v1471
  %1573 = vst [vmem:[%s6 + $0x40] sm:$0xff] %v1552
  %1574 = vst [vmem:[%s6 + $0x48] sm:$0xff] %v1226
  %1575 = vst [vmem:[%s6 + $0x50] sm:$0xff] %v1228
  %1576 = vst [vmem:[%s6 + $0x58] sm:$0xff] %v1309
  %1577 = vst [vmem:[%s6 + $0x60] sm:$0xff] %v1311
  %1578 = vst [vmem:[%s6 + $0x68] sm:$0xff] %v1392
  %1579 = vst [vmem:[%s6 + $0x70] sm:$0xff] %v1394
  %1580 = vst [vmem:[%s6 + $0x78] sm:$0xff] %v1475
  %1581 = vst [vmem:[%s6 + $0x80] sm:$0xff] %v1477
  %1582 = vst [vmem:[%s6 + $0x88] sm:$0xff] %v1557
  %1583 = vst [vmem:[%s6 + $0x90] sm:$0x3] %v1232
  %1584 = vst [vmem:[%s6 + $0x98] sm:$0x3] %v1234
  %1585 = vst [vmem:[%s6 + $0xa0] sm:$0x3] %v1315
  %1586 = vst [vmem:[%s6 + $0xa8] sm:$0x3] %v1317
  %1587 = vst [vmem:[%s6 + $0xb0] sm:$0x3] %v1398
  %1588 = vst [vmem:[%s6 + $0xb8] sm:$0x3] %v1400
  %1589 = vst [vmem:[%s6 + $0xc0] sm:$0x3] %v1481
  %1590 = vst [vmem:[%s6 + $0xc8] sm:$0x3] %v1483
  %1591 = vst [vmem:[%s6 + $0xd0] sm:$0x3] %v1562
  // Predicated region
  $region26: #{forward.7} parent=0 // pred_check
    _
  $region27: #{forward.7} parent=0 // pred_check_branch
    %1593 = sbr.rel (0) target = $region29
  $region28: #{forward.7} parent=0 // pred_region
    _
  $region29: #{forward.7} parent=0 // pred_fallthru
    _
  // Predicated region
  $region30: #{forward.7} parent=0 // pred_check
    _
  $region31: #{forward.7} parent=0 // pred_check_branch
    %1595 = sbr.rel (0) target = $region33
  $region32: #{forward.7} parent=0 // pred_region
    _
  $region33: #{forward.7} parent=0 // pred_fallthru
    _

// kernel: forward.9
$region0: #{forward.9}
  #allocation0 [shape = 'u32[]', space=smem, size = 0x4, offset = 0x4, fixed_abs, tag = 'smem constant byte address 0x4 - core index']
  #allocation1 [shape = 'u32[144,128]{1,0:T(1,128)}', space=vmem, size = 0x12000, scoped, tag = 'internal scratch']
  %s0 = inlined_call_operand.vmem [shape: f32[2,784], index: 0, kind: input, shape index: {}]
  %s1 = inlined_call_operand.vmem [shape: f32[784,256], index: 1, kind: input, shape index: {}]
  %s2 = inlined_call_operand.vmem [shape: f32[1,256], index: 2, kind: input, shape index: {}]
  %s3 = inlined_call_operand.vmem [shape: f32[256,64], index: 3, kind: input, shape index: {}]
  %s4 = inlined_call_operand.vmem [shape: f32[1,64], index: 4, kind: input, shape index: {}]
  %s5 = inlined_call_operand.vmem [shape: f32[64,10], index: 5, kind: input, shape index: {}]
  %s6 = inlined_call_operand.vmem [shape: f32[1,10], index: 6, kind: input, shape index: {}]
  %s7 = inlined_call_operand.hbm [shape: f32[2,10], index: 7, kind: output, shape index: {}]
  %s8 = sld [smem:[#allocation0]]
  $region38: #{forward.9} parent=0
    _
  %s10 = ssub.s32 1, %s8
  %s11 = scalar_select 0, %s10, %s8
  $region1: #{forward.9} parent=0
    #allocation2 [shape = 'u8[1024]{0}', space=vmem, size = 0x400, scoped, tag = 'output window, operand 0, single buffered']
    #allocation3 [shape = 's32[1]{0}', space=sflag, size = 0x4, scoped, tag = 'scoped memory for forward.9']
    %12 = vsyncpa [#allocation3], 0
    // Predicated region
    $region2: #{forward.9} parent=1 // pred_check
      _
    $region3: #{forward.9} parent=1 // pred_check_branch
      %14 = sbr.rel (0) target = $region5
    $region4: #{forward.9} parent=1 // pred_region
      _
    $region5: #{forward.9} parent=1 // pred_fallthru
      _
    // Predicated region
    $region6: #{forward.9} parent=1 // pred_check
      _
    $region7: #{forward.9} parent=1 // pred_check_branch
      %16 = sbr.rel (0) target = $region9
    $region8: #{forward.9} parent=1 // pred_region
      _
    $region9: #{forward.9} parent=1 // pred_fallthru
      _
    // Predicated region
    $region10: #{forward.9} parent=1 // pred_check
      _
    $region11: #{forward.9} parent=1 // pred_check_branch
      %18 = sbr.rel (0) target = $region13
    $region12: #{forward.9} parent=1 // pred_region
      _
    $region13: #{forward.9} parent=1 // pred_fallthru
      _
    // Predicated region
    $region14: #{forward.9} parent=1 // pred_check
      _
    $region15: #{forward.9} parent=1 // pred_check_branch
      %20 = sbr.rel (0) target = $region17
    $region16: #{forward.9} parent=1 // pred_region
      _
    $region17: #{forward.9} parent=1 // pred_fallthru
      _
    // Predicated region
    $region18: #{forward.9} parent=1 // pred_check
      _
    $region19: #{forward.9} parent=1 // pred_check_branch
      %22 = sbr.rel (0) target = $region21
    $region20: #{forward.9} parent=1 // pred_region
      _
    $region21: #{forward.9} parent=1 // pred_fallthru
      _
    // Predicated region
    $region22: #{forward.9} parent=1 // pred_check
      _
    $region23: #{forward.9} parent=1 // pred_check_branch
      %24 = sbr.rel (0) target = $region25
    $region24: #{forward.9} parent=1 // pred_region
      _
    $region25: #{forward.9} parent=1 // pred_fallthru
      _
    // Predicated region
    $region26: #{forward.9} parent=1 // pred_check
      _
    $region27: #{forward.9} parent=1 // pred_check_branch
      %26 = sbr.rel (0) target = $region29
    $region28: #{forward.9} parent=1 // pred_region
      _
    $region29: #{forward.9} parent=1 // pred_fallthru
      _
    %v27 = vld [vmem:[%s0] sm:$0xff]
    %v28 = vld [vmem:[%s0 + $0x8] sm:$0x3f]
    %v29 = vld [vmem:[%s1] sm:$0xff]
    %v30 = vld [vmem:[%s1 + $0x8] sm:$0xff]
    %v31 = vld [vmem:[%s1 + $0x10] sm:$0xff]
    %v32 = vld [vmem:[%s1 + $0x18] sm:$0xff]
    %v33 = vld [vmem:[%s1 + $0x20] sm:$0xff]
    %v34 = vld [vmem:[%s1 + $0x28] sm:$0xff]
    %v35 = vld [vmem:[%s1 + $0x30] sm:$0xff]
    %v36 = vld [vmem:[%s1 + $0x38] sm:$0xff]
    %v37 = vld [vmem:[%s1 + $0x40] sm:$0xff]
    %v38 = vld [vmem:[%s1 + $0x48] sm:$0xff]
    %v39 = vld [vmem:[%s1 + $0x50] sm:$0xff]
    %v40 = vld [vmem:[%s1 + $0x58] sm:$0xff]
    %v41 = vld [vmem:[%s1 + $0x60] sm:$0xff]
    %v42 = vld [vmem:[%s1 + $0x68] sm:$0xff]
    %v43 = vld [vmem:[%s1 + $0x70] sm:$0xff]
    %v44 = vld [vmem:[%s1 + $0x78] sm:$0xff]
    %v45 = vld [vmem:[%s1 + $0x80] sm:$0xff]
    %v46 = vld [vmem:[%s1 + $0x88] sm:$0xff]
    %v47 = vld [vmem:[%s1 + $0x90] sm:$0xff]
    %v48 = vld [vmem:[%s1 + $0x98] sm:$0xff]
    %v49 = vld [vmem:[%s1 + $0xa0] sm:$0xff]
    %v50 = vld [vmem:[%s1 + $0xa8] sm:$0xff]
    %v51 = vld [vmem:[%s1 + $0xb0] sm:$0xff]
    %v52 = vld [vmem:[%s1 + $0xb8] sm:$0xff]
    %v53 = vld [vmem:[%s1 + $0xc0] sm:$0xff]
    %v54 = vld [vmem:[%s1 + $0xc8] sm:$0xff]
    %v55 = vld [vmem:[%s1 + $0xd0] sm:$0xff]
    %v56 = vld [vmem:[%s1 + $0xd8] sm:$0xff]
    %v57 = vld [vmem:[%s1 + $0xe0] sm:$0xff]
    %v58 = vld [vmem:[%s1 + $0xe8] sm:$0xff]
    %v59 = vld [vmem:[%s1 + $0xf0] sm:$0xff]
    %v60 = vld [vmem:[%s1 + $0xf8] sm:$0xff]
    %v61 = vld [vmem:[%s1 + $0x100] sm:$0xff]
    %v62 = vld [vmem:[%s1 + $0x108] sm:$0xff]
    %v63 = vld [vmem:[%s1 + $0x110] sm:$0xff]
    %v64 = vld [vmem:[%s1 + $0x118] sm:$0xff]
    %v65 = vld [vmem:[%s1 + $0x120] sm:$0xff]
    %v66 = vld [vmem:[%s1 + $0x128] sm:$0xff]
    %v67 = vld [vmem:[%s1 + $0x130] sm:$0xff]
    %v68 = vld [vmem:[%s1 + $0x138] sm:$0xff]
    %v69 = vld [vmem:[%s1 + $0x140] sm:$0xff]
    %v70 = vld [vmem:[%s1 + $0x148] sm:$0xff]
    %v71 = vld [vmem:[%s1 + $0x150] sm:$0xff]
    %v72 = vld [vmem:[%s1 + $0x158] sm:$0xff]
    %v73 = vld [vmem:[%s1 + $0x160] sm:$0xff]
    %v74 = vld [vmem:[%s1 + $0x168] sm:$0xff]
    %v75 = vld [vmem:[%s1 + $0x170] sm:$0xff]
    %v76 = vld [vmem:[%s1 + $0x178] sm:$0xff]
    %v77 = vld [vmem:[%s1 + $0x180] sm:$0xff]
    %v78 = vld [vmem:[%s1 + $0x188] sm:$0xff]
    %v79 = vld [vmem:[%s1 + $0x190] sm:$0xff]
    %v80 = vld [vmem:[%s1 + $0x198] sm:$0xff]
    %v81 = vld [vmem:[%s1 + $0x1a0] sm:$0xff]
    %v82 = vld [vmem:[%s1 + $0x1a8] sm:$0xff]
    %v83 = vld [vmem:[%s1 + $0x1b0] sm:$0xff]
    %v84 = vld [vmem:[%s1 + $0x1b8] sm:$0xff]
    %v85 = vld [vmem:[%s1 + $0x1c0] sm:$0xff]
    %v86 = vld [vmem:[%s1 + $0x1c8] sm:$0xff]
    %v87 = vld [vmem:[%s1 + $0x1d0] sm:$0xff]
    %v88 = vld [vmem:[%s1 + $0x1d8] sm:$0xff]
    %v89 = vld [vmem:[%s1 + $0x1e0] sm:$0xff]
    %v90 = vld [vmem:[%s1 + $0x1e8] sm:$0xff]
    %v91 = vld [vmem:[%s1 + $0x1f0] sm:$0xff]
    %v92 = vld [vmem:[%s1 + $0x1f8] sm:$0xff]
    %v93 = vld [vmem:[%s1 + $0x200] sm:$0xff]
    %v94 = vld [vmem:[%s1 + $0x208] sm:$0xff]
    %v95 = vld [vmem:[%s1 + $0x210] sm:$0xff]
    %v96 = vld [vmem:[%s1 + $0x218] sm:$0xff]
    %v97 = vld [vmem:[%s1 + $0x220] sm:$0xff]
    %v98 = vld [vmem:[%s1 + $0x228] sm:$0xff]
    %v99 = vld [vmem:[%s1 + $0x230] sm:$0xff]
    %v100 = vld [vmem:[%s1 + $0x238] sm:$0xff]
    %v101 = vld [vmem:[%s1 + $0x240] sm:$0xff]
    %v102 = vld [vmem:[%s1 + $0x248] sm:$0xff]
    %v103 = vld [vmem:[%s1 + $0x250] sm:$0xff]
    %v104 = vld [vmem:[%s1 + $0x258] sm:$0xff]
    %v105 = vld [vmem:[%s1 + $0x260] sm:$0xff]
    %v106 = vld [vmem:[%s1 + $0x268] sm:$0xff]
    %v107 = vld [vmem:[%s1 + $0x270] sm:$0xff]
    %v108 = vld [vmem:[%s1 + $0x278] sm:$0xff]
    %v109 = vld [vmem:[%s1 + $0x280] sm:$0xff]
    %v110 = vld [vmem:[%s1 + $0x288] sm:$0xff]
    %v111 = vld [vmem:[%s1 + $0x290] sm:$0xff]
    %v112 = vld [vmem:[%s1 + $0x298] sm:$0xff]
    %v113 = vld [vmem:[%s1 + $0x2a0] sm:$0xff]
    %v114 = vld [vmem:[%s1 + $0x2a8] sm:$0xff]
    %v115 = vld [vmem:[%s1 + $0x2b0] sm:$0xff]
    %v116 = vld [vmem:[%s1 + $0x2b8] sm:$0xff]
    %v117 = vld [vmem:[%s1 + $0x2c0] sm:$0xff]
    %v118 = vld [vmem:[%s1 + $0x2c8] sm:$0xff]
    %v119 = vld [vmem:[%s1 + $0x2d0] sm:$0xff]
    %v120 = vld [vmem:[%s1 + $0x2d8] sm:$0xff]
    %v121 = vld [vmem:[%s1 + $0x2e0] sm:$0xff]
    %v122 = vld [vmem:[%s1 + $0x2e8] sm:$0xff]
    %v123 = vld [vmem:[%s1 + $0x2f0] sm:$0xff]
    %v124 = vld [vmem:[%s1 + $0x2f8] sm:$0xff]
    %v125 = vld [vmem:[%s1 + $0x300] sm:$0xff]
    %v126 = vld [vmem:[%s1 + $0x308] sm:$0xff]
    %v127 = vld [vmem:[%s1 + $0x310] sm:$0xff]
    %v128 = vld [vmem:[%s1 + $0x318] sm:$0xff]
    %v129 = vld [vmem:[%s1 + $0x320] sm:$0xff]
    %v130 = vld [vmem:[%s1 + $0x328] sm:$0xff]
    %v131 = vld [vmem:[%s1 + $0x330] sm:$0xff]
    %v132 = vld [vmem:[%s1 + $0x338] sm:$0xff]
    %v133 = vld [vmem:[%s1 + $0x340] sm:$0xff]
    %v134 = vld [vmem:[%s1 + $0x348] sm:$0xff]
    %v135 = vld [vmem:[%s1 + $0x350] sm:$0xff]
    %v136 = vld [vmem:[%s1 + $0x358] sm:$0xff]
    %v137 = vld [vmem:[%s1 + $0x360] sm:$0xff]
    %v138 = vld [vmem:[%s1 + $0x368] sm:$0xff]
    %v139 = vld [vmem:[%s1 + $0x370] sm:$0xff]
    %v140 = vld [vmem:[%s1 + $0x378] sm:$0xff]
    %v141 = vld [vmem:[%s1 + $0x380] sm:$0xff]
    %v142 = vld [vmem:[%s1 + $0x388] sm:$0xff]
    %v143 = vld [vmem:[%s1 + $0x390] sm:$0xff]
    %v144 = vld [vmem:[%s1 + $0x398] sm:$0xff]
    %v145 = vld [vmem:[%s1 + $0x3a0] sm:$0xff]
    %v146 = vld [vmem:[%s1 + $0x3a8] sm:$0xff]
    %v147 = vld [vmem:[%s1 + $0x3b0] sm:$0xff]
    %v148 = vld [vmem:[%s1 + $0x3b8] sm:$0xff]
    %v149 = vld [vmem:[%s1 + $0x3c0] sm:$0xff]
    %v150 = vld [vmem:[%s1 + $0x3c8] sm:$0xff]
    %v151 = vld [vmem:[%s1 + $0x3d0] sm:$0xff]
    %v152 = vld [vmem:[%s1 + $0x3d8] sm:$0xff]
    %v153 = vld [vmem:[%s1 + $0x3e0] sm:$0xff]
    %v154 = vld [vmem:[%s1 + $0x3e8] sm:$0xff]
    %v155 = vld [vmem:[%s1 + $0x3f0] sm:$0xff]
    %v156 = vld [vmem:[%s1 + $0x3f8] sm:$0xff]
    %v157 = vld [vmem:[%s1 + $0x400] sm:$0xff]
    %v158 = vld [vmem:[%s1 + $0x408] sm:$0xff]
    %v159 = vld [vmem:[%s1 + $0x410] sm:$0xff]
    %v160 = vld [vmem:[%s1 + $0x418] sm:$0xff]
    %v161 = vld [vmem:[%s1 + $0x420] sm:$0xff]
    %v162 = vld [vmem:[%s1 + $0x428] sm:$0xff]
    %v163 = vld [vmem:[%s1 + $0x430] sm:$0xff]
    %v164 = vld [vmem:[%s1 + $0x438] sm:$0xff]
    %v165 = vld [vmem:[%s1 + $0x440] sm:$0xff]
    %v166 = vld [vmem:[%s1 + $0x448] sm:$0xff]
    %v167 = vld [vmem:[%s1 + $0x450] sm:$0xff]
    %v168 = vld [vmem:[%s1 + $0x458] sm:$0xff]
    %v169 = vld [vmem:[%s1 + $0x460] sm:$0xff]
    %v170 = vld [vmem:[%s1 + $0x468] sm:$0xff]
    %v171 = vld [vmem:[%s1 + $0x470] sm:$0xff]
    %v172 = vld [vmem:[%s1 + $0x478] sm:$0xff]
    %v173 = vld [vmem:[%s1 + $0x480] sm:$0xff]
    %v174 = vld [vmem:[%s1 + $0x488] sm:$0xff]
    %v175 = vld [vmem:[%s1 + $0x490] sm:$0xff]
    %v176 = vld [vmem:[%s1 + $0x498] sm:$0xff]
    %v177 = vld [vmem:[%s1 + $0x4a0] sm:$0xff]
    %v178 = vld [vmem:[%s1 + $0x4a8] sm:$0xff]
    %v179 = vld [vmem:[%s1 + $0x4b0] sm:$0xff]
    %v180 = vld [vmem:[%s1 + $0x4b8] sm:$0xff]
    %v181 = vld [vmem:[%s1 + $0x4c0] sm:$0xff]
    %v182 = vld [vmem:[%s1 + $0x4c8] sm:$0xff]
    %v183 = vld [vmem:[%s1 + $0x4d0] sm:$0xff]
    %v184 = vld [vmem:[%s1 + $0x4d8] sm:$0xff]
    %v185 = vld [vmem:[%s1 + $0x4e0] sm:$0xff]
    %v186 = vld [vmem:[%s1 + $0x4e8] sm:$0xff]
    %v187 = vld [vmem:[%s1 + $0x4f0] sm:$0xff]
    %v188 = vld [vmem:[%s1 + $0x4f8] sm:$0xff]
    %v189 = vld [vmem:[%s1 + $0x500] sm:$0xff]
    %v190 = vld [vmem:[%s1 + $0x508] sm:$0xff]
    %v191 = vld [vmem:[%s1 + $0x510] sm:$0xff]
    %v192 = vld [vmem:[%s1 + $0x518] sm:$0xff]
    %v193 = vld [vmem:[%s1 + $0x520] sm:$0xff]
    %v194 = vld [vmem:[%s1 + $0x528] sm:$0xff]
    %v195 = vld [vmem:[%s1 + $0x530] sm:$0xff]
    %v196 = vld [vmem:[%s1 + $0x538] sm:$0xff]
    %v197 = vld [vmem:[%s1 + $0x540] sm:$0xff]
    %v198 = vld [vmem:[%s1 + $0x548] sm:$0xff]
    %v199 = vld [vmem:[%s1 + $0x550] sm:$0xff]
    %v200 = vld [vmem:[%s1 + $0x558] sm:$0xff]
    %v201 = vld [vmem:[%s1 + $0x560] sm:$0xff]
    %v202 = vld [vmem:[%s1 + $0x568] sm:$0xff]
    %v203 = vld [vmem:[%s1 + $0x570] sm:$0xff]
    %v204 = vld [vmem:[%s1 + $0x578] sm:$0xff]
    %v205 = vld [vmem:[%s1 + $0x580] sm:$0xff]
    %v206 = vld [vmem:[%s1 + $0x588] sm:$0xff]
    %v207 = vld [vmem:[%s1 + $0x590] sm:$0xff]
    %v208 = vld [vmem:[%s1 + $0x598] sm:$0xff]
    %v209 = vld [vmem:[%s1 + $0x5a0] sm:$0xff]
    %v210 = vld [vmem:[%s1 + $0x5a8] sm:$0xff]
    %v211 = vld [vmem:[%s1 + $0x5b0] sm:$0xff]
    %v212 = vld [vmem:[%s1 + $0x5b8] sm:$0xff]
    %v213 = vld [vmem:[%s1 + $0x5c0] sm:$0xff]
    %v214 = vld [vmem:[%s1 + $0x5c8] sm:$0xff]
    %v215 = vld [vmem:[%s1 + $0x5d0] sm:$0xff]
    %v216 = vld [vmem:[%s1 + $0x5d8] sm:$0xff]
    %v217 = vld [vmem:[%s1 + $0x5e0] sm:$0xff]
    %v218 = vld [vmem:[%s1 + $0x5e8] sm:$0xff]
    %v219 = vld [vmem:[%s1 + $0x5f0] sm:$0xff]
    %v220 = vld [vmem:[%s1 + $0x5f8] sm:$0xff]
    %v221 = vld [vmem:[%s1 + $0x600] sm:$0xff]
    %v222 = vld [vmem:[%s1 + $0x608] sm:$0xff]
    %v223 = vld [vmem:[%s1 + $0x610] sm:$0xff]
    %v224 = vld [vmem:[%s1 + $0x618] sm:$0xff]
    %v225 = vld [vmem:[%s2] sm:$0x3]
    %v227 = vlaneseq
    %v228 = vshrl.u32 %v227, 7
    %v229 = vsub.s32 0, %v228
    %v230 = vrot.slane %v225, %v229
    %v231 = vlaneseq
    %v232 = vshrl.u32 %v231, 7
    %v233 = vsub.s32 1, %v232
    %v234 = vrot.slane %v225, %v233
    %v239 = vcombine.high %v27, %v27
    %v241 = vunpack.c.l.s4 1983009808
    %v242 = vunpack.c.0.s8 %v241
    %v243 = vlaneseq
    %v244 = vshrl.u32 %v243, 7
    %v245 = vsub.s32 %v242, %v244
    %v246 = vrot.slane %v27, %v245
    %v248 = vunpack.c.l.s4 1983009808
    %v249 = vunpack.c.0.s8 %v248
    %v250 = vlaneseq
    %v251 = vshrl.u32 %v250, 7
    %v252 = vsub.s32 %v249, %v251
    %v253 = vrot.slane %v239, %v252
    %v254 = vcombine.high %v246, %v246
    %v255 = vcombine.high %v253, %v253
    %v256 = vcombine.high %v28, %v28
    %v258 = vunpack.c.l.s4 1983009808
    %v259 = vunpack.c.0.s8 %v258
    %v260 = vlaneseq
    %v261 = vshrl.u32 %v260, 7
    %v262 = vsub.s32 %v259, %v261
    %v263 = vrot.slane %v28, %v262
    %v265 = vunpack.c.l.s4 1983009808
    %v266 = vunpack.c.0.s8 %v265
    %v267 = vlaneseq
    %v268 = vshrl.u32 %v267, 7
    %v269 = vsub.s32 %v266, %v268
    %v270 = vrot.slane %v256, %v269
    %v271 = vcombine.high %v263, %v263
    %vm278 = vcmask 130048
    %v279 = vsel %vm278, %v270, 0
    %281 = vmatprep.subr.mxu0 %v30
    %282 = vmatpush1.msra.mxu0 %v29
    %283 = vmatprep.subr.mxu0 %v32
    %284 = vmatpush1.msra.mxu0 %v31
    %285 = vmatprep.subr.mxu0 %v34
    %286 = vmatpush1.msra.mxu0 %v33
    %287 = vmatprep.subr.mxu0 %v36
    %288 = vmatpush1.msra.mxu0 %v35
    %289 = vmatprep.subr.mxu0 %v38
    %290 = vmatpush1.msra.mxu0 %v37
    %291 = vmatprep.subr.mxu0 %v40
    %292 = vmatpush1.msra.mxu0 %v39
    %293 = vmatprep.subr.mxu0 %v42
    %294 = vmatpush1.msra.mxu0 %v41
    %295 = vmatprep.subr.mxu0 %v44
    %296 = vmatpush1.msra.mxu0 %v43
    %297 = vmatprep.subr.mxu0 %v46
    %298 = vmatpush1.msra.mxu0 %v45
    %299 = vmatprep.subr.mxu0 %v48
    %300 = vmatpush1.msra.mxu0 %v47
    %301 = vmatprep.subr.mxu0 %v50
    %302 = vmatpush1.msra.mxu0 %v49
    %303 = vmatprep.subr.mxu0 %v52
    %304 = vmatpush1.msra.mxu0 %v51
    %305 = vmatprep.subr.mxu0 %v54
    %306 = vmatpush1.msra.mxu0 %v53
    %307 = vmatprep.subr.mxu0 %v56
    %308 = vmatpush1.msra.mxu0 %v55
    %309 = vmatprep.subr.mxu0 %v58
    %310 = vmatpush1.msra.mxu0 %v57
    %311 = vmatprep.subr.mxu0 %v60
    %312 = vmatpush1.msra.mxu0 %v59
    %313 = vmatprep.subr.mxu0 %v62
    %314 = vmatpush1.msra.mxu0 %v61
    %315 = vmatprep.subr.mxu0 %v64
    %316 = vmatpush1.msra.mxu0 %v63
    %317 = vmatprep.subr.mxu0 %v66
    %318 = vmatpush1.msra.mxu0 %v65
    %319 = vmatprep.subr.mxu0 %v68
    %320 = vmatpush1.msra.mxu0 %v67
    %321 = vmatprep.subr.mxu0 %v70
    %322 = vmatpush1.msra.mxu0 %v69
    %323 = vmatprep.subr.mxu0 %v72
    %324 = vmatpush1.msra.mxu0 %v71
    %325 = vmatprep.subr.mxu0 %v74
    %326 = vmatpush1.msra.mxu0 %v73
    %327 = vmatprep.subr.mxu0 %v76
    %328 = vmatpush1.msra.mxu0 %v75
    %329 = vmatprep.subr.mxu0 %v78
    %330 = vmatpush1.msra.mxu0 %v77
    %331 = vmatprep.subr.mxu0 %v80
    %332 = vmatpush1.msra.mxu0 %v79
    %333 = vmatprep.subr.mxu0 %v82
    %334 = vmatpush1.msra.mxu0 %v81
    %335 = vmatprep.subr.mxu0 %v84
    %336 = vmatpush1.msra.mxu0 %v83
    %337 = vmatprep.subr.mxu0 %v86
    %338 = vmatpush1.msra.mxu0 %v85
    %339 = vmatprep.subr.mxu0 %v88
    %340 = vmatpush1.msra.mxu0 %v87
    %341 = vmatprep.subr.mxu0 %v90
    %342 = vmatpush1.msra.mxu0 %v89
    %343 = vmatprep.subr.mxu0 %v92
    %344 = vmatpush1.msra.mxu0 %v91
    %345 = vmatprep.mubr.f32.mxu0 %v254
    %346 = vmatmul.mubr.f32.gmra.mrb[0].mxu0 %v246
    %v347 = vpop.f32.mrb[0].mxu0
    %v348 = vadd.f32 %v230, %v347
    %v349 = vpop.f32.mrb[0].mxu0
    %v350 = vadd.f32 %v234, %v349
    %351 = vdwg.mxu0
    %352 = vmatprep.subr.mxu0 %v94
    %353 = vmatpush1.msra.mxu0 %v93
    %354 = vmatprep.subr.mxu0 %v96
    %355 = vmatpush1.msra.mxu0 %v95
    %356 = vmatprep.subr.mxu0 %v98
    %357 = vmatpush1.msra.mxu0 %v97
    %358 = vmatprep.subr.mxu0 %v100
    %359 = vmatpush1.msra.mxu0 %v99
    %360 = vmatprep.subr.mxu0 %v102
    %361 = vmatpush1.msra.mxu0 %v101
    %362 = vmatprep.subr.mxu0 %v104
    %363 = vmatpush1.msra.mxu0 %v103
    %364 = vmatprep.subr.mxu0 %v106
    %365 = vmatpush1.msra.mxu0 %v105
    %366 = vmatprep.subr.mxu0 %v108
    %367 = vmatpush1.msra.mxu0 %v107
    %368 = vmatprep.subr.mxu0 %v110
    %369 = vmatpush1.msra.mxu0 %v109
    %370 = vmatprep.subr.mxu0 %v112
    %371 = vmatpush1.msra.mxu0 %v111
    %372 = vmatprep.subr.mxu0 %v114
    %373 = vmatpush1.msra.mxu0 %v113
    %374 = vmatprep.subr.mxu0 %v116
    %375 = vmatpush1.msra.mxu0 %v115
    %376 = vmatprep.subr.mxu0 %v118
    %377 = vmatpush1.msra.mxu0 %v117
    %378 = vmatprep.subr.mxu0 %v120
    %379 = vmatpush1.msra.mxu0 %v119
    %380 = vmatprep.subr.mxu0 %v122
    %381 = vmatpush1.msra.mxu0 %v121
    %382 = vmatprep.subr.mxu0 %v124
    %383 = vmatpush1.msra.mxu0 %v123
    %384 = vmatprep.subr.mxu0 %v126
    %385 = vmatpush1.msra.mxu0 %v125
    %386 = vmatprep.subr.mxu0 %v128
    %387 = vmatpush1.msra.mxu0 %v127
    %388 = vmatprep.subr.mxu0 %v130
    %389 = vmatpush1.msra.mxu0 %v129
    %390 = vmatprep.subr.mxu0 %v132
    %391 = vmatpush1.msra.mxu0 %v131
    %392 = vmatprep.subr.mxu0 %v134
    %393 = vmatpush1.msra.mxu0 %v133
    %394 = vmatprep.subr.mxu0 %v136
    %395 = vmatpush1.msra.mxu0 %v135
    %396 = vmatprep.subr.mxu0 %v138
    %397 = vmatpush1.msra.mxu0 %v137
    %398 = vmatprep.subr.mxu0 %v140
    %399 = vmatpush1.msra.mxu0 %v139
    %400 = vmatprep.subr.mxu0 %v142
    %401 = vmatpush1.msra.mxu0 %v141
    %402 = vmatprep.subr.mxu0 %v144
    %403 = vmatpush1.msra.mxu0 %v143
    %404 = vmatprep.subr.mxu0 %v146
    %405 = vmatpush1.msra.mxu0 %v145
    %406 = vmatprep.subr.mxu0 %v148
    %407 = vmatpush1.msra.mxu0 %v147
    %408 = vmatprep.subr.mxu0 %v150
    %409 = vmatpush1.msra.mxu0 %v149
    %410 = vmatprep.subr.mxu0 %v152
    %411 = vmatpush1.msra.mxu0 %v151
    %412 = vmatprep.subr.mxu0 %v154
    %413 = vmatpush1.msra.mxu0 %v153
    %414 = vmatprep.subr.mxu0 %v156
    %415 = vmatpush1.msra.mxu0 %v155
    %416 = vmatprep.mubr.f32.mxu0 %v255
    %417 = vmatmul.mubr.f32.gmra.mrb[0].mxu0 %v253
    %v418 = vpop.f32.mrb[0].mxu0
    %v419 = vadd.f32 %v348, %v418
    %v420 = vpop.f32.mrb[0].mxu0
    %v421 = vadd.f32 %v350, %v420
    %422 = vdwg.mxu0
    %423 = vmatprep.subr.mxu0 %v158
    %424 = vmatpush1.msra.mxu0 %v157
    %425 = vmatprep.subr.mxu0 %v160
    %426 = vmatpush1.msra.mxu0 %v159
    %427 = vmatprep.subr.mxu0 %v162
    %428 = vmatpush1.msra.mxu0 %v161
    %429 = vmatprep.subr.mxu0 %v164
    %430 = vmatpush1.msra.mxu0 %v163
    %431 = vmatprep.subr.mxu0 %v166
    %432 = vmatpush1.msra.mxu0 %v165
    %433 = vmatprep.subr.mxu0 %v168
    %434 = vmatpush1.msra.mxu0 %v167
    %435 = vmatprep.subr.mxu0 %v170
    %436 = vmatpush1.msra.mxu0 %v169
    %437 = vmatprep.subr.mxu0 %v172
    %438 = vmatpush1.msra.mxu0 %v171
    %439 = vmatprep.subr.mxu0 %v174
    %440 = vmatpush1.msra.mxu0 %v173
    %441 = vmatprep.subr.mxu0 %v176
    %442 = vmatpush1.msra.mxu0 %v175
    %443 = vmatprep.subr.mxu0 %v178
    %444 = vmatpush1.msra.mxu0 %v177
    %445 = vmatprep.subr.mxu0 %v180
    %446 = vmatpush1.msra.mxu0 %v179
    %447 = vmatprep.subr.mxu0 %v182
    %448 = vmatpush1.msra.mxu0 %v181
    %449 = vmatprep.subr.mxu0 %v184
    %450 = vmatpush1.msra.mxu0 %v183
    %451 = vmatprep.subr.mxu0 %v186
    %452 = vmatpush1.msra.mxu0 %v185
    %453 = vmatprep.subr.mxu0 %v188
    %454 = vmatpush1.msra.mxu0 %v187
    %455 = vmatprep.subr.mxu0 %v190
    %456 = vmatpush1.msra.mxu0 %v189
    %457 = vmatprep.subr.mxu0 %v192
    %458 = vmatpush1.msra.mxu0 %v191
    %459 = vmatprep.subr.mxu0 %v194
    %460 = vmatpush1.msra.mxu0 %v193
    %461 = vmatprep.subr.mxu0 %v196
    %462 = vmatpush1.msra.mxu0 %v195
    %463 = vmatprep.subr.mxu0 %v198
    %464 = vmatpush1.msra.mxu0 %v197
    %465 = vmatprep.subr.mxu0 %v200
    %466 = vmatpush1.msra.mxu0 %v199
    %467 = vmatprep.subr.mxu0 %v202
    %468 = vmatpush1.msra.mxu0 %v201
    %469 = vmatprep.subr.mxu0 %v204
    %470 = vmatpush1.msra.mxu0 %v203
    %471 = vmatprep.subr.mxu0 %v206
    %472 = vmatpush1.msra.mxu0 %v205
    %473 = vmatprep.subr.mxu0 %v208
    %474 = vmatpush1.msra.mxu0 %v207
    %475 = vmatprep.subr.mxu0 %v210
    %476 = vmatpush1.msra.mxu0 %v209
    %477 = vmatprep.subr.mxu0 %v212
    %478 = vmatpush1.msra.mxu0 %v211
    %479 = vmatprep.subr.mxu0 %v214
    %480 = vmatpush1.msra.mxu0 %v213
    %481 = vmatprep.subr.mxu0 %v216
    %482 = vmatpush1.msra.mxu0 %v215
    %483 = vmatprep.subr.mxu0 %v218
    %484 = vmatpush1.msra.mxu0 %v217
    %485 = vmatprep.subr.mxu0 %v220
    %486 = vmatpush1.msra.mxu0 %v219
    %487 = vmatprep.mubr.f32.mxu0 %v271
    %488 = vmatmul.mubr.f32.gmra.mrb[0].mxu0 %v263
    %v489 = vpop.f32.mrb[0].mxu0
    %v490 = vadd.f32 %v419, %v489
    %v491 = vpop.f32.mrb[0].mxu0
    %v492 = vadd.f32 %v421, %v491
    %493 = vdwg.mxu0
    %494 = vmatprep.subr.mxu0 %v222
    %495 = vmatpush1.msra.mxu0 %v221
    %496 = vmatprep.subr.mxu0 %v224
    %497 = vmatpush1.msra.mxu0 %v223
    %498 = vmatprep.subr.mxu0 0.0
    %499 = vmatpush1.msra.mxu0 0.0
    %500 = vmatprep.subr.mxu0 0.0
    %501 = vmatpush1.msra.mxu0 0.0
    %502 = vmatprep.subr.mxu0 0.0
    %503 = vmatpush1.msra.mxu0 0.0
    %504 = vmatprep.subr.mxu0 0.0
    %505 = vmatpush1.msra.mxu0 0.0
    %506 = vmatprep.subr.mxu0 0.0
    %507 = vmatpush1.msra.mxu0 0.0
    %508 = vmatprep.subr.mxu0 0.0
    %509 = vmatpush1.msra.mxu0 0.0
    %510 = vmatprep.subr.mxu0 0.0
    %511 = vmatpush1.msra.mxu0 0.0
    %512 = vmatprep.subr.mxu0 0.0
    %513 = vmatpush1.msra.mxu0 0.0
    %514 = vmatprep.subr.mxu0 0.0
    %515 = vmatpush1.msra.mxu0 0.0
    %516 = vmatprep.subr.mxu0 0.0
    %517 = vmatpush1.msra.mxu0 0.0
    %518 = vmatprep.subr.mxu0 0.0
    %519 = vmatpush1.msra.mxu0 0.0
    %520 = vmatprep.subr.mxu0 0.0
    %521 = vmatpush1.msra.mxu0 0.0
    %522 = vmatprep.subr.mxu0 0.0
    %523 = vmatpush1.msra.mxu0 0.0
    %524 = vmatprep.subr.mxu0 0.0
    %525 = vmatpush1.msra.mxu0 0.0
    %526 = vmatprep.subr.mxu0 0.0
    %527 = vmatpush1.msra.mxu0 0.0
    %528 = vmatprep.subr.mxu0 0.0
    %529 = vmatpush1.msra.mxu0 0.0
    %530 = vmatprep.subr.mxu0 0.0
    %531 = vmatpush1.msra.mxu0 0.0
    %532 = vmatprep.subr.mxu0 0.0
    %533 = vmatpush1.msra.mxu0 0.0
    %534 = vmatprep.subr.mxu0 0.0
    %535 = vmatpush1.msra.mxu0 0.0
    %536 = vmatprep.subr.mxu0 0.0
    %537 = vmatpush1.msra.mxu0 0.0
    %538 = vmatprep.subr.mxu0 0.0
    %539 = vmatpush1.msra.mxu0 0.0
    %540 = vmatprep.subr.mxu0 0.0
    %541 = vmatpush1.msra.mxu0 0.0
    %542 = vmatprep.subr.mxu0 0.0
    %543 = vmatpush1.msra.mxu0 0.0
    %544 = vmatprep.subr.mxu0 0.0
    %545 = vmatpush1.msra.mxu0 0.0
    %546 = vmatprep.subr.mxu0 0.0
    %547 = vmatpush1.msra.mxu0 0.0
    %548 = vmatprep.subr.mxu0 0.0
    %549 = vmatpush1.msra.mxu0 0.0
    %550 = vmatprep.subr.mxu0 0.0
    %551 = vmatpush1.msra.mxu0 0.0
    %552 = vmatprep.subr.mxu0 0.0
    %553 = vmatpush1.msra.mxu0 0.0
    %554 = vmatprep.subr.mxu0 0.0
    %555 = vmatpush1.msra.mxu0 0.0
    %556 = vmatprep.subr.mxu0 0.0
    %557 = vmatpush1.msra.mxu0 0.0
    %558 = vmatprep.mubr.f32.mxu0 0.0
    %559 = vmatmul.mubr.f32.gmra.mrb[0].mxu0 %v279
    %v560 = vpop.f32.mrb[0].mxu0
    %v561 = vadd.f32 %v490, %v560
    %v562 = vpop.f32.mrb[0].mxu0
    %v563 = vadd.f32 %v492, %v562
    %564 = vdwg.mxu0
    %v565 = vld [vmem:[%s3] sm:$0xff]
    %v566 = vld [vmem:[%s3 + $0x8] sm:$0xff]
    %v567 = vld [vmem:[%s3 + $0x10] sm:$0xff]
    %v568 = vld [vmem:[%s3 + $0x18] sm:$0xff]
    %v569 = vld [vmem:[%s3 + $0x20] sm:$0xff]
    %v570 = vld [vmem:[%s3 + $0x28] sm:$0xff]
    %v571 = vld [vmem:[%s3 + $0x30] sm:$0xff]
    %v572 = vld [vmem:[%s3 + $0x38] sm:$0xff]
    %v573 = vld [vmem:[%s3 + $0x40] sm:$0xff]
    %v574 = vld [vmem:[%s3 + $0x48] sm:$0xff]
    %v575 = vld [vmem:[%s3 + $0x50] sm:$0xff]
    %v576 = vld [vmem:[%s3 + $0x58] sm:$0xff]
    %v577 = vld [vmem:[%s3 + $0x60] sm:$0xff]
    %v578 = vld [vmem:[%s3 + $0x68] sm:$0xff]
    %v579 = vld [vmem:[%s3 + $0x70] sm:$0xff]
    %v580 = vld [vmem:[%s3 + $0x78] sm:$0xff]
    %v581 = vld [vmem:[%s3 + $0x80] sm:$0xff]
    %v582 = vld [vmem:[%s3 + $0x88] sm:$0xff]
    %v583 = vld [vmem:[%s3 + $0x90] sm:$0xff]
    %v584 = vld [vmem:[%s3 + $0x98] sm:$0xff]
    %v585 = vld [vmem:[%s3 + $0xa0] sm:$0xff]
    %v586 = vld [vmem:[%s3 + $0xa8] sm:$0xff]
    %v587 = vld [vmem:[%s3 + $0xb0] sm:$0xff]
    %v588 = vld [vmem:[%s3 + $0xb8] sm:$0xff]
    %v589 = vld [vmem:[%s3 + $0xc0] sm:$0xff]
    %v590 = vld [vmem:[%s3 + $0xc8] sm:$0xff]
    %v591 = vld [vmem:[%s3 + $0xd0] sm:$0xff]
    %v592 = vld [vmem:[%s3 + $0xd8] sm:$0xff]
    %v593 = vld [vmem:[%s3 + $0xe0] sm:$0xff]
    %v594 = vld [vmem:[%s3 + $0xe8] sm:$0xff]
    %v595 = vld [vmem:[%s3 + $0xf0] sm:$0xff]
    %v596 = vld [vmem:[%s3 + $0xf8] sm:$0xff]
    %v597 = vld [vmem:[%s4] sm:$0x1]
    %v599 = vlaneseq
    %v600 = vshrl.u32 %v599, 7
    %v601 = vsub.s32 0, %v600
    %v602 = vrot.slane %v597, %v601
    %604 = vmatprep.subr.mxu0 0.0
    %605 = vmatpush1.msra.mxu0 %v565
    %606 = vmatprep.subr.mxu0 0.0
    %607 = vmatpush1.msra.mxu0 %v566
    %608 = vmatprep.subr.mxu0 0.0
    %609 = vmatpush1.msra.mxu0 %v567
    %610 = vmatprep.subr.mxu0 0.0
    %611 = vmatpush1.msra.mxu0 %v568
    %612 = vmatprep.subr.mxu0 0.0
    %613 = vmatpush1.msra.mxu0 %v569
    %614 = vmatprep.subr.mxu0 0.0
    %615 = vmatpush1.msra.mxu0 %v570
    %616 = vmatprep.subr.mxu0 0.0
    %617 = vmatpush1.msra.mxu0 %v571
    %618 = vmatprep.subr.mxu0 0.0
    %619 = vmatpush1.msra.mxu0 %v572
    %620 = vmatprep.subr.mxu0 0.0
    %621 = vmatpush1.msra.mxu0 %v573
    %622 = vmatprep.subr.mxu0 0.0
    %623 = vmatpush1.msra.mxu0 %v574
    %624 = vmatprep.subr.mxu0 0.0
    %625 = vmatpush1.msra.mxu0 %v575
    %626 = vmatprep.subr.mxu0 0.0
    %627 = vmatpush1.msra.mxu0 %v576
    %628 = vmatprep.subr.mxu0 0.0
    %629 = vmatpush1.msra.mxu0 %v577
    %630 = vmatprep.subr.mxu0 0.0
    %631 = vmatpush1.msra.mxu0 %v578
    %632 = vmatprep.subr.mxu0 0.0
    %633 = vmatpush1.msra.mxu0 %v579
    %634 = vmatprep.subr.mxu0 0.0
    %635 = vmatpush1.msra.mxu0 %v580
    %636 = vmatprep.subr.mxu0 0.0
    %637 = vmatpush1.msra.mxu0 %v581
    %638 = vmatprep.subr.mxu0 0.0
    %639 = vmatpush1.msra.mxu0 %v582
    %640 = vmatprep.subr.mxu0 0.0
    %641 = vmatpush1.msra.mxu0 %v583
    %642 = vmatprep.subr.mxu0 0.0
    %643 = vmatpush1.msra.mxu0 %v584
    %644 = vmatprep.subr.mxu0 0.0
    %645 = vmatpush1.msra.mxu0 %v585
    %646 = vmatprep.subr.mxu0 0.0
    %647 = vmatpush1.msra.mxu0 %v586
    %648 = vmatprep.subr.mxu0 0.0
    %649 = vmatpush1.msra.mxu0 %v587
    %650 = vmatprep.subr.mxu0 0.0
    %651 = vmatpush1.msra.mxu0 %v588
    %652 = vmatprep.subr.mxu0 0.0
    %653 = vmatpush1.msra.mxu0 %v589
    %654 = vmatprep.subr.mxu0 0.0
    %655 = vmatpush1.msra.mxu0 %v590
    %656 = vmatprep.subr.mxu0 0.0
    %657 = vmatpush1.msra.mxu0 %v591
    %658 = vmatprep.subr.mxu0 0.0
    %659 = vmatpush1.msra.mxu0 %v592
    %660 = vmatprep.subr.mxu0 0.0
    %661 = vmatpush1.msra.mxu0 %v593
    %662 = vmatprep.subr.mxu0 0.0
    %663 = vmatpush1.msra.mxu0 %v594
    %664 = vmatprep.subr.mxu0 0.0
    %665 = vmatpush1.msra.mxu0 %v595
    %666 = vmatprep.subr.mxu0 0.0
    %667 = vmatpush1.msra.mxu0 %v596
    %668 = vmatprep.mubr.f32.mxu0 %v563
    %669 = vmatmul.mubr.f32.gmra.mrb[0].mxu0 %v561
    %v670 = vpop.f32.mrb[0].mxu0
    %v671 = vadd.f32 %v602, %v670
    %v672 = vpop.f32.mrb[0].mxu0
    %673 = vdwg.mxu0
    %v674 = vld [vmem:[%s5] sm:$0xff]
    %v675 = vld [vmem:[%s5 + $0x8] sm:$0xff]
    %v676 = vld [vmem:[%s5 + $0x10] sm:$0xff]
    %v677 = vld [vmem:[%s5 + $0x18] sm:$0xff]
    %v678 = vld [vmem:[%s5 + $0x20] sm:$0xff]
    %v679 = vld [vmem:[%s5 + $0x28] sm:$0xff]
    %v680 = vld [vmem:[%s5 + $0x30] sm:$0xff]
    %v681 = vld [vmem:[%s5 + $0x38] sm:$0xff]
    %v682 = vld [vmem:[%s6] sm:$0x1]
    %v684 = vlaneseq
    %v685 = vshrl.u32 %v684, 7
    %v686 = vsub.s32 0, %v685
    %v687 = vrot.slane %v682, %v686
    %vm689 = vcmask 523264
    %v691 = vsel %vm689, %v671, 0
    %693 = vmatprep.subr.mxu0 0.0
    %694 = vmatpush1.msra.mxu0 %v674
    %695 = vmatprep.subr.mxu0 0.0
    %696 = vmatpush1.msra.mxu0 %v675
    %697 = vmatprep.subr.mxu0 0.0
    %698 = vmatpush1.msra.mxu0 %v676
    %699 = vmatprep.subr.mxu0 0.0
    %700 = vmatpush1.msra.mxu0 %v677
    %701 = vmatprep.subr.mxu0 0.0
    %702 = vmatpush1.msra.mxu0 %v678
    %703 = vmatprep.subr.mxu0 0.0
    %704 = vmatpush1.msra.mxu0 %v679
    %705 = vmatprep.subr.mxu0 0.0
    %706 = vmatpush1.msra.mxu0 %v680
    %707 = vmatprep.subr.mxu0 0.0
    %708 = vmatpush1.msra.mxu0 %v681
    %709 = vmatprep.subr.mxu0 0.0
    %710 = vmatpush1.msra.mxu0 0.0
    %711 = vmatprep.subr.mxu0 0.0
    %712 = vmatpush1.msra.mxu0 0.0
    %713 = vmatprep.subr.mxu0 0.0
    %714 = vmatpush1.msra.mxu0 0.0
    %715 = vmatprep.subr.mxu0 0.0
    %716 = vmatpush1.msra.mxu0 0.0
    %717 = vmatprep.subr.mxu0 0.0
    %718 = vmatpush1.msra.mxu0 0.0
    %719 = vmatprep.subr.mxu0 0.0
    %720 = vmatpush1.msra.mxu0 0.0
    %721 = vmatprep.subr.mxu0 0.0
    %722 = vmatpush1.msra.mxu0 0.0
    %723 = vmatprep.subr.mxu0 0.0
    %724 = vmatpush1.msra.mxu0 0.0
    %725 = vmatprep.subr.mxu0 0.0
    %726 = vmatpush1.msra.mxu0 0.0
    %727 = vmatprep.subr.mxu0 0.0
    %728 = vmatpush1.msra.mxu0 0.0
    %729 = vmatprep.subr.mxu0 0.0
    %730 = vmatpush1.msra.mxu0 0.0
    %731 = vmatprep.subr.mxu0 0.0
    %732 = vmatpush1.msra.mxu0 0.0
    %733 = vmatprep.subr.mxu0 0.0
    %734 = vmatpush1.msra.mxu0 0.0
    %735 = vmatprep.subr.mxu0 0.0
    %736 = vmatpush1.msra.mxu0 0.0
    %737 = vmatprep.subr.mxu0 0.0
    %738 = vmatpush1.msra.mxu0 0.0
    %739 = vmatprep.subr.mxu0 0.0
    %740 = vmatpush1.msra.mxu0 0.0
    %741 = vmatprep.subr.mxu0 0.0
    %742 = vmatpush1.msra.mxu0 0.0
    %743 = vmatprep.subr.mxu0 0.0
    %744 = vmatpush1.msra.mxu0 0.0
    %745 = vmatprep.subr.mxu0 0.0
    %746 = vmatpush1.msra.mxu0 0.0
    %747 = vmatprep.subr.mxu0 0.0
    %748 = vmatpush1.msra.mxu0 0.0
    %749 = vmatprep.subr.mxu0 0.0
    %750 = vmatpush1.msra.mxu0 0.0
    %751 = vmatprep.subr.mxu0 0.0
    %752 = vmatpush1.msra.mxu0 0.0
    %753 = vmatprep.subr.mxu0 0.0
    %754 = vmatpush1.msra.mxu0 0.0
    %755 = vmatprep.subr.mxu0 0.0
    %756 = vmatpush1.msra.mxu0 0.0
    %757 = vmatprep.mubr.f32.mxu0 0.0
    %758 = vmatmul.mubr.f32.gmra.mrb[0].mxu0 %v691
    %v759 = vpop.f32.mrb[0].mxu0
    %v760 = vadd.f32 %v687, %v759
    %v761 = vpop.f32.mrb[0].mxu0
    %762 = vdwg.mxu0
    %vm763 = vcmask 74752
    %764 = vst.msk [vmem:[#allocation2] sm:$0x3] %vm763, %v760
    // Predicated region
    $region30: #{forward.9} parent=1 // pred_check
      _
    $region31: #{forward.9} parent=1 // pred_check_branch
      %766 = sbr.rel (0) target = $region33
    $region32: #{forward.9} parent=1 // pred_region
      %s768 = ssub.s32 32, 32
      %769 = vsyncadd [#allocation3], %s768
      %s771 = sshll.u32 [#allocation2], 4
      %s772 = int_to_ptr.vmem [resolvable:$true] %s771
      %774 = dma.vmem_to_hbm [thread:$0]  %s772, 32, %s7, [#allocation3]
    $region33: #{forward.9} parent=1 // pred_fallthru
      _
    // Predicated region
    $region34: #{forward.9} parent=1 // pred_check
      _
    $region35: #{forward.9} parent=1 // pred_check_branch
      %776 = sbr.rel (0) target = $region37
    $region36: #{forward.9} parent=1 // pred_region
      %777 = dma.done [#allocation3], 32
    $region37: #{forward.9} parent=1 // pred_fallthru
      _
    %778 = vsyncpa [#allocation3], 1

</llo_original>
